<compile_context>
chip_gen: v6e
topology: v6e:2x2x1
jax: 0.10.0
libtpu: 0.0.40
codegen_flags: <defaults>
</compile_context>

<pallas_src>
import numpy as np
import jax
import jax.numpy as jnp
from jax import lax
from jax.experimental import pallas as pl
from jax.experimental.pallas import tpu as pltpu

BN_EPS = 1e-5
NUM_CLASSES = 10
CPAD = 128          # channel / lane padding (kept end-to-end)
K1PAD = 64          # conv1 im2col K (49 taps) padded to a sublane multiple


# ----------------------------- host-side helpers ----------------------------

def _round_up(n, m):
    return ((n + m - 1) // m) * m


def _row_pad(n):
    return max(8, _round_up(n, 8))


def _out_dim(n, k, s, p):
    return (n + 2 * p - k) // s + 1


def _bn_fold(bn, C):
    scale = bn["weight"] / jnp.sqrt(bn["running_var"] + BN_EPS)
    shift = bn["bias"] - bn["running_mean"] * scale
    sc = jnp.zeros((1, CPAD), jnp.float32).at[0, :C].set(scale)
    sh = jnp.zeros((1, CPAD), jnp.float32).at[0, :C].set(shift)
    return sc, sh


def _plan_conv(raw_w, bn, B, H, W, stride, pad, m_in):
    """Plan one conv + folded BN.

    Returns (static plan, array dict, Ho, Wo, m_out).  Stride-1 same-resolution
    convs use roll-mode taps (sublane roll + mask); others use tiny rectangular
    0/1 selectors.  Taps are lane-packed (taps_per_group = 128 // Cin) and the
    weight is stacked accordingly so the kernel issues a single long-K dot.
    """
    Cout, Cin, kh, kw = raw_w.shape
    Ho, Wo = _out_dim(H, kh, stride, pad), _out_dim(W, kw, stride, pad)
    nvalid_in, nvalid_out = B * H * W, B * Ho * Wo
    m_out = _row_pad(nvalid_out)
    same = (stride == 1 and Ho == H and Wo == W and m_in == m_out)

    taps = []
    for ki in range(kh):
        for kj in range(kw):
            ok = any(0 <= ho * stride + ki - pad < H and 0 <= wo * stride + kj - pad < W
                     for ho in range(Ho) for wo in range(Wo))
            if ok:
                taps.append((ki, kj))
    ntaps = len(taps)
    tpg = max(1, CPAD // Cin)
    ngroups = -(-ntaps // tpg)

    # stacked, lane-packed weight: (ngroups*128, 128)
    w_kkio = np.transpose(np.asarray(raw_w, np.float32), (2, 3, 1, 0))
    w_stk = np.zeros((ngroups * CPAD, CPAD), np.float32)
    grp, off = [], []
    for t, (ki, kj) in enumerate(taps):
        g, o = t // tpg, (t % tpg) * Cin
        grp.append(g)
        off.append(o)
        w_stk[g * CPAD + o: g * CPAD + o + Cin, :Cout] = w_kkio[ki, kj]

    plan = dict(mode="roll" if same else "sel", M_in=m_in, M_out=m_out,
                H=H, W=W, nvalid_in=nvalid_in, nvalid_out=nvalid_out,
                grp=grp, off=off, ngroups=ngroups, ntaps=ntaps)
    arrs = dict(w=jnp.asarray(w_stk, jnp.bfloat16))

    if same:
        plan["shifts"] = [(-((ki - pad) * W + (kj - pad))) % m_in for ki, kj in taps]
        plan["dhw"] = [(ki - pad, kj - pad) for ki, kj in taps]
    else:
        S = np.zeros((ntaps, m_out, m_in), np.float32)
        for t, (ki, kj) in enumerate(taps):
            for b in range(B):
                for ho in range(Ho):
                    for wo in range(Wo):
                        hi, wi = ho * stride + ki - pad, wo * stride + kj - pad
                        if 0 <= hi < H and 0 <= wi < W:
                            S[t, (b * Ho + ho) * Wo + wo, (b * H + hi) * W + wi] = 1.0
        arrs["sel"] = jnp.asarray(S, jnp.bfloat16)

    arrs["scale"], arrs["shift"] = _bn_fold(bn, Cout)
    return plan, arrs, Ho, Wo, m_out


# ------------------------------- parameters ---------------------------------

def _kaiming_conv(key, cout, cin, kh, kw):
    fan_out = cout * kh * kw
    std = (2.0 / fan_out) ** 0.5
    return std * jax.random.normal(key, (cout, cin, kh, kw), jnp.float32)


def _bn_params(c):
    return dict(weight=jnp.ones((c,), jnp.float32),
                bias=jnp.zeros((c,), jnp.float32),
                running_mean=jnp.zeros((c,), jnp.float32),
                running_var=jnp.ones((c,), jnp.float32))


def make_raw_params(key, layers=(1, 1, 1, 1), num_classes=NUM_CLASSES):
    keys = jax.random.split(key, 8)
    params = dict(conv1=_kaiming_conv(keys[0], 16, 1, 7, 7), bn1=_bn_params(16))
    inplanes = 16
    plan = [("layer1", 16, 1), ("layer2", 32, 2), ("layer3", 64, 2), ("layer4", 128, 2)]
    for idx, ((name, planes, stride), nblk) in enumerate(zip(plan, layers)):
        bkeys = jax.random.split(keys[1 + idx], max(nblk, 1) * 3)
        blks = []
        for i in range(nblk):
            s = stride if i == 0 else 1
            k1, k2, k3 = bkeys[3 * i:3 * i + 3]
            blk = dict(stride=s,
                       conv1_w=_kaiming_conv(k1, planes, inplanes, 3, 3),
                       bn1=_bn_params(planes),
                       conv2_w=_kaiming_conv(k2, planes, planes, 3, 3),
                       bn2=_bn_params(planes),
                       downsample=None)
            if s != 1 or inplanes != planes:        # BasicBlock.expansion == 1
                blk["downsample"] = dict(
                    conv_w=_kaiming_conv(k3, planes, inplanes, 1, 1),
                    bn=_bn_params(planes))
            blks.append(blk)
            inplanes = planes
        params[name] = blks
    bound = 1.0 / (inplanes ** 0.5)
    params["fc_w"] = jax.random.uniform(keys[5], (num_classes, inplanes),
                                        jnp.float32, -bound, bound)
    params["fc_b"] = jax.random.uniform(keys[6], (num_classes,),
                                        jnp.float32, -bound, bound)
    return params


def build_kernel_params(raw, B, T, F, num_classes=NUM_CLASSES):
    assert num_classes <= CPAD
    H1, W1 = _out_dim(T, 7, 2, 3), _out_dim(F, 7, 2, 3)
    M0 = _row_pad(B * H1 * W1)

    kp, plan = {}, {}
    plan.update(B=B, T=T, F=F, H1=H1, W1=W1, M0=M0, nvalid0=B * H1 * W1,
                num_classes=num_classes)

    # conv1 (7x7/s2, Cin=1) as a single im2col GEMM, K padded to 64
    w1 = np.transpose(np.asarray(raw["conv1"], np.float32), (2, 3, 1, 0)).reshape(49, 16)
    w1p = np.zeros((K1PAD, CPAD), np.float32)
    w1p[:49, :16] = w1
    kp["conv1_w"] = jnp.asarray(w1p, jnp.bfloat16)
    kp["bn1_scale"], kp["bn1_shift"] = _bn_fold(raw["bn1"], 16)

    # maxpool 3x3/s2/p1: window-max via rolls at conv1 resolution, then one
    # stride-2 row-subsample selector (rows 128 -> 32)
    Hp, Wp = _out_dim(H1, 3, 2, 1), _out_dim(W1, 3, 2, 1)
    Mp = _row_pad(B * Hp * Wp)
    pool_taps = []
    for dh in (-1, 0, 1):
        for dw in (-1, 0, 1):
            if dh == 0 and dw == 0:
                continue
            pool_taps.append((dh, dw, (-(dh * W1 + dw)) % M0))
    plan["pool"] = dict(taps=pool_taps, H=H1, W=W1, M=M0, nvalid=B * H1 * W1)
    Ssub = np.zeros((Mp, M0), np.float32)
    for b in range(B):
        for ho in range(Hp):
            for wo in range(Wp):
                Ssub[(b * Hp + ho) * Wp + wo, (b * H1 + 2 * ho) * W1 + 2 * wo] = 1.0
    kp["pool_sel"] = jnp.asarray(Ssub, jnp.bfloat16)

    # residual stages
    H, W, M, cin = Hp, Wp, Mp, 16
    blk_plans, blk_arrs = [], []
    for name, planes in (("layer1", 16), ("layer2", 32), ("layer3", 64), ("layer4", 128)):
        for blk in raw[name]:
            s = blk["stride"]
            p1, a1, Ho, Wo, Mo = _plan_conv(blk["conv1_w"], blk["bn1"], B, H, W, s, 1, M)
            p2, a2, _, _, _ = _plan_conv(blk["conv2_w"], blk["bn2"], B, Ho, Wo, 1, 1, Mo)
            bp, ba = dict(conv1=p1, conv2=p2, ds=None), dict(conv1=a1, conv2=a2, ds=None)
            if blk["downsample"] is not None:
                pd, ad, _, _, _ = _plan_conv(blk["downsample"]["conv_w"],
                                             blk["downsample"]["bn"], B, H, W, s, 0, M)
                bp["ds"], ba["ds"] = pd, ad
            blk_plans.append(bp)
            blk_arrs.append(ba)
            H, W, M, cin = Ho, Wo, Mo, planes
    plan["blocks"] = blk_plans
    kp["blocks"] = blk_arrs

    # head: global average pool + classifier
    Mb = _row_pad(B)
    plan["head"] = dict(H=H, W=W, M=M, Mb=Mb, inv_hw=1.0 / (H * W))
    Savg = np.zeros((Mb, M), np.float32)
    for b in range(B):
        for i in range(H * W):
            Savg[b, b * H * W + i] = 1.0
    kp["pool_avg"] = jnp.asarray(Savg, jnp.bfloat16)
    fcw = np.zeros((CPAD, CPAD), np.float32)
    fcw[:cin, :num_classes] = np.asarray(raw["fc_w"], np.float32).T
    kp["fc_w"] = jnp.asarray(fcw, jnp.bfloat16)
    fcb = np.zeros((1, CPAD), np.float32)
    fcb[0, :num_classes] = np.asarray(raw["fc_b"], np.float32)
    kp["fc_b"] = jnp.asarray(fcb, jnp.float32)
    return kp, plan


# --------------------------- conv1 im2col (XLA) ------------------------------

def conv1_patches(x_nchw, plan):
    B, H1, W1, M0 = plan["B"], plan["H1"], plan["W1"], plan["M0"]
    x = jnp.transpose(x_nchw.astype(jnp.float32), (0, 2, 3, 1))     # NHWC, C=1
    xp = jnp.pad(x, ((0, 0), (3, 3), (3, 3), (0, 0)))
    taps = [xp[:, ki:ki + 2 * H1:2, kj:kj + 2 * W1:2, :]
            for ki in range(7) for kj in range(7)]
    patches = jnp.concatenate(taps, axis=-1).reshape(B * H1 * W1, 49)
    patches = jnp.pad(patches, ((0, M0 - B * H1 * W1), (0, K1PAD - 49)))
    return patches.astype(jnp.bfloat16)


# -------------------------------- forward ------------------------------------

def resnet_forward(kp, plan, x_nchw):
    B, nc = plan["B"], plan["num_classes"]
    Mb = plan["head"]["Mb"]
    inputs = dict(kp)
    inputs["patches"] = conv1_patches(x_nchw, plan)
    leaves, treedef = jax.tree_util.tree_flatten(inputs)
    n_in = len(leaves)

    def row_coords(M, H, W):
        # (row, h, w) index vectors; H, W are powers of two here so only
        # cheap bitwise VPU ops are emitted.
        r = lax.broadcasted_iota(jnp.int32, (M, 1), 0)
        hw = H * W
        if (W & (W - 1)) == 0 and (hw & (hw - 1)) == 0:
            w = jnp.bitwise_and(r, W - 1)
            h = jnp.right_shift(jnp.bitwise_and(r, hw - 1), W.bit_length() - 1)
        else:
            w = r % W
            h = (r % hw) // W
        return r, h, w

    def tap_mask(coords, M, H, W, nvalid, dh, dw):
        # 0/1 border + padded-row mask for a (dh, dw) roll tap; None if trivial.
        r, h, w = coords
        conds = []
        if nvalid < M:
            conds.append(r < nvalid)
        if dh > 0:
            conds.append(h < H - dh)
        elif dh < 0:
            conds.append(h >= -dh)
        if dw > 0:
            conds.append(w < W - dw)
        elif dw < 0:
            conds.append(w >= -dw)
        if not conds:
            return None
        ok = conds[0]
        for c in conds[1:]:
            ok = jnp.logical_and(ok, c)
        return ok.astype(jnp.float32)

    def kernel(*refs):
        p = jax.tree_util.tree_unflatten(treedef, refs[:n_in])
        out_ref = refs[n_in]

        def conv_bn(x_f32, x_bf, cp, ar, relu, residual=None):
            # Gather taps (XLU roll + VPU mask, or tiny selector GEMM for the
            # stride-2 cases), lane-pack the real Cin channels of several taps
            # into each 128-lane group, then a single long-K MXU dot against
            # the pre-stacked weight; fused folded-BN / residual / ReLU.
            coords = row_coords(cp["M_in"], cp["H"], cp["W"]) if cp["mode"] == "roll" else None
            groups = [None] * cp["ngroups"]
            for t in range(cp["ntaps"]):
                if cp["mode"] == "roll":
                    sh = cp["shifts"][t]
                    tap = x_f32 if sh == 0 else pltpu.roll(x_f32, sh, axis=0)
                    dh, dw = cp["dhw"][t]
                    m = tap_mask(coords, cp["M_in"], cp["H"], cp["W"],
                                 cp["nvalid_in"], dh, dw)
                    if m is not None:
                        tap = tap * m
                else:
                    tap = jnp.dot(ar["sel"][t], x_bf,
                                  preferred_element_type=jnp.float32)
                o = cp["off"][t]
                if o:
                    tap = pltpu.roll(tap, o, axis=1)   # lane-pack this tap
                g = cp["grp"][t]
                groups[g] = tap if groups[g] is None else groups[g] + tap
            parts = [g.astype(jnp.bfloat16) for g in groups]
            lhs = parts[0] if len(parts) == 1 else jnp.concatenate(parts, axis=-1)
            y = jnp.dot(lhs, ar["w"][...], preferred_element_type=jnp.float32)
            y = y * ar["scale"][...] + ar["shift"][...]
            if residual is not None:
                y = y + residual
            if relu:
                y = jnp.maximum(y, 0.0)
            return y

        # ---- conv1 (single im2col GEMM) + folded BN + ReLU ------------------
        x = jnp.dot(p["patches"][...], p["conv1_w"][...],
                    preferred_element_type=jnp.float32)
        x = jnp.maximum(x * p["bn1_scale"][...] + p["bn1_shift"][...], 0.0)

        # ---- maxpool 3x3/s2/p1: rolls + masks + running max (x >= 0 so the
        #      masked zeros never win), then one stride-2 subsample GEMM ------
        mp = plan["pool"]
        coords = row_coords(mp["M"], mp["H"], mp["W"])
        r = x                                   # center tap
        for dh, dw, sh in mp["taps"]:
            t = pltpu.roll(x, sh, axis=0)
            m = tap_mask(coords, mp["M"], mp["H"], mp["W"], mp["nvalid"], dh, dw)
            if m is not None:
                t = t * m
            r = jnp.maximum(r, t)
        x = jnp.dot(p["pool_sel"][...], r.astype(jnp.bfloat16),
                    preferred_element_type=jnp.float32)
        xb = x.astype(jnp.bfloat16)

        # ---- four BasicBlocks, fully fused (per-stage M: 32 -> 8 -> 8 -> 8) -
        for bp, ba in zip(plan["blocks"], p["blocks"]):
            identity = x
            if bp["ds"] is not None:
                identity = conv_bn(x, xb, bp["ds"], ba["ds"], relu=False)
            y = conv_bn(x, xb, bp["conv1"], ba["conv1"], relu=True)
            x = conv_bn(y, y.astype(jnp.bfloat16), bp["conv2"], ba["conv2"],
                        relu=True, residual=identity)
            xb = x.astype(jnp.bfloat16)

        # ---- global average pool + classifier + masked log_softmax ----------
        hd = plan["head"]
        pooled = jnp.dot(p["pool_avg"][...], xb,
                         preferred_element_type=jnp.float32) * hd["inv_hw"]
        logits = jnp.dot(pooled.astype(jnp.bfloat16), p["fc_w"][...],
                         preferred_element_type=jnp.float32) + p["fc_b"][...]
        col = lax.broadcasted_iota(jnp.int32, (hd["Mb"], CPAD), 1)
        z = jnp.where(col < nc, logits, -1e30)
        mmax = jnp.max(z, axis=-1, keepdims=True)
        s = z - mmax
        out_ref[...] = s - jnp.log(jnp.sum(jnp.exp(s), axis=-1, keepdims=True))

    out = pl.pallas_call(
        kernel,
        out_shape=jax.ShapeDtypeStruct((Mb, CPAD), jnp.float32),
        compiler_params=pltpu.CompilerParams(vmem_limit_bytes=32 * 1024 * 1024),
    )(*leaves)
    return out[:B, :nc]


# ---------------------------------- main --------------------------------------

if __name__ == "__main__":
    key = jax.random.PRNGKey(0)
    kp_key, k1, k2 = jax.random.split(key, 3)
    raw = make_raw_params(kp_key)

    # TODO(synk): the module's host-side glue (list of np arrays -> .cuda(),
    # rnn.pad_sequence, unsqueeze) is emulated here with plain padding/stack.
    seqs = [jax.random.normal(k1, (16, 16), jnp.float32),
            jax.random.normal(k2, (12, 16), jnp.float32)]
    T = max(s.shape[0] for s in seqs)
    x = jnp.stack([jnp.pad(s, ((0, T - s.shape[0]), (0, 0))) for s in seqs])
    x = x[:, None, :, :]                                     # (2, 1, 16, 16)

    kp, plan = build_kernel_params(raw, B=x.shape[0], T=x.shape[2], F=x.shape[3])

    fwd = jax.jit(lambda inp: resnet_forward(kp, plan, inp))
    out = fwd(x)
    jax.block_until_ready(out)
    assert out.shape == (2, NUM_CLASSES)
    assert bool(jnp.all(jnp.isfinite(out)))
    print("KERNEL_OK")
</pallas_src>

<mosaic_0001>
module attributes {stable_mosaic.version = 11 : i64} {
  func.func @kernel(%arg0: memref<1x128xf32, #tpu.memory_space<vmem>>, %arg1: memref<1x128xf32, #tpu.memory_space<vmem>>, %arg2: memref<256x128xbf16, #tpu.memory_space<vmem>>, %arg3: memref<1x128xf32, #tpu.memory_space<vmem>>, %arg4: memref<1x128xf32, #tpu.memory_space<vmem>>, %arg5: memref<256x128xbf16, #tpu.memory_space<vmem>>, %arg6: memref<1x128xf32, #tpu.memory_space<vmem>>, %arg7: memref<9x8x32xbf16, #tpu.memory_space<vmem>>, %arg8: memref<1x128xf32, #tpu.memory_space<vmem>>, %arg9: memref<256x128xbf16, #tpu.memory_space<vmem>>, %arg10: memref<1x128xf32, #tpu.memory_space<vmem>>, %arg11: memref<1x128xf32, #tpu.memory_space<vmem>>, %arg12: memref<384x128xbf16, #tpu.memory_space<vmem>>, %arg13: memref<1x128xf32, #tpu.memory_space<vmem>>, %arg14: memref<1x8x32xbf16, #tpu.memory_space<vmem>>, %arg15: memref<1x128xf32, #tpu.memory_space<vmem>>, %arg16: memref<128x128xbf16, #tpu.memory_space<vmem>>, %arg17: memref<1x128xf32, #tpu.memory_space<vmem>>, %arg18: memref<4x8x8xbf16, #tpu.memory_space<vmem>>, %arg19: memref<1x128xf32, #tpu.memory_space<vmem>>, %arg20: memref<128x128xbf16, #tpu.memory_space<vmem>>, %arg21: memref<1x128xf32, #tpu.memory_space<vmem>>, %arg22: memref<1x128xf32, #tpu.memory_space<vmem>>, %arg23: memref<128x128xbf16, #tpu.memory_space<vmem>>, %arg24: memref<1x128xf32, #tpu.memory_space<vmem>>, %arg25: memref<1x8x8xbf16, #tpu.memory_space<vmem>>, %arg26: memref<1x128xf32, #tpu.memory_space<vmem>>, %arg27: memref<128x128xbf16, #tpu.memory_space<vmem>>, %arg28: memref<1x128xf32, #tpu.memory_space<vmem>>, %arg29: memref<1x8x8xbf16, #tpu.memory_space<vmem>>, %arg30: memref<1x128xf32, #tpu.memory_space<vmem>>, %arg31: memref<128x128xbf16, #tpu.memory_space<vmem>>, %arg32: memref<1x128xf32, #tpu.memory_space<vmem>>, %arg33: memref<1x128xf32, #tpu.memory_space<vmem>>, %arg34: memref<128x128xbf16, #tpu.memory_space<vmem>>, %arg35: memref<1x128xf32, #tpu.memory_space<vmem>>, %arg36: memref<1x8x8xbf16, #tpu.memory_space<vmem>>, %arg37: memref<1x128xf32, #tpu.memory_space<vmem>>, %arg38: memref<128x128xbf16, #tpu.memory_space<vmem>>, %arg39: memref<1x128xf32, #tpu.memory_space<vmem>>, %arg40: memref<1x128xf32, #tpu.memory_space<vmem>>, %arg41: memref<64x128xbf16, #tpu.memory_space<vmem>>, %arg42: memref<1x128xf32, #tpu.memory_space<vmem>>, %arg43: memref<128x128xbf16, #tpu.memory_space<vmem>>, %arg44: memref<128x64xbf16, #tpu.memory_space<vmem>>, %arg45: memref<8x8xbf16, #tpu.memory_space<vmem>>, %arg46: memref<32x128xbf16, #tpu.memory_space<vmem>>, %arg47: memref<8x128xf32, #tpu.memory_space<vmem>>) attributes {dimension_semantics = [], scalar_prefetch = 0 : i64, scratch_operands = 0 : i64, tpu.core_type = #tpu.core_type<tc>} {
    %c0 = arith.constant 0 : index
    %c0_0 = arith.constant 0 : index
    %0 = vector.load %arg44[%c0, %c0_0] : memref<128x64xbf16, #tpu.memory_space<vmem>>, vector<128x64xbf16>
    %c0_1 = arith.constant 0 : index
    %c0_2 = arith.constant 0 : index
    %1 = vector.load %arg41[%c0_1, %c0_2] : memref<64x128xbf16, #tpu.memory_space<vmem>>, vector<64x128xbf16>
    %cst = arith.constant dense<0.000000e+00> : vector<128x128xf32>
    %2 = tpu.matmul %0, %1, %cst {dimension_numbers = #tpu.dot_dimension_numbers<[1], [0], [0], [1], [0, 0, 1, 1], [], []>} : vector<128x64xbf16>, vector<64x128xbf16>, vector<128x128xf32> -> vector<128x128xf32>
    %c0_3 = arith.constant 0 : index
    %c0_4 = arith.constant 0 : index
    %3 = vector.load %arg39[%c0_3, %c0_4] : memref<1x128xf32, #tpu.memory_space<vmem>>, vector<1x128xf32>
    %4 = vector.broadcast %3 : vector<1x128xf32> to vector<128x128xf32>
    %5 = arith.mulf %2, %4 : vector<128x128xf32>
    %c0_5 = arith.constant 0 : index
    %c0_6 = arith.constant 0 : index
    %6 = vector.load %arg40[%c0_5, %c0_6] : memref<1x128xf32, #tpu.memory_space<vmem>>, vector<1x128xf32>
    %7 = vector.broadcast %6 : vector<1x128xf32> to vector<128x128xf32>
    %8 = arith.addf %5, %7 : vector<128x128xf32>
    %cst_7 = arith.constant 0.000000e+00 : f32
    %9 = vector.broadcast %cst_7 : f32 to vector<128x128xf32>
    %10 = arith.maximumf %8, %9 : vector<128x128xf32>
    %11 = tpu.iota {dimensions = array<i32: 0>} : vector<128x1xi32>
    %c7_i32 = arith.constant 7 : i32
    %12 = vector.broadcast %c7_i32 : i32 to vector<128x1xi32>
    %13 = arith.andi %11, %12 : vector<128x1xi32>
    %c63_i32 = arith.constant 63 : i32
    %14 = vector.broadcast %c63_i32 : i32 to vector<128x1xi32>
    %15 = arith.andi %11, %14 : vector<128x1xi32>
    %c3_i32 = arith.constant 3 : i32
    %16 = vector.broadcast %c3_i32 : i32 to vector<128x1xi32>
    %17 = arith.shrsi %15, %16 : vector<128x1xi32>
    %c9_i32 = arith.constant 9 : i32
    %18 = tpu.dynamic_rotate %10 by %c9_i32 dim 0 : vector<128x128xf32>, i32 -> vector<128x128xf32>
    %c1_i32 = arith.constant 1 : i32
    %19 = vector.broadcast %c1_i32 : i32 to vector<128x1xi32>
    %20 = arith.cmpi sge, %17, %19 : vector<128x1xi32>
    %c1_i32_8 = arith.constant 1 : i32
    %21 = vector.broadcast %c1_i32_8 : i32 to vector<128x1xi32>
    %22 = arith.cmpi sge, %13, %21 : vector<128x1xi32>
    %23 = arith.andi %20, %22 : vector<128x1xi1>
    %24 = arith.extui %23 : vector<128x1xi1> to vector<128x1xi32>
    %25 = arith.sitofp %24 : vector<128x1xi32> to vector<128x1xf32>
    %26 = vector.broadcast %25 : vector<128x1xf32> to vector<128x128xf32>
    %27 = arith.mulf %18, %26 : vector<128x128xf32>
    %28 = arith.maximumf %10, %27 : vector<128x128xf32>
    %c8_i32 = arith.constant 8 : i32
    %29 = tpu.dynamic_rotate %10 by %c8_i32 dim 0 : vector<128x128xf32>, i32 -> vector<128x128xf32>
    %c1_i32_9 = arith.constant 1 : i32
    %30 = vector.broadcast %c1_i32_9 : i32 to vector<128x1xi32>
    %31 = arith.cmpi sge, %17, %30 : vector<128x1xi32>
    %32 = arith.extui %31 : vector<128x1xi1> to vector<128x1xi32>
    %33 = arith.sitofp %32 : vector<128x1xi32> to vector<128x1xf32>
    %34 = vector.broadcast %33 : vector<128x1xf32> to vector<128x128xf32>
    %35 = arith.mulf %29, %34 : vector<128x128xf32>
    %36 = arith.maximumf %28, %35 : vector<128x128xf32>
    %c7_i32_10 = arith.constant 7 : i32
    %37 = tpu.dynamic_rotate %10 by %c7_i32_10 dim 0 : vector<128x128xf32>, i32 -> vector<128x128xf32>
    %c1_i32_11 = arith.constant 1 : i32
    %38 = vector.broadcast %c1_i32_11 : i32 to vector<128x1xi32>
    %39 = arith.cmpi sge, %17, %38 : vector<128x1xi32>
    %c7_i32_12 = arith.constant 7 : i32
    %40 = vector.broadcast %c7_i32_12 : i32 to vector<128x1xi32>
    %41 = arith.cmpi slt, %13, %40 : vector<128x1xi32>
    %42 = arith.andi %39, %41 : vector<128x1xi1>
    %43 = arith.extui %42 : vector<128x1xi1> to vector<128x1xi32>
    %44 = arith.sitofp %43 : vector<128x1xi32> to vector<128x1xf32>
    %45 = vector.broadcast %44 : vector<128x1xf32> to vector<128x128xf32>
    %46 = arith.mulf %37, %45 : vector<128x128xf32>
    %47 = arith.maximumf %36, %46 : vector<128x128xf32>
    %c1_i32_13 = arith.constant 1 : i32
    %48 = tpu.dynamic_rotate %10 by %c1_i32_13 dim 0 : vector<128x128xf32>, i32 -> vector<128x128xf32>
    %c1_i32_14 = arith.constant 1 : i32
    %49 = vector.broadcast %c1_i32_14 : i32 to vector<128x1xi32>
    %50 = arith.cmpi sge, %13, %49 : vector<128x1xi32>
    %51 = arith.extui %50 : vector<128x1xi1> to vector<128x1xi32>
    %52 = arith.sitofp %51 : vector<128x1xi32> to vector<128x1xf32>
    %53 = vector.broadcast %52 : vector<128x1xf32> to vector<128x128xf32>
    %54 = arith.mulf %48, %53 : vector<128x128xf32>
    %55 = arith.maximumf %47, %54 : vector<128x128xf32>
    %c127_i32 = arith.constant 127 : i32
    %56 = tpu.dynamic_rotate %10 by %c127_i32 dim 0 : vector<128x128xf32>, i32 -> vector<128x128xf32>
    %c7_i32_15 = arith.constant 7 : i32
    %57 = vector.broadcast %c7_i32_15 : i32 to vector<128x1xi32>
    %58 = arith.cmpi slt, %13, %57 : vector<128x1xi32>
    %59 = arith.extui %58 : vector<128x1xi1> to vector<128x1xi32>
    %60 = arith.sitofp %59 : vector<128x1xi32> to vector<128x1xf32>
    %61 = vector.broadcast %60 : vector<128x1xf32> to vector<128x128xf32>
    %62 = arith.mulf %56, %61 : vector<128x128xf32>
    %63 = arith.maximumf %55, %62 : vector<128x128xf32>
    %c121_i32 = arith.constant 121 : i32
    %64 = tpu.dynamic_rotate %10 by %c121_i32 dim 0 : vector<128x128xf32>, i32 -> vector<128x128xf32>
    %c7_i32_16 = arith.constant 7 : i32
    %65 = vector.broadcast %c7_i32_16 : i32 to vector<128x1xi32>
    %66 = arith.cmpi slt, %17, %65 : vector<128x1xi32>
    %c1_i32_17 = arith.constant 1 : i32
    %67 = vector.broadcast %c1_i32_17 : i32 to vector<128x1xi32>
    %68 = arith.cmpi sge, %13, %67 : vector<128x1xi32>
    %69 = arith.andi %66, %68 : vector<128x1xi1>
    %70 = arith.extui %69 : vector<128x1xi1> to vector<128x1xi32>
    %71 = arith.sitofp %70 : vector<128x1xi32> to vector<128x1xf32>
    %72 = vector.broadcast %71 : vector<128x1xf32> to vector<128x128xf32>
    %73 = arith.mulf %64, %72 : vector<128x128xf32>
    %74 = arith.maximumf %63, %73 : vector<128x128xf32>
    %c120_i32 = arith.constant 120 : i32
    %75 = tpu.dynamic_rotate %10 by %c120_i32 dim 0 : vector<128x128xf32>, i32 -> vector<128x128xf32>
    %c7_i32_18 = arith.constant 7 : i32
    %76 = vector.broadcast %c7_i32_18 : i32 to vector<128x1xi32>
    %77 = arith.cmpi slt, %17, %76 : vector<128x1xi32>
    %78 = arith.extui %77 : vector<128x1xi1> to vector<128x1xi32>
    %79 = arith.sitofp %78 : vector<128x1xi32> to vector<128x1xf32>
    %80 = vector.broadcast %79 : vector<128x1xf32> to vector<128x128xf32>
    %81 = arith.mulf %75, %80 : vector<128x128xf32>
    %82 = arith.maximumf %74, %81 : vector<128x128xf32>
    %c119_i32 = arith.constant 119 : i32
    %83 = tpu.dynamic_rotate %10 by %c119_i32 dim 0 : vector<128x128xf32>, i32 -> vector<128x128xf32>
    %c7_i32_19 = arith.constant 7 : i32
    %84 = vector.broadcast %c7_i32_19 : i32 to vector<128x1xi32>
    %85 = arith.cmpi slt, %17, %84 : vector<128x1xi32>
    %c7_i32_20 = arith.constant 7 : i32
    %86 = vector.broadcast %c7_i32_20 : i32 to vector<128x1xi32>
    %87 = arith.cmpi slt, %13, %86 : vector<128x1xi32>
    %88 = arith.andi %85, %87 : vector<128x1xi1>
    %89 = arith.extui %88 : vector<128x1xi1> to vector<128x1xi32>
    %90 = arith.sitofp %89 : vector<128x1xi32> to vector<128x1xf32>
    %91 = vector.broadcast %90 : vector<128x1xf32> to vector<128x128xf32>
    %92 = arith.mulf %83, %91 : vector<128x128xf32>
    %93 = arith.maximumf %82, %92 : vector<128x128xf32>
    %c0_21 = arith.constant 0 : index
    %c0_22 = arith.constant 0 : index
    %94 = vector.load %arg46[%c0_21, %c0_22] : memref<32x128xbf16, #tpu.memory_space<vmem>>, vector<32x128xbf16>
    %95 = arith.truncf %93 : vector<128x128xf32> to vector<128x128xbf16>
    %cst_23 = arith.constant dense<0.000000e+00> : vector<32x128xf32>
    %96 = tpu.matmul %94, %95, %cst_23 {dimension_numbers = #tpu.dot_dimension_numbers<[1], [0], [0], [1], [0, 0, 1, 1], [], []>} : vector<32x128xbf16>, vector<128x128xbf16>, vector<32x128xf32> -> vector<32x128xf32>
    %97 = tpu.iota {dimensions = array<i32: 0>} : vector<32x1xi32>
    %c3_i32_24 = arith.constant 3 : i32
    %98 = vector.broadcast %c3_i32_24 : i32 to vector<32x1xi32>
    %99 = arith.andi %97, %98 : vector<32x1xi32>
    %c15_i32 = arith.constant 15 : i32
    %100 = vector.broadcast %c15_i32 : i32 to vector<32x1xi32>
    %101 = arith.andi %97, %100 : vector<32x1xi32>
    %c2_i32 = arith.constant 2 : i32
    %102 = vector.broadcast %c2_i32 : i32 to vector<32x1xi32>
    %103 = arith.shrsi %101, %102 : vector<32x1xi32>
    %c5_i32 = arith.constant 5 : i32
    %104 = tpu.dynamic_rotate %96 by %c5_i32 dim 0 : vector<32x128xf32>, i32 -> vector<32x128xf32>
    %c1_i32_25 = arith.constant 1 : i32
    %105 = vector.broadcast %c1_i32_25 : i32 to vector<32x1xi32>
    %106 = arith.cmpi sge, %103, %105 : vector<32x1xi32>
    %c1_i32_26 = arith.constant 1 : i32
    %107 = vector.broadcast %c1_i32_26 : i32 to vector<32x1xi32>
    %108 = arith.cmpi sge, %99, %107 : vector<32x1xi32>
    %109 = arith.andi %106, %108 : vector<32x1xi1>
    %110 = arith.extui %109 : vector<32x1xi1> to vector<32x1xi32>
    %111 = arith.sitofp %110 : vector<32x1xi32> to vector<32x1xf32>
    %112 = vector.broadcast %111 : vector<32x1xf32> to vector<32x128xf32>
    %113 = arith.mulf %104, %112 : vector<32x128xf32>
    %c4_i32 = arith.constant 4 : i32
    %114 = tpu.dynamic_rotate %96 by %c4_i32 dim 0 : vector<32x128xf32>, i32 -> vector<32x128xf32>
    %c1_i32_27 = arith.constant 1 : i32
    %115 = vector.broadcast %c1_i32_27 : i32 to vector<32x1xi32>
    %116 = arith.cmpi sge, %103, %115 : vector<32x1xi32>
    %117 = arith.extui %116 : vector<32x1xi1> to vector<32x1xi32>
    %118 = arith.sitofp %117 : vector<32x1xi32> to vector<32x1xf32>
    %119 = vector.broadcast %118 : vector<32x1xf32> to vector<32x128xf32>
    %120 = arith.mulf %114, %119 : vector<32x128xf32>
    %c16_i32 = arith.constant 16 : i32
    %121 = tpu.dynamic_rotate %120 by %c16_i32 dim 1 : vector<32x128xf32>, i32 -> vector<32x128xf32>
    %122 = arith.addf %113, %121 : vector<32x128xf32>
    %c3_i32_28 = arith.constant 3 : i32
    %123 = tpu.dynamic_rotate %96 by %c3_i32_28 dim 0 : vector<32x128xf32>, i32 -> vector<32x128xf32>
    %c1_i32_29 = arith.constant 1 : i32
    %124 = vector.broadcast %c1_i32_29 : i32 to vector<32x1xi32>
    %125 = arith.cmpi sge, %103, %124 : vector<32x1xi32>
    %c3_i32_30 = arith.constant 3 : i32
    %126 = vector.broadcast %c3_i32_30 : i32 to vector<32x1xi32>
    %127 = arith.cmpi slt, %99, %126 : vector<32x1xi32>
    %128 = arith.andi %125, %127 : vector<32x1xi1>
    %129 = arith.extui %128 : vector<32x1xi1> to vector<32x1xi32>
    %130 = arith.sitofp %129 : vector<32x1xi32> to vector<32x1xf32>
    %131 = vector.broadcast %130 : vector<32x1xf32> to vector<32x128xf32>
    %132 = arith.mulf %123, %131 : vector<32x128xf32>
    %c32_i32 = arith.constant 32 : i32
    %133 = tpu.dynamic_rotate %132 by %c32_i32 dim 1 : vector<32x128xf32>, i32 -> vector<32x128xf32>
    %134 = arith.addf %122, %133 : vector<32x128xf32>
    %c1_i32_31 = arith.constant 1 : i32
    %135 = tpu.dynamic_rotate %96 by %c1_i32_31 dim 0 : vector<32x128xf32>, i32 -> vector<32x128xf32>
    %c1_i32_32 = arith.constant 1 : i32
    %136 = vector.broadcast %c1_i32_32 : i32 to vector<32x1xi32>
    %137 = arith.cmpi sge, %99, %136 : vector<32x1xi32>
    %138 = arith.extui %137 : vector<32x1xi1> to vector<32x1xi32>
    %139 = arith.sitofp %138 : vector<32x1xi32> to vector<32x1xf32>
    %140 = vector.broadcast %139 : vector<32x1xf32> to vector<32x128xf32>
    %141 = arith.mulf %135, %140 : vector<32x128xf32>
    %c48_i32 = arith.constant 48 : i32
    %142 = tpu.dynamic_rotate %141 by %c48_i32 dim 1 : vector<32x128xf32>, i32 -> vector<32x128xf32>
    %143 = arith.addf %134, %142 : vector<32x128xf32>
    %c64_i32 = arith.constant 64 : i32
    %144 = tpu.dynamic_rotate %96 by %c64_i32 dim 1 : vector<32x128xf32>, i32 -> vector<32x128xf32>
    %145 = arith.addf %143, %144 : vector<32x128xf32>
    %c31_i32 = arith.constant 31 : i32
    %146 = tpu.dynamic_rotate %96 by %c31_i32 dim 0 : vector<32x128xf32>, i32 -> vector<32x128xf32>
    %c3_i32_33 = arith.constant 3 : i32
    %147 = vector.broadcast %c3_i32_33 : i32 to vector<32x1xi32>
    %148 = arith.cmpi slt, %99, %147 : vector<32x1xi32>
    %149 = arith.extui %148 : vector<32x1xi1> to vector<32x1xi32>
    %150 = arith.sitofp %149 : vector<32x1xi32> to vector<32x1xf32>
    %151 = vector.broadcast %150 : vector<32x1xf32> to vector<32x128xf32>
    %152 = arith.mulf %146, %151 : vector<32x128xf32>
    %c80_i32 = arith.constant 80 : i32
    %153 = tpu.dynamic_rotate %152 by %c80_i32 dim 1 : vector<32x128xf32>, i32 -> vector<32x128xf32>
    %154 = arith.addf %145, %153 : vector<32x128xf32>
    %c29_i32 = arith.constant 29 : i32
    %155 = tpu.dynamic_rotate %96 by %c29_i32 dim 0 : vector<32x128xf32>, i32 -> vector<32x128xf32>
    %c3_i32_34 = arith.constant 3 : i32
    %156 = vector.broadcast %c3_i32_34 : i32 to vector<32x1xi32>
    %157 = arith.cmpi slt, %103, %156 : vector<32x1xi32>
    %c1_i32_35 = arith.constant 1 : i32
    %158 = vector.broadcast %c1_i32_35 : i32 to vector<32x1xi32>
    %159 = arith.cmpi sge, %99, %158 : vector<32x1xi32>
    %160 = arith.andi %157, %159 : vector<32x1xi1>
    %161 = arith.extui %160 : vector<32x1xi1> to vector<32x1xi32>
    %162 = arith.sitofp %161 : vector<32x1xi32> to vector<32x1xf32>
    %163 = vector.broadcast %162 : vector<32x1xf32> to vector<32x128xf32>
    %164 = arith.mulf %155, %163 : vector<32x128xf32>
    %c96_i32 = arith.constant 96 : i32
    %165 = tpu.dynamic_rotate %164 by %c96_i32 dim 1 : vector<32x128xf32>, i32 -> vector<32x128xf32>
    %166 = arith.addf %154, %165 : vector<32x128xf32>
    %c28_i32 = arith.constant 28 : i32
    %167 = tpu.dynamic_rotate %96 by %c28_i32 dim 0 : vector<32x128xf32>, i32 -> vector<32x128xf32>
    %c3_i32_36 = arith.constant 3 : i32
    %168 = vector.broadcast %c3_i32_36 : i32 to vector<32x1xi32>
    %169 = arith.cmpi slt, %103, %168 : vector<32x1xi32>
    %170 = arith.extui %169 : vector<32x1xi1> to vector<32x1xi32>
    %171 = arith.sitofp %170 : vector<32x1xi32> to vector<32x1xf32>
    %172 = vector.broadcast %171 : vector<32x1xf32> to vector<32x128xf32>
    %173 = arith.mulf %167, %172 : vector<32x128xf32>
    %c112_i32 = arith.constant 112 : i32
    %174 = tpu.dynamic_rotate %173 by %c112_i32 dim 1 : vector<32x128xf32>, i32 -> vector<32x128xf32>
    %175 = arith.addf %166, %174 : vector<32x128xf32>
    %c27_i32 = arith.constant 27 : i32
    %176 = tpu.dynamic_rotate %96 by %c27_i32 dim 0 : vector<32x128xf32>, i32 -> vector<32x128xf32>
    %c3_i32_37 = arith.constant 3 : i32
    %177 = vector.broadcast %c3_i32_37 : i32 to vector<32x1xi32>
    %178 = arith.cmpi slt, %103, %177 : vector<32x1xi32>
    %c3_i32_38 = arith.constant 3 : i32
    %179 = vector.broadcast %c3_i32_38 : i32 to vector<32x1xi32>
    %180 = arith.cmpi slt, %99, %179 : vector<32x1xi32>
    %181 = arith.andi %178, %180 : vector<32x1xi1>
    %182 = arith.extui %181 : vector<32x1xi1> to vector<32x1xi32>
    %183 = arith.sitofp %182 : vector<32x1xi32> to vector<32x1xf32>
    %184 = vector.broadcast %183 : vector<32x1xf32> to vector<32x128xf32>
    %185 = arith.mulf %176, %184 : vector<32x128xf32>
    %186 = arith.truncf %175 : vector<32x128xf32> to vector<32x128xbf16>
    %187 = arith.truncf %185 : vector<32x128xf32> to vector<32x128xbf16>
    %188 = tpu.concatenate %186, %187 in 1 : vector<32x128xbf16>, vector<32x128xbf16> -> vector<32x256xbf16>
    %c0_39 = arith.constant 0 : index
    %c0_40 = arith.constant 0 : index
    %189 = vector.load %arg2[%c0_39, %c0_40] : memref<256x128xbf16, #tpu.memory_space<vmem>>, vector<256x128xbf16>
    %cst_41 = arith.constant dense<0.000000e+00> : vector<32x128xf32>
    %190 = tpu.matmul %188, %189, %cst_41 {dimension_numbers = #tpu.dot_dimension_numbers<[1], [0], [0], [1], [0, 0, 1, 1], [], []>} : vector<32x256xbf16>, vector<256x128xbf16>, vector<32x128xf32> -> vector<32x128xf32>
    %c0_42 = arith.constant 0 : index
    %c0_43 = arith.constant 0 : index
    %191 = vector.load %arg0[%c0_42, %c0_43] : memref<1x128xf32, #tpu.memory_space<vmem>>, vector<1x128xf32>
    %192 = vector.broadcast %191 : vector<1x128xf32> to vector<32x128xf32>
    %193 = arith.mulf %190, %192 : vector<32x128xf32>
    %c0_44 = arith.constant 0 : index
    %c0_45 = arith.constant 0 : index
    %194 = vector.load %arg1[%c0_44, %c0_45] : memref<1x128xf32, #tpu.memory_space<vmem>>, vector<1x128xf32>
    %195 = vector.broadcast %194 : vector<1x128xf32> to vector<32x128xf32>
    %196 = arith.addf %193, %195 : vector<32x128xf32>
    %cst_46 = arith.constant 0.000000e+00 : f32
    %197 = vector.broadcast %cst_46 : f32 to vector<32x128xf32>
    %198 = arith.maximumf %196, %197 : vector<32x128xf32>
    %199 = tpu.iota {dimensions = array<i32: 0>} : vector<32x1xi32>
    %c3_i32_47 = arith.constant 3 : i32
    %200 = vector.broadcast %c3_i32_47 : i32 to vector<32x1xi32>
    %201 = arith.andi %199, %200 : vector<32x1xi32>
    %c15_i32_48 = arith.constant 15 : i32
    %202 = vector.broadcast %c15_i32_48 : i32 to vector<32x1xi32>
    %203 = arith.andi %199, %202 : vector<32x1xi32>
    %c2_i32_49 = arith.constant 2 : i32
    %204 = vector.broadcast %c2_i32_49 : i32 to vector<32x1xi32>
    %205 = arith.shrsi %203, %204 : vector<32x1xi32>
    %c5_i32_50 = arith.constant 5 : i32
    %206 = tpu.dynamic_rotate %198 by %c5_i32_50 dim 0 : vector<32x128xf32>, i32 -> vector<32x128xf32>
    %c1_i32_51 = arith.constant 1 : i32
    %207 = vector.broadcast %c1_i32_51 : i32 to vector<32x1xi32>
    %208 = arith.cmpi sge, %205, %207 : vector<32x1xi32>
    %c1_i32_52 = arith.constant 1 : i32
    %209 = vector.broadcast %c1_i32_52 : i32 to vector<32x1xi32>
    %210 = arith.cmpi sge, %201, %209 : vector<32x1xi32>
    %211 = arith.andi %208, %210 : vector<32x1xi1>
    %212 = arith.extui %211 : vector<32x1xi1> to vector<32x1xi32>
    %213 = arith.sitofp %212 : vector<32x1xi32> to vector<32x1xf32>
    %214 = vector.broadcast %213 : vector<32x1xf32> to vector<32x128xf32>
    %215 = arith.mulf %206, %214 : vector<32x128xf32>
    %c4_i32_53 = arith.constant 4 : i32
    %216 = tpu.dynamic_rotate %198 by %c4_i32_53 dim 0 : vector<32x128xf32>, i32 -> vector<32x128xf32>
    %c1_i32_54 = arith.constant 1 : i32
    %217 = vector.broadcast %c1_i32_54 : i32 to vector<32x1xi32>
    %218 = arith.cmpi sge, %205, %217 : vector<32x1xi32>
    %219 = arith.extui %218 : vector<32x1xi1> to vector<32x1xi32>
    %220 = arith.sitofp %219 : vector<32x1xi32> to vector<32x1xf32>
    %221 = vector.broadcast %220 : vector<32x1xf32> to vector<32x128xf32>
    %222 = arith.mulf %216, %221 : vector<32x128xf32>
    %c16_i32_55 = arith.constant 16 : i32
    %223 = tpu.dynamic_rotate %222 by %c16_i32_55 dim 1 : vector<32x128xf32>, i32 -> vector<32x128xf32>
    %224 = arith.addf %215, %223 : vector<32x128xf32>
    %c3_i32_56 = arith.constant 3 : i32
    %225 = tpu.dynamic_rotate %198 by %c3_i32_56 dim 0 : vector<32x128xf32>, i32 -> vector<32x128xf32>
    %c1_i32_57 = arith.constant 1 : i32
    %226 = vector.broadcast %c1_i32_57 : i32 to vector<32x1xi32>
    %227 = arith.cmpi sge, %205, %226 : vector<32x1xi32>
    %c3_i32_58 = arith.constant 3 : i32
    %228 = vector.broadcast %c3_i32_58 : i32 to vector<32x1xi32>
    %229 = arith.cmpi slt, %201, %228 : vector<32x1xi32>
    %230 = arith.andi %227, %229 : vector<32x1xi1>
    %231 = arith.extui %230 : vector<32x1xi1> to vector<32x1xi32>
    %232 = arith.sitofp %231 : vector<32x1xi32> to vector<32x1xf32>
    %233 = vector.broadcast %232 : vector<32x1xf32> to vector<32x128xf32>
    %234 = arith.mulf %225, %233 : vector<32x128xf32>
    %c32_i32_59 = arith.constant 32 : i32
    %235 = tpu.dynamic_rotate %234 by %c32_i32_59 dim 1 : vector<32x128xf32>, i32 -> vector<32x128xf32>
    %236 = arith.addf %224, %235 : vector<32x128xf32>
    %c1_i32_60 = arith.constant 1 : i32
    %237 = tpu.dynamic_rotate %198 by %c1_i32_60 dim 0 : vector<32x128xf32>, i32 -> vector<32x128xf32>
    %c1_i32_61 = arith.constant 1 : i32
    %238 = vector.broadcast %c1_i32_61 : i32 to vector<32x1xi32>
    %239 = arith.cmpi sge, %201, %238 : vector<32x1xi32>
    %240 = arith.extui %239 : vector<32x1xi1> to vector<32x1xi32>
    %241 = arith.sitofp %240 : vector<32x1xi32> to vector<32x1xf32>
    %242 = vector.broadcast %241 : vector<32x1xf32> to vector<32x128xf32>
    %243 = arith.mulf %237, %242 : vector<32x128xf32>
    %c48_i32_62 = arith.constant 48 : i32
    %244 = tpu.dynamic_rotate %243 by %c48_i32_62 dim 1 : vector<32x128xf32>, i32 -> vector<32x128xf32>
    %245 = arith.addf %236, %244 : vector<32x128xf32>
    %c64_i32_63 = arith.constant 64 : i32
    %246 = tpu.dynamic_rotate %198 by %c64_i32_63 dim 1 : vector<32x128xf32>, i32 -> vector<32x128xf32>
    %247 = arith.addf %245, %246 : vector<32x128xf32>
    %c31_i32_64 = arith.constant 31 : i32
    %248 = tpu.dynamic_rotate %198 by %c31_i32_64 dim 0 : vector<32x128xf32>, i32 -> vector<32x128xf32>
    %c3_i32_65 = arith.constant 3 : i32
    %249 = vector.broadcast %c3_i32_65 : i32 to vector<32x1xi32>
    %250 = arith.cmpi slt, %201, %249 : vector<32x1xi32>
    %251 = arith.extui %250 : vector<32x1xi1> to vector<32x1xi32>
    %252 = arith.sitofp %251 : vector<32x1xi32> to vector<32x1xf32>
    %253 = vector.broadcast %252 : vector<32x1xf32> to vector<32x128xf32>
    %254 = arith.mulf %248, %253 : vector<32x128xf32>
    %c80_i32_66 = arith.constant 80 : i32
    %255 = tpu.dynamic_rotate %254 by %c80_i32_66 dim 1 : vector<32x128xf32>, i32 -> vector<32x128xf32>
    %256 = arith.addf %247, %255 : vector<32x128xf32>
    %c29_i32_67 = arith.constant 29 : i32
    %257 = tpu.dynamic_rotate %198 by %c29_i32_67 dim 0 : vector<32x128xf32>, i32 -> vector<32x128xf32>
    %c3_i32_68 = arith.constant 3 : i32
    %258 = vector.broadcast %c3_i32_68 : i32 to vector<32x1xi32>
    %259 = arith.cmpi slt, %205, %258 : vector<32x1xi32>
    %c1_i32_69 = arith.constant 1 : i32
    %260 = vector.broadcast %c1_i32_69 : i32 to vector<32x1xi32>
    %261 = arith.cmpi sge, %201, %260 : vector<32x1xi32>
    %262 = arith.andi %259, %261 : vector<32x1xi1>
    %263 = arith.extui %262 : vector<32x1xi1> to vector<32x1xi32>
    %264 = arith.sitofp %263 : vector<32x1xi32> to vector<32x1xf32>
    %265 = vector.broadcast %264 : vector<32x1xf32> to vector<32x128xf32>
    %266 = arith.mulf %257, %265 : vector<32x128xf32>
    %c96_i32_70 = arith.constant 96 : i32
    %267 = tpu.dynamic_rotate %266 by %c96_i32_70 dim 1 : vector<32x128xf32>, i32 -> vector<32x128xf32>
    %268 = arith.addf %256, %267 : vector<32x128xf32>
    %c28_i32_71 = arith.constant 28 : i32
    %269 = tpu.dynamic_rotate %198 by %c28_i32_71 dim 0 : vector<32x128xf32>, i32 -> vector<32x128xf32>
    %c3_i32_72 = arith.constant 3 : i32
    %270 = vector.broadcast %c3_i32_72 : i32 to vector<32x1xi32>
    %271 = arith.cmpi slt, %205, %270 : vector<32x1xi32>
    %272 = arith.extui %271 : vector<32x1xi1> to vector<32x1xi32>
    %273 = arith.sitofp %272 : vector<32x1xi32> to vector<32x1xf32>
    %274 = vector.broadcast %273 : vector<32x1xf32> to vector<32x128xf32>
    %275 = arith.mulf %269, %274 : vector<32x128xf32>
    %c112_i32_73 = arith.constant 112 : i32
    %276 = tpu.dynamic_rotate %275 by %c112_i32_73 dim 1 : vector<32x128xf32>, i32 -> vector<32x128xf32>
    %277 = arith.addf %268, %276 : vector<32x128xf32>
    %c27_i32_74 = arith.constant 27 : i32
    %278 = tpu.dynamic_rotate %198 by %c27_i32_74 dim 0 : vector<32x128xf32>, i32 -> vector<32x128xf32>
    %c3_i32_75 = arith.constant 3 : i32
    %279 = vector.broadcast %c3_i32_75 : i32 to vector<32x1xi32>
    %280 = arith.cmpi slt, %205, %279 : vector<32x1xi32>
    %c3_i32_76 = arith.constant 3 : i32
    %281 = vector.broadcast %c3_i32_76 : i32 to vector<32x1xi32>
    %282 = arith.cmpi slt, %201, %281 : vector<32x1xi32>
    %283 = arith.andi %280, %282 : vector<32x1xi1>
    %284 = arith.extui %283 : vector<32x1xi1> to vector<32x1xi32>
    %285 = arith.sitofp %284 : vector<32x1xi32> to vector<32x1xf32>
    %286 = vector.broadcast %285 : vector<32x1xf32> to vector<32x128xf32>
    %287 = arith.mulf %278, %286 : vector<32x128xf32>
    %288 = arith.truncf %277 : vector<32x128xf32> to vector<32x128xbf16>
    %289 = arith.truncf %287 : vector<32x128xf32> to vector<32x128xbf16>
    %290 = tpu.concatenate %288, %289 in 1 : vector<32x128xbf16>, vector<32x128xbf16> -> vector<32x256xbf16>
    %c0_77 = arith.constant 0 : index
    %c0_78 = arith.constant 0 : index
    %291 = vector.load %arg5[%c0_77, %c0_78] : memref<256x128xbf16, #tpu.memory_space<vmem>>, vector<256x128xbf16>
    %cst_79 = arith.constant dense<0.000000e+00> : vector<32x128xf32>
    %292 = tpu.matmul %290, %291, %cst_79 {dimension_numbers = #tpu.dot_dimension_numbers<[1], [0], [0], [1], [0, 0, 1, 1], [], []>} : vector<32x256xbf16>, vector<256x128xbf16>, vector<32x128xf32> -> vector<32x128xf32>
    %c0_80 = arith.constant 0 : index
    %c0_81 = arith.constant 0 : index
    %293 = vector.load %arg3[%c0_80, %c0_81] : memref<1x128xf32, #tpu.memory_space<vmem>>, vector<1x128xf32>
    %294 = vector.broadcast %293 : vector<1x128xf32> to vector<32x128xf32>
    %295 = arith.mulf %292, %294 : vector<32x128xf32>
    %c0_82 = arith.constant 0 : index
    %c0_83 = arith.constant 0 : index
    %296 = vector.load %arg4[%c0_82, %c0_83] : memref<1x128xf32, #tpu.memory_space<vmem>>, vector<1x128xf32>
    %297 = vector.broadcast %296 : vector<1x128xf32> to vector<32x128xf32>
    %298 = arith.addf %295, %297 : vector<32x128xf32>
    %299 = arith.addf %298, %96 : vector<32x128xf32>
    %cst_84 = arith.constant 0.000000e+00 : f32
    %300 = vector.broadcast %cst_84 : f32 to vector<32x128xf32>
    %301 = arith.maximumf %299, %300 : vector<32x128xf32>
    %302 = arith.truncf %301 : vector<32x128xf32> to vector<32x128xbf16>
    %c0_85 = arith.constant 0 : index
    %c0_86 = arith.constant 0 : index
    %c0_87 = arith.constant 0 : index
    %303 = vector.load %arg14[%c0_85, %c0_86, %c0_87] : memref<1x8x32xbf16, #tpu.memory_space<vmem>>, vector<1x8x32xbf16>
    %304 = vector.shape_cast %303 : vector<1x8x32xbf16> to vector<8x32xbf16>
    %cst_88 = arith.constant dense<0.000000e+00> : vector<8x128xf32>
    %305 = tpu.matmul %304, %302, %cst_88 {dimension_numbers = #tpu.dot_dimension_numbers<[1], [0], [0], [1], [0, 0, 1, 1], [], []>} : vector<8x32xbf16>, vector<32x128xbf16>, vector<8x128xf32> -> vector<8x128xf32>
    %306 = arith.truncf %305 : vector<8x128xf32> to vector<8x128xbf16>
    %c0_89 = arith.constant 0 : index
    %c0_90 = arith.constant 0 : index
    %307 = vector.load %arg16[%c0_89, %c0_90] : memref<128x128xbf16, #tpu.memory_space<vmem>>, vector<128x128xbf16>
    %cst_91 = arith.constant dense<0.000000e+00> : vector<8x128xf32>
    %308 = tpu.matmul %306, %307, %cst_91 {dimension_numbers = #tpu.dot_dimension_numbers<[1], [0], [0], [1], [0, 0, 1, 1], [], []>} : vector<8x128xbf16>, vector<128x128xbf16>, vector<8x128xf32> -> vector<8x128xf32>
    %c0_92 = arith.constant 0 : index
    %c0_93 = arith.constant 0 : index
    %309 = vector.load %arg13[%c0_92, %c0_93] : memref<1x128xf32, #tpu.memory_space<vmem>>, vector<1x128xf32>
    %310 = vector.broadcast %309 : vector<1x128xf32> to vector<8x128xf32>
    %311 = arith.mulf %308, %310 : vector<8x128xf32>
    %c0_94 = arith.constant 0 : index
    %c0_95 = arith.constant 0 : index
    %312 = vector.load %arg15[%c0_94, %c0_95] : memref<1x128xf32, #tpu.memory_space<vmem>>, vector<1x128xf32>
    %313 = vector.broadcast %312 : vector<1x128xf32> to vector<8x128xf32>
    %314 = arith.addf %311, %313 : vector<8x128xf32>
    %c0_96 = arith.constant 0 : index
    %c0_97 = arith.constant 0 : index
    %c0_98 = arith.constant 0 : index
    %315 = vector.load %arg7[%c0_96, %c0_97, %c0_98] : memref<9x8x32xbf16, #tpu.memory_space<vmem>>, vector<1x8x32xbf16>
    %316 = vector.shape_cast %315 : vector<1x8x32xbf16> to vector<8x32xbf16>
    %cst_99 = arith.constant dense<0.000000e+00> : vector<8x128xf32>
    %317 = tpu.matmul %316, %302, %cst_99 {dimension_numbers = #tpu.dot_dimension_numbers<[1], [0], [0], [1], [0, 0, 1, 1], [], []>} : vector<8x32xbf16>, vector<32x128xbf16>, vector<8x128xf32> -> vector<8x128xf32>
    %c1 = arith.constant 1 : index
    %c0_100 = arith.constant 0 : index
    %c0_101 = arith.constant 0 : index
    %318 = vector.load %arg7[%c1, %c0_100, %c0_101] : memref<9x8x32xbf16, #tpu.memory_space<vmem>>, vector<1x8x32xbf16>
    %319 = vector.shape_cast %318 : vector<1x8x32xbf16> to vector<8x32xbf16>
    %cst_102 = arith.constant dense<0.000000e+00> : vector<8x128xf32>
    %320 = tpu.matmul %319, %302, %cst_102 {dimension_numbers = #tpu.dot_dimension_numbers<[1], [0], [0], [1], [0, 0, 1, 1], [], []>} : vector<8x32xbf16>, vector<32x128xbf16>, vector<8x128xf32> -> vector<8x128xf32>
    %c16_i32_103 = arith.constant 16 : i32
    %321 = tpu.dynamic_rotate %320 by %c16_i32_103 dim 1 : vector<8x128xf32>, i32 -> vector<8x128xf32>
    %322 = arith.addf %317, %321 : vector<8x128xf32>
    %c2 = arith.constant 2 : index
    %c0_104 = arith.constant 0 : index
    %c0_105 = arith.constant 0 : index
    %323 = vector.load %arg7[%c2, %c0_104, %c0_105] : memref<9x8x32xbf16, #tpu.memory_space<vmem>>, vector<1x8x32xbf16>
    %324 = vector.shape_cast %323 : vector<1x8x32xbf16> to vector<8x32xbf16>
    %cst_106 = arith.constant dense<0.000000e+00> : vector<8x128xf32>
    %325 = tpu.matmul %324, %302, %cst_106 {dimension_numbers = #tpu.dot_dimension_numbers<[1], [0], [0], [1], [0, 0, 1, 1], [], []>} : vector<8x32xbf16>, vector<32x128xbf16>, vector<8x128xf32> -> vector<8x128xf32>
    %c32_i32_107 = arith.constant 32 : i32
    %326 = tpu.dynamic_rotate %325 by %c32_i32_107 dim 1 : vector<8x128xf32>, i32 -> vector<8x128xf32>
    %327 = arith.addf %322, %326 : vector<8x128xf32>
    %c3 = arith.constant 3 : index
    %c0_108 = arith.constant 0 : index
    %c0_109 = arith.constant 0 : index
    %328 = vector.load %arg7[%c3, %c0_108, %c0_109] : memref<9x8x32xbf16, #tpu.memory_space<vmem>>, vector<1x8x32xbf16>
    %329 = vector.shape_cast %328 : vector<1x8x32xbf16> to vector<8x32xbf16>
    %cst_110 = arith.constant dense<0.000000e+00> : vector<8x128xf32>
    %330 = tpu.matmul %329, %302, %cst_110 {dimension_numbers = #tpu.dot_dimension_numbers<[1], [0], [0], [1], [0, 0, 1, 1], [], []>} : vector<8x32xbf16>, vector<32x128xbf16>, vector<8x128xf32> -> vector<8x128xf32>
    %c48_i32_111 = arith.constant 48 : i32
    %331 = tpu.dynamic_rotate %330 by %c48_i32_111 dim 1 : vector<8x128xf32>, i32 -> vector<8x128xf32>
    %332 = arith.addf %327, %331 : vector<8x128xf32>
    %c4 = arith.constant 4 : index
    %c0_112 = arith.constant 0 : index
    %c0_113 = arith.constant 0 : index
    %333 = vector.load %arg7[%c4, %c0_112, %c0_113] : memref<9x8x32xbf16, #tpu.memory_space<vmem>>, vector<1x8x32xbf16>
    %334 = vector.shape_cast %333 : vector<1x8x32xbf16> to vector<8x32xbf16>
    %cst_114 = arith.constant dense<0.000000e+00> : vector<8x128xf32>
    %335 = tpu.matmul %334, %302, %cst_114 {dimension_numbers = #tpu.dot_dimension_numbers<[1], [0], [0], [1], [0, 0, 1, 1], [], []>} : vector<8x32xbf16>, vector<32x128xbf16>, vector<8x128xf32> -> vector<8x128xf32>
    %c64_i32_115 = arith.constant 64 : i32
    %336 = tpu.dynamic_rotate %335 by %c64_i32_115 dim 1 : vector<8x128xf32>, i32 -> vector<8x128xf32>
    %337 = arith.addf %332, %336 : vector<8x128xf32>
    %c5 = arith.constant 5 : index
    %c0_116 = arith.constant 0 : index
    %c0_117 = arith.constant 0 : index
    %338 = vector.load %arg7[%c5, %c0_116, %c0_117] : memref<9x8x32xbf16, #tpu.memory_space<vmem>>, vector<1x8x32xbf16>
    %339 = vector.shape_cast %338 : vector<1x8x32xbf16> to vector<8x32xbf16>
    %cst_118 = arith.constant dense<0.000000e+00> : vector<8x128xf32>
    %340 = tpu.matmul %339, %302, %cst_118 {dimension_numbers = #tpu.dot_dimension_numbers<[1], [0], [0], [1], [0, 0, 1, 1], [], []>} : vector<8x32xbf16>, vector<32x128xbf16>, vector<8x128xf32> -> vector<8x128xf32>
    %c80_i32_119 = arith.constant 80 : i32
    %341 = tpu.dynamic_rotate %340 by %c80_i32_119 dim 1 : vector<8x128xf32>, i32 -> vector<8x128xf32>
    %342 = arith.addf %337, %341 : vector<8x128xf32>
    %c6 = arith.constant 6 : index
    %c0_120 = arith.constant 0 : index
    %c0_121 = arith.constant 0 : index
    %343 = vector.load %arg7[%c6, %c0_120, %c0_121] : memref<9x8x32xbf16, #tpu.memory_space<vmem>>, vector<1x8x32xbf16>
    %344 = vector.shape_cast %343 : vector<1x8x32xbf16> to vector<8x32xbf16>
    %cst_122 = arith.constant dense<0.000000e+00> : vector<8x128xf32>
    %345 = tpu.matmul %344, %302, %cst_122 {dimension_numbers = #tpu.dot_dimension_numbers<[1], [0], [0], [1], [0, 0, 1, 1], [], []>} : vector<8x32xbf16>, vector<32x128xbf16>, vector<8x128xf32> -> vector<8x128xf32>
    %c96_i32_123 = arith.constant 96 : i32
    %346 = tpu.dynamic_rotate %345 by %c96_i32_123 dim 1 : vector<8x128xf32>, i32 -> vector<8x128xf32>
    %347 = arith.addf %342, %346 : vector<8x128xf32>
    %c7 = arith.constant 7 : index
    %c0_124 = arith.constant 0 : index
    %c0_125 = arith.constant 0 : index
    %348 = vector.load %arg7[%c7, %c0_124, %c0_125] : memref<9x8x32xbf16, #tpu.memory_space<vmem>>, vector<1x8x32xbf16>
    %349 = vector.shape_cast %348 : vector<1x8x32xbf16> to vector<8x32xbf16>
    %cst_126 = arith.constant dense<0.000000e+00> : vector<8x128xf32>
    %350 = tpu.matmul %349, %302, %cst_126 {dimension_numbers = #tpu.dot_dimension_numbers<[1], [0], [0], [1], [0, 0, 1, 1], [], []>} : vector<8x32xbf16>, vector<32x128xbf16>, vector<8x128xf32> -> vector<8x128xf32>
    %c112_i32_127 = arith.constant 112 : i32
    %351 = tpu.dynamic_rotate %350 by %c112_i32_127 dim 1 : vector<8x128xf32>, i32 -> vector<8x128xf32>
    %352 = arith.addf %347, %351 : vector<8x128xf32>
    %c8 = arith.constant 8 : index
    %c0_128 = arith.constant 0 : index
    %c0_129 = arith.constant 0 : index
    %353 = vector.load %arg7[%c8, %c0_128, %c0_129] : memref<9x8x32xbf16, #tpu.memory_space<vmem>>, vector<1x8x32xbf16>
    %354 = vector.shape_cast %353 : vector<1x8x32xbf16> to vector<8x32xbf16>
    %cst_130 = arith.constant dense<0.000000e+00> : vector<8x128xf32>
    %355 = tpu.matmul %354, %302, %cst_130 {dimension_numbers = #tpu.dot_dimension_numbers<[1], [0], [0], [1], [0, 0, 1, 1], [], []>} : vector<8x32xbf16>, vector<32x128xbf16>, vector<8x128xf32> -> vector<8x128xf32>
    %356 = arith.truncf %352 : vector<8x128xf32> to vector<8x128xbf16>
    %357 = arith.truncf %355 : vector<8x128xf32> to vector<8x128xbf16>
    %358 = tpu.concatenate %356, %357 in 1 : vector<8x128xbf16>, vector<8x128xbf16> -> vector<8x256xbf16>
    %c0_131 = arith.constant 0 : index
    %c0_132 = arith.constant 0 : index
    %359 = vector.load %arg9[%c0_131, %c0_132] : memref<256x128xbf16, #tpu.memory_space<vmem>>, vector<256x128xbf16>
    %cst_133 = arith.constant dense<0.000000e+00> : vector<8x128xf32>
    %360 = tpu.matmul %358, %359, %cst_133 {dimension_numbers = #tpu.dot_dimension_numbers<[1], [0], [0], [1], [0, 0, 1, 1], [], []>} : vector<8x256xbf16>, vector<256x128xbf16>, vector<8x128xf32> -> vector<8x128xf32>
    %c0_134 = arith.constant 0 : index
    %c0_135 = arith.constant 0 : index
    %361 = vector.load %arg6[%c0_134, %c0_135] : memref<1x128xf32, #tpu.memory_space<vmem>>, vector<1x128xf32>
    %362 = vector.broadcast %361 : vector<1x128xf32> to vector<8x128xf32>
    %363 = arith.mulf %360, %362 : vector<8x128xf32>
    %c0_136 = arith.constant 0 : index
    %c0_137 = arith.constant 0 : index
    %364 = vector.load %arg8[%c0_136, %c0_137] : memref<1x128xf32, #tpu.memory_space<vmem>>, vector<1x128xf32>
    %365 = vector.broadcast %364 : vector<1x128xf32> to vector<8x128xf32>
    %366 = arith.addf %363, %365 : vector<8x128xf32>
    %cst_138 = arith.constant 0.000000e+00 : f32
    %367 = vector.broadcast %cst_138 : f32 to vector<8x128xf32>
    %368 = arith.maximumf %366, %367 : vector<8x128xf32>
    %369 = tpu.iota {dimensions = array<i32: 0>} : vector<8x1xi32>
    %c1_i32_139 = arith.constant 1 : i32
    %370 = vector.broadcast %c1_i32_139 : i32 to vector<8x1xi32>
    %371 = arith.andi %369, %370 : vector<8x1xi32>
    %c3_i32_140 = arith.constant 3 : i32
    %372 = vector.broadcast %c3_i32_140 : i32 to vector<8x1xi32>
    %373 = arith.andi %369, %372 : vector<8x1xi32>
    %c1_i32_141 = arith.constant 1 : i32
    %374 = vector.broadcast %c1_i32_141 : i32 to vector<8x1xi32>
    %375 = arith.shrsi %373, %374 : vector<8x1xi32>
    %c3_i32_142 = arith.constant 3 : i32
    %376 = tpu.dynamic_rotate %368 by %c3_i32_142 dim 0 : vector<8x128xf32>, i32 -> vector<8x128xf32>
    %c1_i32_143 = arith.constant 1 : i32
    %377 = vector.broadcast %c1_i32_143 : i32 to vector<8x1xi32>
    %378 = arith.cmpi sge, %375, %377 : vector<8x1xi32>
    %c1_i32_144 = arith.constant 1 : i32
    %379 = vector.broadcast %c1_i32_144 : i32 to vector<8x1xi32>
    %380 = arith.cmpi sge, %371, %379 : vector<8x1xi32>
    %381 = arith.andi %378, %380 : vector<8x1xi1>
    %382 = arith.extui %381 : vector<8x1xi1> to vector<8x1xi32>
    %383 = arith.sitofp %382 : vector<8x1xi32> to vector<8x1xf32>
    %384 = vector.broadcast %383 : vector<8x1xf32> to vector<8x128xf32>
    %385 = arith.mulf %376, %384 : vector<8x128xf32>
    %c2_i32_145 = arith.constant 2 : i32
    %386 = tpu.dynamic_rotate %368 by %c2_i32_145 dim 0 : vector<8x128xf32>, i32 -> vector<8x128xf32>
    %c1_i32_146 = arith.constant 1 : i32
    %387 = vector.broadcast %c1_i32_146 : i32 to vector<8x1xi32>
    %388 = arith.cmpi sge, %375, %387 : vector<8x1xi32>
    %389 = arith.extui %388 : vector<8x1xi1> to vector<8x1xi32>
    %390 = arith.sitofp %389 : vector<8x1xi32> to vector<8x1xf32>
    %391 = vector.broadcast %390 : vector<8x1xf32> to vector<8x128xf32>
    %392 = arith.mulf %386, %391 : vector<8x128xf32>
    %c32_i32_147 = arith.constant 32 : i32
    %393 = tpu.dynamic_rotate %392 by %c32_i32_147 dim 1 : vector<8x128xf32>, i32 -> vector<8x128xf32>
    %394 = arith.addf %385, %393 : vector<8x128xf32>
    %c1_i32_148 = arith.constant 1 : i32
    %395 = tpu.dynamic_rotate %368 by %c1_i32_148 dim 0 : vector<8x128xf32>, i32 -> vector<8x128xf32>
    %c1_i32_149 = arith.constant 1 : i32
    %396 = vector.broadcast %c1_i32_149 : i32 to vector<8x1xi32>
    %397 = arith.cmpi sge, %375, %396 : vector<8x1xi32>
    %c1_i32_150 = arith.constant 1 : i32
    %398 = vector.broadcast %c1_i32_150 : i32 to vector<8x1xi32>
    %399 = arith.cmpi slt, %371, %398 : vector<8x1xi32>
    %400 = arith.andi %397, %399 : vector<8x1xi1>
    %401 = arith.extui %400 : vector<8x1xi1> to vector<8x1xi32>
    %402 = arith.sitofp %401 : vector<8x1xi32> to vector<8x1xf32>
    %403 = vector.broadcast %402 : vector<8x1xf32> to vector<8x128xf32>
    %404 = arith.mulf %395, %403 : vector<8x128xf32>
    %c64_i32_151 = arith.constant 64 : i32
    %405 = tpu.dynamic_rotate %404 by %c64_i32_151 dim 1 : vector<8x128xf32>, i32 -> vector<8x128xf32>
    %406 = arith.addf %394, %405 : vector<8x128xf32>
    %c1_i32_152 = arith.constant 1 : i32
    %407 = tpu.dynamic_rotate %368 by %c1_i32_152 dim 0 : vector<8x128xf32>, i32 -> vector<8x128xf32>
    %c1_i32_153 = arith.constant 1 : i32
    %408 = vector.broadcast %c1_i32_153 : i32 to vector<8x1xi32>
    %409 = arith.cmpi sge, %371, %408 : vector<8x1xi32>
    %410 = arith.extui %409 : vector<8x1xi1> to vector<8x1xi32>
    %411 = arith.sitofp %410 : vector<8x1xi32> to vector<8x1xf32>
    %412 = vector.broadcast %411 : vector<8x1xf32> to vector<8x128xf32>
    %413 = arith.mulf %407, %412 : vector<8x128xf32>
    %c96_i32_154 = arith.constant 96 : i32
    %414 = tpu.dynamic_rotate %413 by %c96_i32_154 dim 1 : vector<8x128xf32>, i32 -> vector<8x128xf32>
    %415 = arith.addf %406, %414 : vector<8x128xf32>
    %c7_i32_155 = arith.constant 7 : i32
    %416 = tpu.dynamic_rotate %368 by %c7_i32_155 dim 0 : vector<8x128xf32>, i32 -> vector<8x128xf32>
    %c1_i32_156 = arith.constant 1 : i32
    %417 = vector.broadcast %c1_i32_156 : i32 to vector<8x1xi32>
    %418 = arith.cmpi slt, %371, %417 : vector<8x1xi32>
    %419 = arith.extui %418 : vector<8x1xi1> to vector<8x1xi32>
    %420 = arith.sitofp %419 : vector<8x1xi32> to vector<8x1xf32>
    %421 = vector.broadcast %420 : vector<8x1xf32> to vector<8x128xf32>
    %422 = arith.mulf %416, %421 : vector<8x128xf32>
    %c32_i32_157 = arith.constant 32 : i32
    %423 = tpu.dynamic_rotate %422 by %c32_i32_157 dim 1 : vector<8x128xf32>, i32 -> vector<8x128xf32>
    %424 = arith.addf %368, %423 : vector<8x128xf32>
    %c7_i32_158 = arith.constant 7 : i32
    %425 = tpu.dynamic_rotate %368 by %c7_i32_158 dim 0 : vector<8x128xf32>, i32 -> vector<8x128xf32>
    %c1_i32_159 = arith.constant 1 : i32
    %426 = vector.broadcast %c1_i32_159 : i32 to vector<8x1xi32>
    %427 = arith.cmpi slt, %375, %426 : vector<8x1xi32>
    %c1_i32_160 = arith.constant 1 : i32
    %428 = vector.broadcast %c1_i32_160 : i32 to vector<8x1xi32>
    %429 = arith.cmpi sge, %371, %428 : vector<8x1xi32>
    %430 = arith.andi %427, %429 : vector<8x1xi1>
    %431 = arith.extui %430 : vector<8x1xi1> to vector<8x1xi32>
    %432 = arith.sitofp %431 : vector<8x1xi32> to vector<8x1xf32>
    %433 = vector.broadcast %432 : vector<8x1xf32> to vector<8x128xf32>
    %434 = arith.mulf %425, %433 : vector<8x128xf32>
    %c64_i32_161 = arith.constant 64 : i32
    %435 = tpu.dynamic_rotate %434 by %c64_i32_161 dim 1 : vector<8x128xf32>, i32 -> vector<8x128xf32>
    %436 = arith.addf %424, %435 : vector<8x128xf32>
    %c6_i32 = arith.constant 6 : i32
    %437 = tpu.dynamic_rotate %368 by %c6_i32 dim 0 : vector<8x128xf32>, i32 -> vector<8x128xf32>
    %c1_i32_162 = arith.constant 1 : i32
    %438 = vector.broadcast %c1_i32_162 : i32 to vector<8x1xi32>
    %439 = arith.cmpi slt, %375, %438 : vector<8x1xi32>
    %440 = arith.extui %439 : vector<8x1xi1> to vector<8x1xi32>
    %441 = arith.sitofp %440 : vector<8x1xi32> to vector<8x1xf32>
    %442 = vector.broadcast %441 : vector<8x1xf32> to vector<8x128xf32>
    %443 = arith.mulf %437, %442 : vector<8x128xf32>
    %c96_i32_163 = arith.constant 96 : i32
    %444 = tpu.dynamic_rotate %443 by %c96_i32_163 dim 1 : vector<8x128xf32>, i32 -> vector<8x128xf32>
    %445 = arith.addf %436, %444 : vector<8x128xf32>
    %c5_i32_164 = arith.constant 5 : i32
    %446 = tpu.dynamic_rotate %368 by %c5_i32_164 dim 0 : vector<8x128xf32>, i32 -> vector<8x128xf32>
    %c1_i32_165 = arith.constant 1 : i32
    %447 = vector.broadcast %c1_i32_165 : i32 to vector<8x1xi32>
    %448 = arith.cmpi slt, %375, %447 : vector<8x1xi32>
    %c1_i32_166 = arith.constant 1 : i32
    %449 = vector.broadcast %c1_i32_166 : i32 to vector<8x1xi32>
    %450 = arith.cmpi slt, %371, %449 : vector<8x1xi32>
    %451 = arith.andi %448, %450 : vector<8x1xi1>
    %452 = arith.extui %451 : vector<8x1xi1> to vector<8x1xi32>
    %453 = arith.sitofp %452 : vector<8x1xi32> to vector<8x1xf32>
    %454 = vector.broadcast %453 : vector<8x1xf32> to vector<8x128xf32>
    %455 = arith.mulf %446, %454 : vector<8x128xf32>
    %456 = arith.truncf %415 : vector<8x128xf32> to vector<8x128xbf16>
    %457 = arith.truncf %445 : vector<8x128xf32> to vector<8x128xbf16>
    %458 = arith.truncf %455 : vector<8x128xf32> to vector<8x128xbf16>
    %459 = tpu.concatenate %456, %457, %458 in 1 : vector<8x128xbf16>, vector<8x128xbf16>, vector<8x128xbf16> -> vector<8x384xbf16>
    %c0_167 = arith.constant 0 : index
    %c0_168 = arith.constant 0 : index
    %460 = vector.load %arg12[%c0_167, %c0_168] : memref<384x128xbf16, #tpu.memory_space<vmem>>, vector<384x128xbf16>
    %cst_169 = arith.constant dense<0.000000e+00> : vector<8x128xf32>
    %461 = tpu.matmul %459, %460, %cst_169 {dimension_numbers = #tpu.dot_dimension_numbers<[1], [0], [0], [1], [0, 0, 1, 1], [], []>} : vector<8x384xbf16>, vector<384x128xbf16>, vector<8x128xf32> -> vector<8x128xf32>
    %c0_170 = arith.constant 0 : index
    %c0_171 = arith.constant 0 : index
    %462 = vector.load %arg10[%c0_170, %c0_171] : memref<1x128xf32, #tpu.memory_space<vmem>>, vector<1x128xf32>
    %463 = vector.broadcast %462 : vector<1x128xf32> to vector<8x128xf32>
    %464 = arith.mulf %461, %463 : vector<8x128xf32>
    %c0_172 = arith.constant 0 : index
    %c0_173 = arith.constant 0 : index
    %465 = vector.load %arg11[%c0_172, %c0_173] : memref<1x128xf32, #tpu.memory_space<vmem>>, vector<1x128xf32>
    %466 = vector.broadcast %465 : vector<1x128xf32> to vector<8x128xf32>
    %467 = arith.addf %464, %466 : vector<8x128xf32>
    %468 = arith.addf %467, %314 : vector<8x128xf32>
    %cst_174 = arith.constant 0.000000e+00 : f32
    %469 = vector.broadcast %cst_174 : f32 to vector<8x128xf32>
    %470 = arith.maximumf %468, %469 : vector<8x128xf32>
    %471 = arith.truncf %470 : vector<8x128xf32> to vector<8x128xbf16>
    %c0_175 = arith.constant 0 : index
    %c0_176 = arith.constant 0 : index
    %c0_177 = arith.constant 0 : index
    %472 = vector.load %arg25[%c0_175, %c0_176, %c0_177] : memref<1x8x8xbf16, #tpu.memory_space<vmem>>, vector<1x8x8xbf16>
    %473 = vector.shape_cast %472 : vector<1x8x8xbf16> to vector<8x8xbf16>
    %cst_178 = arith.constant dense<0.000000e+00> : vector<8x128xf32>
    %474 = tpu.matmul %473, %471, %cst_178 {dimension_numbers = #tpu.dot_dimension_numbers<[1], [0], [0], [1], [0, 0, 1, 1], [], []>} : vector<8x8xbf16>, vector<8x128xbf16>, vector<8x128xf32> -> vector<8x128xf32>
    %475 = arith.truncf %474 : vector<8x128xf32> to vector<8x128xbf16>
    %c0_179 = arith.constant 0 : index
    %c0_180 = arith.constant 0 : index
    %476 = vector.load %arg27[%c0_179, %c0_180] : memref<128x128xbf16, #tpu.memory_space<vmem>>, vector<128x128xbf16>
    %cst_181 = arith.constant dense<0.000000e+00> : vector<8x128xf32>
    %477 = tpu.matmul %475, %476, %cst_181 {dimension_numbers = #tpu.dot_dimension_numbers<[1], [0], [0], [1], [0, 0, 1, 1], [], []>} : vector<8x128xbf16>, vector<128x128xbf16>, vector<8x128xf32> -> vector<8x128xf32>
    %c0_182 = arith.constant 0 : index
    %c0_183 = arith.constant 0 : index
    %478 = vector.load %arg24[%c0_182, %c0_183] : memref<1x128xf32, #tpu.memory_space<vmem>>, vector<1x128xf32>
    %479 = vector.broadcast %478 : vector<1x128xf32> to vector<8x128xf32>
    %480 = arith.mulf %477, %479 : vector<8x128xf32>
    %c0_184 = arith.constant 0 : index
    %c0_185 = arith.constant 0 : index
    %481 = vector.load %arg26[%c0_184, %c0_185] : memref<1x128xf32, #tpu.memory_space<vmem>>, vector<1x128xf32>
    %482 = vector.broadcast %481 : vector<1x128xf32> to vector<8x128xf32>
    %483 = arith.addf %480, %482 : vector<8x128xf32>
    %c0_186 = arith.constant 0 : index
    %c0_187 = arith.constant 0 : index
    %c0_188 = arith.constant 0 : index
    %484 = vector.load %arg18[%c0_186, %c0_187, %c0_188] : memref<4x8x8xbf16, #tpu.memory_space<vmem>>, vector<1x8x8xbf16>
    %485 = vector.shape_cast %484 : vector<1x8x8xbf16> to vector<8x8xbf16>
    %cst_189 = arith.constant dense<0.000000e+00> : vector<8x128xf32>
    %486 = tpu.matmul %485, %471, %cst_189 {dimension_numbers = #tpu.dot_dimension_numbers<[1], [0], [0], [1], [0, 0, 1, 1], [], []>} : vector<8x8xbf16>, vector<8x128xbf16>, vector<8x128xf32> -> vector<8x128xf32>
    %c1_190 = arith.constant 1 : index
    %c0_191 = arith.constant 0 : index
    %c0_192 = arith.constant 0 : index
    %487 = vector.load %arg18[%c1_190, %c0_191, %c0_192] : memref<4x8x8xbf16, #tpu.memory_space<vmem>>, vector<1x8x8xbf16>
    %488 = vector.shape_cast %487 : vector<1x8x8xbf16> to vector<8x8xbf16>
    %cst_193 = arith.constant dense<0.000000e+00> : vector<8x128xf32>
    %489 = tpu.matmul %488, %471, %cst_193 {dimension_numbers = #tpu.dot_dimension_numbers<[1], [0], [0], [1], [0, 0, 1, 1], [], []>} : vector<8x8xbf16>, vector<8x128xbf16>, vector<8x128xf32> -> vector<8x128xf32>
    %c32_i32_194 = arith.constant 32 : i32
    %490 = tpu.dynamic_rotate %489 by %c32_i32_194 dim 1 : vector<8x128xf32>, i32 -> vector<8x128xf32>
    %491 = arith.addf %486, %490 : vector<8x128xf32>
    %c2_195 = arith.constant 2 : index
    %c0_196 = arith.constant 0 : index
    %c0_197 = arith.constant 0 : index
    %492 = vector.load %arg18[%c2_195, %c0_196, %c0_197] : memref<4x8x8xbf16, #tpu.memory_space<vmem>>, vector<1x8x8xbf16>
    %493 = vector.shape_cast %492 : vector<1x8x8xbf16> to vector<8x8xbf16>
    %cst_198 = arith.constant dense<0.000000e+00> : vector<8x128xf32>
    %494 = tpu.matmul %493, %471, %cst_198 {dimension_numbers = #tpu.dot_dimension_numbers<[1], [0], [0], [1], [0, 0, 1, 1], [], []>} : vector<8x8xbf16>, vector<8x128xbf16>, vector<8x128xf32> -> vector<8x128xf32>
    %c64_i32_199 = arith.constant 64 : i32
    %495 = tpu.dynamic_rotate %494 by %c64_i32_199 dim 1 : vector<8x128xf32>, i32 -> vector<8x128xf32>
    %496 = arith.addf %491, %495 : vector<8x128xf32>
    %c3_200 = arith.constant 3 : index
    %c0_201 = arith.constant 0 : index
    %c0_202 = arith.constant 0 : index
    %497 = vector.load %arg18[%c3_200, %c0_201, %c0_202] : memref<4x8x8xbf16, #tpu.memory_space<vmem>>, vector<1x8x8xbf16>
    %498 = vector.shape_cast %497 : vector<1x8x8xbf16> to vector<8x8xbf16>
    %cst_203 = arith.constant dense<0.000000e+00> : vector<8x128xf32>
    %499 = tpu.matmul %498, %471, %cst_203 {dimension_numbers = #tpu.dot_dimension_numbers<[1], [0], [0], [1], [0, 0, 1, 1], [], []>} : vector<8x8xbf16>, vector<8x128xbf16>, vector<8x128xf32> -> vector<8x128xf32>
    %c96_i32_204 = arith.constant 96 : i32
    %500 = tpu.dynamic_rotate %499 by %c96_i32_204 dim 1 : vector<8x128xf32>, i32 -> vector<8x128xf32>
    %501 = arith.addf %496, %500 : vector<8x128xf32>
    %502 = arith.truncf %501 : vector<8x128xf32> to vector<8x128xbf16>
    %c0_205 = arith.constant 0 : index
    %c0_206 = arith.constant 0 : index
    %503 = vector.load %arg20[%c0_205, %c0_206] : memref<128x128xbf16, #tpu.memory_space<vmem>>, vector<128x128xbf16>
    %cst_207 = arith.constant dense<0.000000e+00> : vector<8x128xf32>
    %504 = tpu.matmul %502, %503, %cst_207 {dimension_numbers = #tpu.dot_dimension_numbers<[1], [0], [0], [1], [0, 0, 1, 1], [], []>} : vector<8x128xbf16>, vector<128x128xbf16>, vector<8x128xf32> -> vector<8x128xf32>
    %c0_208 = arith.constant 0 : index
    %c0_209 = arith.constant 0 : index
    %505 = vector.load %arg17[%c0_208, %c0_209] : memref<1x128xf32, #tpu.memory_space<vmem>>, vector<1x128xf32>
    %506 = vector.broadcast %505 : vector<1x128xf32> to vector<8x128xf32>
    %507 = arith.mulf %504, %506 : vector<8x128xf32>
    %c0_210 = arith.constant 0 : index
    %c0_211 = arith.constant 0 : index
    %508 = vector.load %arg19[%c0_210, %c0_211] : memref<1x128xf32, #tpu.memory_space<vmem>>, vector<1x128xf32>
    %509 = vector.broadcast %508 : vector<1x128xf32> to vector<8x128xf32>
    %510 = arith.addf %507, %509 : vector<8x128xf32>
    %cst_212 = arith.constant 0.000000e+00 : f32
    %511 = vector.broadcast %cst_212 : f32 to vector<8x128xf32>
    %512 = arith.maximumf %510, %511 : vector<8x128xf32>
    %513 = tpu.iota {dimensions = array<i32: 0>} : vector<8x1xi32>
    %c2_i32_213 = arith.constant 2 : i32
    %514 = vector.broadcast %c2_i32_213 : i32 to vector<8x1xi32>
    %515 = arith.cmpi slt, %513, %514 : vector<8x1xi32>
    %516 = arith.extui %515 : vector<8x1xi1> to vector<8x1xi32>
    %517 = arith.sitofp %516 : vector<8x1xi32> to vector<8x1xf32>
    %518 = vector.broadcast %517 : vector<8x1xf32> to vector<8x128xf32>
    %519 = arith.mulf %512, %518 : vector<8x128xf32>
    %520 = arith.truncf %519 : vector<8x128xf32> to vector<8x128xbf16>
    %c0_214 = arith.constant 0 : index
    %c0_215 = arith.constant 0 : index
    %521 = vector.load %arg23[%c0_214, %c0_215] : memref<128x128xbf16, #tpu.memory_space<vmem>>, vector<128x128xbf16>
    %cst_216 = arith.constant dense<0.000000e+00> : vector<8x128xf32>
    %522 = tpu.matmul %520, %521, %cst_216 {dimension_numbers = #tpu.dot_dimension_numbers<[1], [0], [0], [1], [0, 0, 1, 1], [], []>} : vector<8x128xbf16>, vector<128x128xbf16>, vector<8x128xf32> -> vector<8x128xf32>
    %c0_217 = arith.constant 0 : index
    %c0_218 = arith.constant 0 : index
    %523 = vector.load %arg21[%c0_217, %c0_218] : memref<1x128xf32, #tpu.memory_space<vmem>>, vector<1x128xf32>
    %524 = vector.broadcast %523 : vector<1x128xf32> to vector<8x128xf32>
    %525 = arith.mulf %522, %524 : vector<8x128xf32>
    %c0_219 = arith.constant 0 : index
    %c0_220 = arith.constant 0 : index
    %526 = vector.load %arg22[%c0_219, %c0_220] : memref<1x128xf32, #tpu.memory_space<vmem>>, vector<1x128xf32>
    %527 = vector.broadcast %526 : vector<1x128xf32> to vector<8x128xf32>
    %528 = arith.addf %525, %527 : vector<8x128xf32>
    %529 = arith.addf %528, %483 : vector<8x128xf32>
    %cst_221 = arith.constant 0.000000e+00 : f32
    %530 = vector.broadcast %cst_221 : f32 to vector<8x128xf32>
    %531 = arith.maximumf %529, %530 : vector<8x128xf32>
    %532 = arith.truncf %531 : vector<8x128xf32> to vector<8x128xbf16>
    %c0_222 = arith.constant 0 : index
    %c0_223 = arith.constant 0 : index
    %c0_224 = arith.constant 0 : index
    %533 = vector.load %arg36[%c0_222, %c0_223, %c0_224] : memref<1x8x8xbf16, #tpu.memory_space<vmem>>, vector<1x8x8xbf16>
    %534 = vector.shape_cast %533 : vector<1x8x8xbf16> to vector<8x8xbf16>
    %cst_225 = arith.constant dense<0.000000e+00> : vector<8x128xf32>
    %535 = tpu.matmul %534, %532, %cst_225 {dimension_numbers = #tpu.dot_dimension_numbers<[1], [0], [0], [1], [0, 0, 1, 1], [], []>} : vector<8x8xbf16>, vector<8x128xbf16>, vector<8x128xf32> -> vector<8x128xf32>
    %536 = arith.truncf %535 : vector<8x128xf32> to vector<8x128xbf16>
    %c0_226 = arith.constant 0 : index
    %c0_227 = arith.constant 0 : index
    %537 = vector.load %arg38[%c0_226, %c0_227] : memref<128x128xbf16, #tpu.memory_space<vmem>>, vector<128x128xbf16>
    %cst_228 = arith.constant dense<0.000000e+00> : vector<8x128xf32>
    %538 = tpu.matmul %536, %537, %cst_228 {dimension_numbers = #tpu.dot_dimension_numbers<[1], [0], [0], [1], [0, 0, 1, 1], [], []>} : vector<8x128xbf16>, vector<128x128xbf16>, vector<8x128xf32> -> vector<8x128xf32>
    %c0_229 = arith.constant 0 : index
    %c0_230 = arith.constant 0 : index
    %539 = vector.load %arg35[%c0_229, %c0_230] : memref<1x128xf32, #tpu.memory_space<vmem>>, vector<1x128xf32>
    %540 = vector.broadcast %539 : vector<1x128xf32> to vector<8x128xf32>
    %541 = arith.mulf %538, %540 : vector<8x128xf32>
    %c0_231 = arith.constant 0 : index
    %c0_232 = arith.constant 0 : index
    %542 = vector.load %arg37[%c0_231, %c0_232] : memref<1x128xf32, #tpu.memory_space<vmem>>, vector<1x128xf32>
    %543 = vector.broadcast %542 : vector<1x128xf32> to vector<8x128xf32>
    %544 = arith.addf %541, %543 : vector<8x128xf32>
    %c0_233 = arith.constant 0 : index
    %c0_234 = arith.constant 0 : index
    %c0_235 = arith.constant 0 : index
    %545 = vector.load %arg29[%c0_233, %c0_234, %c0_235] : memref<1x8x8xbf16, #tpu.memory_space<vmem>>, vector<1x8x8xbf16>
    %546 = vector.shape_cast %545 : vector<1x8x8xbf16> to vector<8x8xbf16>
    %cst_236 = arith.constant dense<0.000000e+00> : vector<8x128xf32>
    %547 = tpu.matmul %546, %532, %cst_236 {dimension_numbers = #tpu.dot_dimension_numbers<[1], [0], [0], [1], [0, 0, 1, 1], [], []>} : vector<8x8xbf16>, vector<8x128xbf16>, vector<8x128xf32> -> vector<8x128xf32>
    %548 = arith.truncf %547 : vector<8x128xf32> to vector<8x128xbf16>
    %c0_237 = arith.constant 0 : index
    %c0_238 = arith.constant 0 : index
    %549 = vector.load %arg31[%c0_237, %c0_238] : memref<128x128xbf16, #tpu.memory_space<vmem>>, vector<128x128xbf16>
    %cst_239 = arith.constant dense<0.000000e+00> : vector<8x128xf32>
    %550 = tpu.matmul %548, %549, %cst_239 {dimension_numbers = #tpu.dot_dimension_numbers<[1], [0], [0], [1], [0, 0, 1, 1], [], []>} : vector<8x128xbf16>, vector<128x128xbf16>, vector<8x128xf32> -> vector<8x128xf32>
    %c0_240 = arith.constant 0 : index
    %c0_241 = arith.constant 0 : index
    %551 = vector.load %arg28[%c0_240, %c0_241] : memref<1x128xf32, #tpu.memory_space<vmem>>, vector<1x128xf32>
    %552 = vector.broadcast %551 : vector<1x128xf32> to vector<8x128xf32>
    %553 = arith.mulf %550, %552 : vector<8x128xf32>
    %c0_242 = arith.constant 0 : index
    %c0_243 = arith.constant 0 : index
    %554 = vector.load %arg30[%c0_242, %c0_243] : memref<1x128xf32, #tpu.memory_space<vmem>>, vector<1x128xf32>
    %555 = vector.broadcast %554 : vector<1x128xf32> to vector<8x128xf32>
    %556 = arith.addf %553, %555 : vector<8x128xf32>
    %cst_244 = arith.constant 0.000000e+00 : f32
    %557 = vector.broadcast %cst_244 : f32 to vector<8x128xf32>
    %558 = arith.maximumf %556, %557 : vector<8x128xf32>
    %559 = tpu.iota {dimensions = array<i32: 0>} : vector<8x1xi32>
    %c2_i32_245 = arith.constant 2 : i32
    %560 = vector.broadcast %c2_i32_245 : i32 to vector<8x1xi32>
    %561 = arith.cmpi slt, %559, %560 : vector<8x1xi32>
    %562 = arith.extui %561 : vector<8x1xi1> to vector<8x1xi32>
    %563 = arith.sitofp %562 : vector<8x1xi32> to vector<8x1xf32>
    %564 = vector.broadcast %563 : vector<8x1xf32> to vector<8x128xf32>
    %565 = arith.mulf %558, %564 : vector<8x128xf32>
    %566 = arith.truncf %565 : vector<8x128xf32> to vector<8x128xbf16>
    %c0_246 = arith.constant 0 : index
    %c0_247 = arith.constant 0 : index
    %567 = vector.load %arg34[%c0_246, %c0_247] : memref<128x128xbf16, #tpu.memory_space<vmem>>, vector<128x128xbf16>
    %cst_248 = arith.constant dense<0.000000e+00> : vector<8x128xf32>
    %568 = tpu.matmul %566, %567, %cst_248 {dimension_numbers = #tpu.dot_dimension_numbers<[1], [0], [0], [1], [0, 0, 1, 1], [], []>} : vector<8x128xbf16>, vector<128x128xbf16>, vector<8x128xf32> -> vector<8x128xf32>
    %c0_249 = arith.constant 0 : index
    %c0_250 = arith.constant 0 : index
    %569 = vector.load %arg32[%c0_249, %c0_250] : memref<1x128xf32, #tpu.memory_space<vmem>>, vector<1x128xf32>
    %570 = vector.broadcast %569 : vector<1x128xf32> to vector<8x128xf32>
    %571 = arith.mulf %568, %570 : vector<8x128xf32>
    %c0_251 = arith.constant 0 : index
    %c0_252 = arith.constant 0 : index
    %572 = vector.load %arg33[%c0_251, %c0_252] : memref<1x128xf32, #tpu.memory_space<vmem>>, vector<1x128xf32>
    %573 = vector.broadcast %572 : vector<1x128xf32> to vector<8x128xf32>
    %574 = arith.addf %571, %573 : vector<8x128xf32>
    %575 = arith.addf %574, %544 : vector<8x128xf32>
    %cst_253 = arith.constant 0.000000e+00 : f32
    %576 = vector.broadcast %cst_253 : f32 to vector<8x128xf32>
    %577 = arith.maximumf %575, %576 : vector<8x128xf32>
    %578 = arith.truncf %577 : vector<8x128xf32> to vector<8x128xbf16>
    %c0_254 = arith.constant 0 : index
    %c0_255 = arith.constant 0 : index
    %579 = vector.load %arg45[%c0_254, %c0_255] : memref<8x8xbf16, #tpu.memory_space<vmem>>, vector<8x8xbf16>
    %cst_256 = arith.constant dense<0.000000e+00> : vector<8x128xf32>
    %580 = tpu.matmul %579, %578, %cst_256 {dimension_numbers = #tpu.dot_dimension_numbers<[1], [0], [0], [1], [0, 0, 1, 1], [], []>} : vector<8x8xbf16>, vector<8x128xbf16>, vector<8x128xf32> -> vector<8x128xf32>
    %cst_257 = arith.constant 1.000000e+00 : f32
    %581 = vector.broadcast %cst_257 : f32 to vector<8x128xf32>
    %582 = arith.mulf %580, %581 : vector<8x128xf32>
    %583 = arith.truncf %582 : vector<8x128xf32> to vector<8x128xbf16>
    %c0_258 = arith.constant 0 : index
    %c0_259 = arith.constant 0 : index
    %584 = vector.load %arg43[%c0_258, %c0_259] : memref<128x128xbf16, #tpu.memory_space<vmem>>, vector<128x128xbf16>
    %cst_260 = arith.constant dense<0.000000e+00> : vector<8x128xf32>
    %585 = tpu.matmul %583, %584, %cst_260 {dimension_numbers = #tpu.dot_dimension_numbers<[1], [0], [0], [1], [0, 0, 1, 1], [], []>} : vector<8x128xbf16>, vector<128x128xbf16>, vector<8x128xf32> -> vector<8x128xf32>
    %c0_261 = arith.constant 0 : index
    %c0_262 = arith.constant 0 : index
    %586 = vector.load %arg42[%c0_261, %c0_262] : memref<1x128xf32, #tpu.memory_space<vmem>>, vector<1x128xf32>
    %587 = vector.broadcast %586 : vector<1x128xf32> to vector<8x128xf32>
    %588 = arith.addf %585, %587 : vector<8x128xf32>
    %589 = tpu.iota {dimensions = array<i32: 1>} : vector<8x128xi32>
    %c10_i32 = arith.constant 10 : i32
    %590 = vector.broadcast %c10_i32 : i32 to vector<8x128xi32>
    %591 = arith.cmpi slt, %589, %590 : vector<8x128xi32>
    %cst_263 = arith.constant -1.000000e+30 : f32
    %592 = vector.broadcast %cst_263 : f32 to vector<8x128xf32>
    %593 = arith.select %591, %588, %592 : vector<8x128xi1>, vector<8x128xf32>
    %cst_264 = arith.constant dense<0xFF800000> : vector<8xf32>
    %594 = vector.multi_reduction <maximumf>, %593, %cst_264 [1] : vector<8x128xf32> to vector<8xf32>
    %595 = vector.shape_cast %594 : vector<8xf32> to vector<8x1xf32>
    %596 = vector.broadcast %595 : vector<8x1xf32> to vector<8x128xf32>
    %597 = arith.subf %593, %596 : vector<8x128xf32>
    %598 = math.exp %597 : vector<8x128xf32>
    %cst_265 = arith.constant dense<0.000000e+00> : vector<8xf32>
    %599 = vector.multi_reduction <add>, %598, %cst_265 [1] : vector<8x128xf32> to vector<8xf32>
    %600 = vector.shape_cast %599 : vector<8xf32> to vector<8x1xf32>
    %601 = math.log %600 : vector<8x1xf32>
    %602 = vector.broadcast %601 : vector<8x1xf32> to vector<8x128xf32>
    %603 = arith.subf %597, %602 : vector<8x128xf32>
    %c0_266 = arith.constant 0 : index
    %c0_267 = arith.constant 0 : index
    %604 = vector.load %arg47[%c0_266, %c0_267] : memref<8x128xf32, #tpu.memory_space<vmem>>, vector<8x128xf32>
    tpu.vector_store %arg47[%c0_266, %c0_267], %603 {strides = array<i32>} : memref<8x128xf32, #tpu.memory_space<vmem>>, vector<8x128xf32>,
    return
  }
}

</mosaic_0001>

<llo_original>
// kernel: _lambda_.1
$region0: #{_lambda_.1}
  #allocation0 [shape = 'u32[]', space=smem, size = 0x4, offset = 0x4, fixed_abs, tag = 'smem constant byte address 0x4 - core index']
  #allocation1 [shape = 'u32[144,128]{1,0:T(1,128)}', space=vmem, size = 0x12000, scoped, tag = 'internal scratch']
  %s0 = inlined_call_operand.smem [shape: u32[48], index: -1, kind: input, shape index: {}]
  %s1 = sld [smem:[%s0]]
  %s2 = scalar_lea.smem %s0, 1
  %s3 = sld [smem:[%s2]]
  %s4 = scalar_lea.smem %s0, 2
  %s5 = sld [smem:[%s4]]
  %s6 = scalar_lea.smem %s0, 3
  %s7 = sld [smem:[%s6]]
  %s8 = scalar_lea.smem %s0, 4
  %s9 = sld [smem:[%s8]]
  %s10 = scalar_lea.smem %s0, 5
  %s11 = sld [smem:[%s10]]
  %s12 = scalar_lea.smem %s0, 6
  %s13 = sld [smem:[%s12]]
  %s14 = scalar_lea.smem %s0, 7
  %s15 = sld [smem:[%s14]]
  %s16 = scalar_lea.smem %s0, 8
  %s17 = sld [smem:[%s16]]
  %s18 = scalar_lea.smem %s0, 9
  %s19 = sld [smem:[%s18]]
  %s20 = scalar_lea.smem %s0, 10
  %s21 = sld [smem:[%s20]]
  %s22 = scalar_lea.smem %s0, 11
  %s23 = sld [smem:[%s22]]
  %s24 = scalar_lea.smem %s0, 12
  %s25 = sld [smem:[%s24]]
  %s26 = scalar_lea.smem %s0, 13
  %s27 = sld [smem:[%s26]]
  %s28 = scalar_lea.smem %s0, 14
  %s29 = sld [smem:[%s28]]
  %s30 = scalar_lea.smem %s0, 15
  %s31 = sld [smem:[%s30]]
  %s32 = scalar_lea.smem %s0, 16
  %s33 = sld [smem:[%s32]]
  %s34 = scalar_lea.smem %s0, 17
  %s35 = sld [smem:[%s34]]
  %s36 = scalar_lea.smem %s0, 18
  %s37 = sld [smem:[%s36]]
  %s38 = scalar_lea.smem %s0, 19
  %s39 = sld [smem:[%s38]]
  %s40 = scalar_lea.smem %s0, 20
  %s41 = sld [smem:[%s40]]
  %s42 = scalar_lea.smem %s0, 21
  %s43 = sld [smem:[%s42]]
  %s44 = scalar_lea.smem %s0, 22
  %s45 = sld [smem:[%s44]]
  %s46 = scalar_lea.smem %s0, 23
  %s47 = sld [smem:[%s46]]
  %s48 = scalar_lea.smem %s0, 24
  %s49 = sld [smem:[%s48]]
  %s50 = scalar_lea.smem %s0, 25
  %s51 = sld [smem:[%s50]]
  %s52 = scalar_lea.smem %s0, 26
  %s53 = sld [smem:[%s52]]
  %s54 = scalar_lea.smem %s0, 27
  %s55 = sld [smem:[%s54]]
  %s56 = scalar_lea.smem %s0, 28
  %s57 = sld [smem:[%s56]]
  %s58 = scalar_lea.smem %s0, 29
  %s59 = sld [smem:[%s58]]
  %s60 = scalar_lea.smem %s0, 30
  %s61 = sld [smem:[%s60]]
  %s62 = scalar_lea.smem %s0, 31
  %s63 = sld [smem:[%s62]]
  %s64 = scalar_lea.smem %s0, 32
  %s65 = sld [smem:[%s64]]
  %s66 = scalar_lea.smem %s0, 33
  %s67 = sld [smem:[%s66]]
  %s68 = scalar_lea.smem %s0, 34
  %s69 = sld [smem:[%s68]]
  %s70 = scalar_lea.smem %s0, 35
  %s71 = sld [smem:[%s70]]
  %s72 = scalar_lea.smem %s0, 36
  %s73 = sld [smem:[%s72]]
  %s74 = scalar_lea.smem %s0, 37
  %s75 = sld [smem:[%s74]]
  %s76 = scalar_lea.smem %s0, 38
  %s77 = sld [smem:[%s76]]
  %s78 = scalar_lea.smem %s0, 39
  %s79 = sld [smem:[%s78]]
  %s80 = scalar_lea.smem %s0, 40
  %s81 = sld [smem:[%s80]]
  %s82 = scalar_lea.smem %s0, 41
  %s83 = sld [smem:[%s82]]
  %s84 = scalar_lea.smem %s0, 42
  %s85 = sld [smem:[%s84]]
  %s86 = scalar_lea.smem %s0, 43
  %s87 = sld [smem:[%s86]]
  %s88 = scalar_lea.smem %s0, 44
  %s89 = sld [smem:[%s88]]
  %s90 = scalar_lea.smem %s0, 45
  %s91 = sld [smem:[%s90]]
  %s92 = scalar_lea.smem %s0, 46
  %s93 = sld [smem:[%s92]]
  %s94 = scalar_lea.smem %s0, 47
  %s95 = sld [smem:[%s94]]
  %s96 = sld [smem:[#allocation0]]
  $region198: #{_lambda_.1} parent=0
    _
  %s98 = ssub.s32 1, %s96
  %s99 = scalar_select 0, %s98, %s96
  // Predicated region
  $region2: #{_lambda_.1} parent=0 // pred_check
    _
  $region3: #{_lambda_.1} parent=0 // pred_check_branch
    %101 = sbr.rel (0) target = $region5
  $region4: #{_lambda_.1} parent=0 // pred_region
    _
  $region5: #{_lambda_.1} parent=0 // pred_fallthru
    _
  // Predicated region
  $region6: #{_lambda_.1} parent=0 // pred_check
    _
  $region7: #{_lambda_.1} parent=0 // pred_check_branch
    %103 = sbr.rel (0) target = $region9
  $region8: #{_lambda_.1} parent=0 // pred_region
    _
  $region9: #{_lambda_.1} parent=0 // pred_fallthru
    _
  // Predicated region
  $region10: #{_lambda_.1} parent=0 // pred_check
    _
  $region11: #{_lambda_.1} parent=0 // pred_check_branch
    %105 = sbr.rel (0) target = $region13
  $region12: #{_lambda_.1} parent=0 // pred_region
    _
  $region13: #{_lambda_.1} parent=0 // pred_fallthru
    _
  // Predicated region
  $region14: #{_lambda_.1} parent=0 // pred_check
    _
  $region15: #{_lambda_.1} parent=0 // pred_check_branch
    %107 = sbr.rel (0) target = $region17
  $region16: #{_lambda_.1} parent=0 // pred_region
    _
  $region17: #{_lambda_.1} parent=0 // pred_fallthru
    _
  // Predicated region
  $region18: #{_lambda_.1} parent=0 // pred_check
    _
  $region19: #{_lambda_.1} parent=0 // pred_check_branch
    %109 = sbr.rel (0) target = $region21
  $region20: #{_lambda_.1} parent=0 // pred_region
    _
  $region21: #{_lambda_.1} parent=0 // pred_fallthru
    _
  // Predicated region
  $region22: #{_lambda_.1} parent=0 // pred_check
    _
  $region23: #{_lambda_.1} parent=0 // pred_check_branch
    %111 = sbr.rel (0) target = $region25
  $region24: #{_lambda_.1} parent=0 // pred_region
    _
  $region25: #{_lambda_.1} parent=0 // pred_fallthru
    _
  // Predicated region
  $region26: #{_lambda_.1} parent=0 // pred_check
    _
  $region27: #{_lambda_.1} parent=0 // pred_check_branch
    %113 = sbr.rel (0) target = $region29
  $region28: #{_lambda_.1} parent=0 // pred_region
    _
  $region29: #{_lambda_.1} parent=0 // pred_fallthru
    _
  // Predicated region
  $region30: #{_lambda_.1} parent=0 // pred_check
    _
  $region31: #{_lambda_.1} parent=0 // pred_check_branch
    %115 = sbr.rel (0) target = $region33
  $region32: #{_lambda_.1} parent=0 // pred_region
    _
  $region33: #{_lambda_.1} parent=0 // pred_fallthru
    _
  // Predicated region
  $region34: #{_lambda_.1} parent=0 // pred_check
    _
  $region35: #{_lambda_.1} parent=0 // pred_check_branch
    %117 = sbr.rel (0) target = $region37
  $region36: #{_lambda_.1} parent=0 // pred_region
    _
  $region37: #{_lambda_.1} parent=0 // pred_fallthru
    _
  // Predicated region
  $region38: #{_lambda_.1} parent=0 // pred_check
    _
  $region39: #{_lambda_.1} parent=0 // pred_check_branch
    %119 = sbr.rel (0) target = $region41
  $region40: #{_lambda_.1} parent=0 // pred_region
    _
  $region41: #{_lambda_.1} parent=0 // pred_fallthru
    _
  // Predicated region
  $region42: #{_lambda_.1} parent=0 // pred_check
    _
  $region43: #{_lambda_.1} parent=0 // pred_check_branch
    %121 = sbr.rel (0) target = $region45
  $region44: #{_lambda_.1} parent=0 // pred_region
    _
  $region45: #{_lambda_.1} parent=0 // pred_fallthru
    _
  // Predicated region
  $region46: #{_lambda_.1} parent=0 // pred_check
    _
  $region47: #{_lambda_.1} parent=0 // pred_check_branch
    %123 = sbr.rel (0) target = $region49
  $region48: #{_lambda_.1} parent=0 // pred_region
    _
  $region49: #{_lambda_.1} parent=0 // pred_fallthru
    _
  // Predicated region
  $region50: #{_lambda_.1} parent=0 // pred_check
    _
  $region51: #{_lambda_.1} parent=0 // pred_check_branch
    %125 = sbr.rel (0) target = $region53
  $region52: #{_lambda_.1} parent=0 // pred_region
    _
  $region53: #{_lambda_.1} parent=0 // pred_fallthru
    _
  // Predicated region
  $region54: #{_lambda_.1} parent=0 // pred_check
    _
  $region55: #{_lambda_.1} parent=0 // pred_check_branch
    %127 = sbr.rel (0) target = $region57
  $region56: #{_lambda_.1} parent=0 // pred_region
    _
  $region57: #{_lambda_.1} parent=0 // pred_fallthru
    _
  // Predicated region
  $region58: #{_lambda_.1} parent=0 // pred_check
    _
  $region59: #{_lambda_.1} parent=0 // pred_check_branch
    %129 = sbr.rel (0) target = $region61
  $region60: #{_lambda_.1} parent=0 // pred_region
    _
  $region61: #{_lambda_.1} parent=0 // pred_fallthru
    _
  // Predicated region
  $region62: #{_lambda_.1} parent=0 // pred_check
    _
  $region63: #{_lambda_.1} parent=0 // pred_check_branch
    %131 = sbr.rel (0) target = $region65
  $region64: #{_lambda_.1} parent=0 // pred_region
    _
  $region65: #{_lambda_.1} parent=0 // pred_fallthru
    _
  // Predicated region
  $region66: #{_lambda_.1} parent=0 // pred_check
    _
  $region67: #{_lambda_.1} parent=0 // pred_check_branch
    %133 = sbr.rel (0) target = $region69
  $region68: #{_lambda_.1} parent=0 // pred_region
    _
  $region69: #{_lambda_.1} parent=0 // pred_fallthru
    _
  // Predicated region
  $region70: #{_lambda_.1} parent=0 // pred_check
    _
  $region71: #{_lambda_.1} parent=0 // pred_check_branch
    %135 = sbr.rel (0) target = $region73
  $region72: #{_lambda_.1} parent=0 // pred_region
    _
  $region73: #{_lambda_.1} parent=0 // pred_fallthru
    _
  // Predicated region
  $region74: #{_lambda_.1} parent=0 // pred_check
    _
  $region75: #{_lambda_.1} parent=0 // pred_check_branch
    %137 = sbr.rel (0) target = $region77
  $region76: #{_lambda_.1} parent=0 // pred_region
    _
  $region77: #{_lambda_.1} parent=0 // pred_fallthru
    _
  // Predicated region
  $region78: #{_lambda_.1} parent=0 // pred_check
    _
  $region79: #{_lambda_.1} parent=0 // pred_check_branch
    %139 = sbr.rel (0) target = $region81
  $region80: #{_lambda_.1} parent=0 // pred_region
    _
  $region81: #{_lambda_.1} parent=0 // pred_fallthru
    _
  // Predicated region
  $region82: #{_lambda_.1} parent=0 // pred_check
    _
  $region83: #{_lambda_.1} parent=0 // pred_check_branch
    %141 = sbr.rel (0) target = $region85
  $region84: #{_lambda_.1} parent=0 // pred_region
    _
  $region85: #{_lambda_.1} parent=0 // pred_fallthru
    _
  // Predicated region
  $region86: #{_lambda_.1} parent=0 // pred_check
    _
  $region87: #{_lambda_.1} parent=0 // pred_check_branch
    %143 = sbr.rel (0) target = $region89
  $region88: #{_lambda_.1} parent=0 // pred_region
    _
  $region89: #{_lambda_.1} parent=0 // pred_fallthru
    _
  // Predicated region
  $region90: #{_lambda_.1} parent=0 // pred_check
    _
  $region91: #{_lambda_.1} parent=0 // pred_check_branch
    %145 = sbr.rel (0) target = $region93
  $region92: #{_lambda_.1} parent=0 // pred_region
    _
  $region93: #{_lambda_.1} parent=0 // pred_fallthru
    _
  // Predicated region
  $region94: #{_lambda_.1} parent=0 // pred_check
    _
  $region95: #{_lambda_.1} parent=0 // pred_check_branch
    %147 = sbr.rel (0) target = $region97
  $region96: #{_lambda_.1} parent=0 // pred_region
    _
  $region97: #{_lambda_.1} parent=0 // pred_fallthru
    _
  // Predicated region
  $region98: #{_lambda_.1} parent=0 // pred_check
    _
  $region99: #{_lambda_.1} parent=0 // pred_check_branch
    %149 = sbr.rel (0) target = $region101
  $region100: #{_lambda_.1} parent=0 // pred_region
    _
  $region101: #{_lambda_.1} parent=0 // pred_fallthru
    _
  // Predicated region
  $region102: #{_lambda_.1} parent=0 // pred_check
    _
  $region103: #{_lambda_.1} parent=0 // pred_check_branch
    %151 = sbr.rel (0) target = $region105
  $region104: #{_lambda_.1} parent=0 // pred_region
    _
  $region105: #{_lambda_.1} parent=0 // pred_fallthru
    _
  // Predicated region
  $region106: #{_lambda_.1} parent=0 // pred_check
    _
  $region107: #{_lambda_.1} parent=0 // pred_check_branch
    %153 = sbr.rel (0) target = $region109
  $region108: #{_lambda_.1} parent=0 // pred_region
    _
  $region109: #{_lambda_.1} parent=0 // pred_fallthru
    _
  // Predicated region
  $region110: #{_lambda_.1} parent=0 // pred_check
    _
  $region111: #{_lambda_.1} parent=0 // pred_check_branch
    %155 = sbr.rel (0) target = $region113
  $region112: #{_lambda_.1} parent=0 // pred_region
    _
  $region113: #{_lambda_.1} parent=0 // pred_fallthru
    _
  // Predicated region
  $region114: #{_lambda_.1} parent=0 // pred_check
    _
  $region115: #{_lambda_.1} parent=0 // pred_check_branch
    %157 = sbr.rel (0) target = $region117
  $region116: #{_lambda_.1} parent=0 // pred_region
    _
  $region117: #{_lambda_.1} parent=0 // pred_fallthru
    _
  // Predicated region
  $region118: #{_lambda_.1} parent=0 // pred_check
    _
  $region119: #{_lambda_.1} parent=0 // pred_check_branch
    %159 = sbr.rel (0) target = $region121
  $region120: #{_lambda_.1} parent=0 // pred_region
    _
  $region121: #{_lambda_.1} parent=0 // pred_fallthru
    _
  // Predicated region
  $region122: #{_lambda_.1} parent=0 // pred_check
    _
  $region123: #{_lambda_.1} parent=0 // pred_check_branch
    %161 = sbr.rel (0) target = $region125
  $region124: #{_lambda_.1} parent=0 // pred_region
    _
  $region125: #{_lambda_.1} parent=0 // pred_fallthru
    _
  // Predicated region
  $region126: #{_lambda_.1} parent=0 // pred_check
    _
  $region127: #{_lambda_.1} parent=0 // pred_check_branch
    %163 = sbr.rel (0) target = $region129
  $region128: #{_lambda_.1} parent=0 // pred_region
    _
  $region129: #{_lambda_.1} parent=0 // pred_fallthru
    _
  // Predicated region
  $region130: #{_lambda_.1} parent=0 // pred_check
    _
  $region131: #{_lambda_.1} parent=0 // pred_check_branch
    %165 = sbr.rel (0) target = $region133
  $region132: #{_lambda_.1} parent=0 // pred_region
    _
  $region133: #{_lambda_.1} parent=0 // pred_fallthru
    _
  // Predicated region
  $region134: #{_lambda_.1} parent=0 // pred_check
    _
  $region135: #{_lambda_.1} parent=0 // pred_check_branch
    %167 = sbr.rel (0) target = $region137
  $region136: #{_lambda_.1} parent=0 // pred_region
    _
  $region137: #{_lambda_.1} parent=0 // pred_fallthru
    _
  // Predicated region
  $region138: #{_lambda_.1} parent=0 // pred_check
    _
  $region139: #{_lambda_.1} parent=0 // pred_check_branch
    %169 = sbr.rel (0) target = $region141
  $region140: #{_lambda_.1} parent=0 // pred_region
    _
  $region141: #{_lambda_.1} parent=0 // pred_fallthru
    _
  // Predicated region
  $region142: #{_lambda_.1} parent=0 // pred_check
    _
  $region143: #{_lambda_.1} parent=0 // pred_check_branch
    %171 = sbr.rel (0) target = $region145
  $region144: #{_lambda_.1} parent=0 // pred_region
    _
  $region145: #{_lambda_.1} parent=0 // pred_fallthru
    _
  // Predicated region
  $region146: #{_lambda_.1} parent=0 // pred_check
    _
  $region147: #{_lambda_.1} parent=0 // pred_check_branch
    %173 = sbr.rel (0) target = $region149
  $region148: #{_lambda_.1} parent=0 // pred_region
    _
  $region149: #{_lambda_.1} parent=0 // pred_fallthru
    _
  // Predicated region
  $region150: #{_lambda_.1} parent=0 // pred_check
    _
  $region151: #{_lambda_.1} parent=0 // pred_check_branch
    %175 = sbr.rel (0) target = $region153
  $region152: #{_lambda_.1} parent=0 // pred_region
    _
  $region153: #{_lambda_.1} parent=0 // pred_fallthru
    _
  // Predicated region
  $region154: #{_lambda_.1} parent=0 // pred_check
    _
  $region155: #{_lambda_.1} parent=0 // pred_check_branch
    %177 = sbr.rel (0) target = $region157
  $region156: #{_lambda_.1} parent=0 // pred_region
    _
  $region157: #{_lambda_.1} parent=0 // pred_fallthru
    _
  // Predicated region
  $region158: #{_lambda_.1} parent=0 // pred_check
    _
  $region159: #{_lambda_.1} parent=0 // pred_check_branch
    %179 = sbr.rel (0) target = $region161
  $region160: #{_lambda_.1} parent=0 // pred_region
    _
  $region161: #{_lambda_.1} parent=0 // pred_fallthru
    _
  // Predicated region
  $region162: #{_lambda_.1} parent=0 // pred_check
    _
  $region163: #{_lambda_.1} parent=0 // pred_check_branch
    %181 = sbr.rel (0) target = $region165
  $region164: #{_lambda_.1} parent=0 // pred_region
    _
  $region165: #{_lambda_.1} parent=0 // pred_fallthru
    _
  // Predicated region
  $region166: #{_lambda_.1} parent=0 // pred_check
    _
  $region167: #{_lambda_.1} parent=0 // pred_check_branch
    %183 = sbr.rel (0) target = $region169
  $region168: #{_lambda_.1} parent=0 // pred_region
    _
  $region169: #{_lambda_.1} parent=0 // pred_fallthru
    _
  // Predicated region
  $region170: #{_lambda_.1} parent=0 // pred_check
    _
  $region171: #{_lambda_.1} parent=0 // pred_check_branch
    %185 = sbr.rel (0) target = $region173
  $region172: #{_lambda_.1} parent=0 // pred_region
    _
  $region173: #{_lambda_.1} parent=0 // pred_fallthru
    _
  // Predicated region
  $region174: #{_lambda_.1} parent=0 // pred_check
    _
  $region175: #{_lambda_.1} parent=0 // pred_check_branch
    %187 = sbr.rel (0) target = $region177
  $region176: #{_lambda_.1} parent=0 // pred_region
    _
  $region177: #{_lambda_.1} parent=0 // pred_fallthru
    _
  // Predicated region
  $region178: #{_lambda_.1} parent=0 // pred_check
    _
  $region179: #{_lambda_.1} parent=0 // pred_check_branch
    %189 = sbr.rel (0) target = $region181
  $region180: #{_lambda_.1} parent=0 // pred_region
    _
  $region181: #{_lambda_.1} parent=0 // pred_fallthru
    _
  // Predicated region
  $region182: #{_lambda_.1} parent=0 // pred_check
    _
  $region183: #{_lambda_.1} parent=0 // pred_check_branch
    %191 = sbr.rel (0) target = $region185
  $region184: #{_lambda_.1} parent=0 // pred_region
    _
  $region185: #{_lambda_.1} parent=0 // pred_fallthru
    _
  // Predicated region
  $region186: #{_lambda_.1} parent=0 // pred_check
    _
  $region187: #{_lambda_.1} parent=0 // pred_check_branch
    %193 = sbr.rel (0) target = $region189
  $region188: #{_lambda_.1} parent=0 // pred_region
    _
  $region189: #{_lambda_.1} parent=0 // pred_fallthru
    _
  %v195 = vld [vmem:[%s89] sm:$0xf]
  %v196 = vld [vmem:[%s89 + $0x4] sm:$0xf]
  %v197 = vld [vmem:[%s89 + $0x8] sm:$0xf]
  %v198 = vld [vmem:[%s89 + $0xc] sm:$0xf]
  %v199 = vld [vmem:[%s89 + $0x10] sm:$0xf]
  %v200 = vld [vmem:[%s89 + $0x14] sm:$0xf]
  %v201 = vld [vmem:[%s89 + $0x18] sm:$0xf]
  %v202 = vld [vmem:[%s89 + $0x1c] sm:$0xf]
  %v203 = vld [vmem:[%s89 + $0x20] sm:$0xf]
  %v204 = vld [vmem:[%s89 + $0x24] sm:$0xf]
  %v205 = vld [vmem:[%s89 + $0x28] sm:$0xf]
  %v206 = vld [vmem:[%s89 + $0x2c] sm:$0xf]
  %v207 = vld [vmem:[%s89 + $0x30] sm:$0xf]
  %v208 = vld [vmem:[%s89 + $0x34] sm:$0xf]
  %v209 = vld [vmem:[%s89 + $0x38] sm:$0xf]
  %v210 = vld [vmem:[%s89 + $0x3c] sm:$0xf]
  %v211 = vld [vmem:[%s83] sm:$0xf]
  %v212 = vld [vmem:[%s83 + $0x4] sm:$0xf]
  %v213 = vld [vmem:[%s83 + $0x8] sm:$0xf]
  %v214 = vld [vmem:[%s83 + $0xc] sm:$0xf]
  %v215 = vld [vmem:[%s83 + $0x10] sm:$0xf]
  %v216 = vld [vmem:[%s83 + $0x14] sm:$0xf]
  %v217 = vld [vmem:[%s83 + $0x18] sm:$0xf]
  %v218 = vld [vmem:[%s83 + $0x1c] sm:$0xf]
  %v235 = vunpack.c.l.b16 %v195
  %v236 = vunpack.c.l.b16 %v196
  %v237 = vunpack.c.l.b16 %v197
  %v238 = vunpack.c.l.b16 %v198
  %v239 = vunpack.c.l.b16 %v199
  %v240 = vunpack.c.l.b16 %v200
  %v241 = vunpack.c.l.b16 %v201
  %v242 = vunpack.c.l.b16 %v202
  %v243 = vunpack.c.l.b16 %v203
  %v244 = vunpack.c.l.b16 %v204
  %v245 = vunpack.c.l.b16 %v205
  %v246 = vunpack.c.l.b16 %v206
  %v247 = vunpack.c.l.b16 %v207
  %v248 = vunpack.c.l.b16 %v208
  %v249 = vunpack.c.l.b16 %v209
  %v250 = vunpack.c.l.b16 %v210
  %v251 = vpack.c.b16 %v236, %v235
  %v252 = vpack.c.b16 %v238, %v237
  %v253 = vpack.c.b16 %v240, %v239
  %v254 = vpack.c.b16 %v242, %v241
  %v255 = vpack.c.b16 %v244, %v243
  %v256 = vpack.c.b16 %v246, %v245
  %v257 = vpack.c.b16 %v248, %v247
  %v258 = vpack.c.b16 %v250, %v249
  %v267 = vunpack.c.l.b16 %v211
  %v268 = vunpack.c.l.b16 %v212
  %v269 = vunpack.c.l.b16 %v213
  %v270 = vunpack.c.l.b16 %v214
  %v271 = vunpack.c.l.b16 %v215
  %v272 = vunpack.c.l.b16 %v216
  %v273 = vunpack.c.l.b16 %v217
  %v274 = vunpack.c.l.b16 %v218
  %v275 = vpack.c.b16 %v268, %v267
  %v276 = vpack.c.b16 %v270, %v269
  %v277 = vpack.c.b16 %v272, %v271
  %v278 = vpack.c.b16 %v274, %v273
  %vm283 = vcmask 523264
  %v285 = vsel %vm283, %v251, 0
  %v288 = vsel %vm283, %v252, 0
  %v291 = vsel %vm283, %v253, 0
  %v294 = vsel %vm283, %v254, 0
  %v297 = vsel %vm283, %v255, 0
  %v300 = vsel %vm283, %v256, 0
  %v303 = vsel %vm283, %v257, 0
  %v306 = vsel %vm283, %v258, 0
  %308 = vmatprep.subr.bf16.mxu0 0
  %309 = vmatpush1.bf16.msra.mxu0 0
  %310 = vmatprep.subr.bf16.mxu0 0
  %311 = vmatpush1.bf16.msra.mxu0 0
  %312 = vmatprep.subr.bf16.mxu0 0
  %313 = vmatpush1.bf16.msra.mxu0 0
  %314 = vmatprep.subr.bf16.mxu0 0
  %315 = vmatpush1.bf16.msra.mxu0 0
  %316 = vmatprep.subr.bf16.mxu0 0
  %317 = vmatpush1.bf16.msra.mxu0 %v278
  %318 = vmatprep.subr.bf16.mxu0 0
  %319 = vmatpush1.bf16.msra.mxu0 %v277
  %320 = vmatprep.subr.bf16.mxu0 0
  %321 = vmatpush1.bf16.msra.mxu0 %v276
  %322 = vmatprep.subr.bf16.mxu0 0
  %323 = vmatpush1.bf16.msra.mxu0 %v275
  %324 = vmatprep.subr.bf16.mxu0 0
  %325 = vmatpush2.bf16.msra.mxu0 0
  %326 = vmatprep.subr.bf16.mxu0 0
  %327 = vmatpush2.bf16.msra.mxu0 0
  %328 = vmatprep.subr.bf16.mxu0 0
  %329 = vmatpush2.bf16.msra.mxu0 0
  %330 = vmatprep.subr.bf16.mxu0 0
  %331 = vmatpush2.bf16.msra.mxu0 0
  %332 = vmatprep.subr.bf16.mxu0 0
  %333 = vmatpush2.bf16.msra.mxu0 0
  %334 = vmatprep.subr.bf16.mxu0 0
  %335 = vmatpush2.bf16.msra.mxu0 0
  %336 = vmatprep.subr.bf16.mxu0 0
  %337 = vmatpush2.bf16.msra.mxu0 0
  %338 = vmatprep.subr.bf16.mxu0 0
  %339 = vmatpush2.bf16.msra.mxu0 0
  %340 = vmatprep.mubr.bf16.mxu0 0
  %341 = vmatmul.mubr.bf16.gmra.mxu0 %v285
  %v342 = vpop.f32.mrf.mxu0
  %v343 = vadd.f32 0.0, %v342
  %v344 = vpop.f32.mrf.mxu0
  %v345 = vpop.f32.mrf.mxu0
  %v346 = vadd.f32 0.0, %v345
  %v347 = vpop.f32.mrf.mxu0
  %348 = vmatprep.mubr.bf16.mxu0 0
  %349 = vmatmul.mubr.bf16.gmra.mxu0 %v288
  %v350 = vpop.f32.mrf.mxu0
  %v351 = vadd.f32 0.0, %v350
  %v352 = vpop.f32.mrf.mxu0
  %v353 = vpop.f32.mrf.mxu0
  %v354 = vadd.f32 0.0, %v353
  %v355 = vpop.f32.mrf.mxu0
  %356 = vmatprep.mubr.bf16.mxu0 0
  %357 = vmatmul.mubr.bf16.gmra.mxu0 %v291
  %v358 = vpop.f32.mrf.mxu0
  %v359 = vadd.f32 0.0, %v358
  %v360 = vpop.f32.mrf.mxu0
  %v361 = vpop.f32.mrf.mxu0
  %v362 = vadd.f32 0.0, %v361
  %v363 = vpop.f32.mrf.mxu0
  %364 = vmatprep.mubr.bf16.mxu0 0
  %365 = vmatmul.mubr.bf16.gmra.mxu0 %v294
  %v366 = vpop.f32.mrf.mxu0
  %v367 = vadd.f32 0.0, %v366
  %v368 = vpop.f32.mrf.mxu0
  %v369 = vpop.f32.mrf.mxu0
  %v370 = vadd.f32 0.0, %v369
  %v371 = vpop.f32.mrf.mxu0
  %372 = vmatprep.mubr.bf16.mxu0 0
  %373 = vmatmul.mubr.bf16.gmra.mxu0 %v297
  %v374 = vpop.f32.mrf.mxu0
  %v375 = vadd.f32 0.0, %v374
  %v376 = vpop.f32.mrf.mxu0
  %v377 = vpop.f32.mrf.mxu0
  %v378 = vadd.f32 0.0, %v377
  %v379 = vpop.f32.mrf.mxu0
  %380 = vmatprep.mubr.bf16.mxu0 0
  %381 = vmatmul.mubr.bf16.gmra.mxu0 %v300
  %v382 = vpop.f32.mrf.mxu0
  %v383 = vadd.f32 0.0, %v382
  %v384 = vpop.f32.mrf.mxu0
  %v385 = vpop.f32.mrf.mxu0
  %v386 = vadd.f32 0.0, %v385
  %v387 = vpop.f32.mrf.mxu0
  %388 = vmatprep.mubr.bf16.mxu0 0
  %389 = vmatmul.mubr.bf16.gmra.mxu0 %v303
  %v390 = vpop.f32.mrf.mxu0
  %v391 = vadd.f32 0.0, %v390
  %v392 = vpop.f32.mrf.mxu0
  %v393 = vpop.f32.mrf.mxu0
  %v394 = vadd.f32 0.0, %v393
  %v395 = vpop.f32.mrf.mxu0
  %396 = vmatprep.mubr.bf16.mxu0 0
  %397 = vmatmul.mubr.bf16.gmra.mxu0 %v306
  %v398 = vpop.f32.mrf.mxu0
  %v399 = vadd.f32 0.0, %v398
  %v400 = vpop.f32.mrf.mxu0
  %v401 = vpop.f32.mrf.mxu0
  %v402 = vadd.f32 0.0, %v401
  %v403 = vpop.f32.mrf.mxu0
  %404 = vdwg.mxu0
  %v405 = vld [vmem:[%s79] sm:$0x1]
  %v407 = vlaneseq
  %v408 = vshrl.u32 %v407, 7
  %v409 = vsub.s32 0, %v408
  %v410 = vrot.slane %v405, %v409
  %v412 = vmul.f32 %v343, %v410
  %v413 = vmul.f32 %v346, %v410
  %v414 = vmul.f32 %v351, %v410
  %v415 = vmul.f32 %v354, %v410
  %v416 = vmul.f32 %v359, %v410
  %v417 = vmul.f32 %v362, %v410
  %v418 = vmul.f32 %v367, %v410
  %v419 = vmul.f32 %v370, %v410
  %v420 = vmul.f32 %v375, %v410
  %v421 = vmul.f32 %v378, %v410
  %v422 = vmul.f32 %v383, %v410
  %v423 = vmul.f32 %v386, %v410
  %v424 = vmul.f32 %v391, %v410
  %v425 = vmul.f32 %v394, %v410
  %v426 = vmul.f32 %v399, %v410
  %v427 = vmul.f32 %v402, %v410
  %v428 = vld [vmem:[%s81] sm:$0x1]
  %v430 = vlaneseq
  %v431 = vshrl.u32 %v430, 7
  %v432 = vsub.s32 0, %v431
  %v433 = vrot.slane %v428, %v432
  %v435 = vadd.f32 %v412, %v433
  %v436 = vadd.f32 %v413, %v433
  %v437 = vadd.f32 %v414, %v433
  %v438 = vadd.f32 %v415, %v433
  %v439 = vadd.f32 %v416, %v433
  %v440 = vadd.f32 %v417, %v433
  %v441 = vadd.f32 %v418, %v433
  %v442 = vadd.f32 %v419, %v433
  %v443 = vadd.f32 %v420, %v433
  %v444 = vadd.f32 %v421, %v433
  %v445 = vadd.f32 %v422, %v433
  %v446 = vadd.f32 %v423, %v433
  %v447 = vadd.f32 %v424, %v433
  %v448 = vadd.f32 %v425, %v433
  %v449 = vadd.f32 %v426, %v433
  %v450 = vadd.f32 %v427, %v433
  %v451 = vmax.f32 %v435, 0.0
  %v452 = vmax.f32 %v436, 0.0
  %v453 = vmax.f32 %v437, 0.0
  %v454 = vmax.f32 %v438, 0.0
  %v455 = vmax.f32 %v439, 0.0
  %v456 = vmax.f32 %v440, 0.0
  %v457 = vmax.f32 %v441, 0.0
  %v458 = vmax.f32 %v442, 0.0
  %v459 = vmax.f32 %v443, 0.0
  %v460 = vmax.f32 %v444, 0.0
  %v461 = vmax.f32 %v445, 0.0
  %v462 = vmax.f32 %v446, 0.0
  %v463 = vmax.f32 %v447, 0.0
  %v464 = vmax.f32 %v448, 0.0
  %v465 = vmax.f32 %v449, 0.0
  %v466 = vmax.f32 %v450, 0.0
  %v467 = vlaneseq
  %v468 = vshrl.u32 %v467, 7
  %v469 = vadd.s32 %v468, 8
  %v470 = vadd.s32 %v468, 16
  %v471 = vadd.s32 %v468, 24
  %v472 = vadd.s32 %v468, 32
  %v473 = vadd.s32 %v468, 40
  %v474 = vadd.s32 %v468, 48
  %v475 = vadd.s32 %v468, 56
  %v476 = vadd.s32 %v468, 64
  %v477 = vadd.s32 %v468, 72
  %v478 = vadd.s32 %v468, 80
  %v479 = vadd.s32 %v468, 88
  %v480 = vadd.s32 %v468, 96
  %v481 = vadd.s32 %v468, 104
  %v482 = vadd.s32 %v468, 112
  %v483 = vadd.s32 %v468, 120
  %v484 = vand.u32 %v468, 7
  %v485 = vand.u32 %v469, 7
  %v486 = vand.u32 %v470, 7
  %v487 = vand.u32 %v471, 7
  %v488 = vand.u32 %v472, 7
  %v489 = vand.u32 %v473, 7
  %v490 = vand.u32 %v474, 7
  %v491 = vand.u32 %v475, 7
  %v492 = vand.u32 %v476, 7
  %v493 = vand.u32 %v477, 7
  %v494 = vand.u32 %v478, 7
  %v495 = vand.u32 %v479, 7
  %v496 = vand.u32 %v480, 7
  %v497 = vand.u32 %v481, 7
  %v498 = vand.u32 %v482, 7
  %v499 = vand.u32 %v483, 7
  %v500 = vand.u32 %v468, 63
  %v501 = vand.u32 %v469, 63
  %v502 = vand.u32 %v470, 63
  %v503 = vand.u32 %v471, 63
  %v504 = vand.u32 %v472, 63
  %v505 = vand.u32 %v473, 63
  %v506 = vand.u32 %v474, 63
  %v507 = vand.u32 %v475, 63
  %v508 = vand.u32 %v476, 63
  %v509 = vand.u32 %v477, 63
  %v510 = vand.u32 %v478, 63
  %v511 = vand.u32 %v479, 63
  %v512 = vand.u32 %v480, 63
  %v513 = vand.u32 %v481, 63
  %v514 = vand.u32 %v482, 63
  %v515 = vand.u32 %v483, 63
  %v516 = vshra.s32 %v500, 3
  %v517 = vshra.s32 %v501, 3
  %v518 = vshra.s32 %v502, 3
  %v519 = vshra.s32 %v503, 3
  %v520 = vshra.s32 %v504, 3
  %v521 = vshra.s32 %v505, 3
  %v522 = vshra.s32 %v506, 3
  %v523 = vshra.s32 %v507, 3
  %v524 = vshra.s32 %v508, 3
  %v525 = vshra.s32 %v509, 3
  %v526 = vshra.s32 %v510, 3
  %v527 = vshra.s32 %v511, 3
  %v528 = vshra.s32 %v512, 3
  %v529 = vshra.s32 %v513, 3
  %v530 = vshra.s32 %v514, 3
  %v531 = vshra.s32 %v515, 3
  %v532 = vrot.slane %v451, 7
  %v533 = vrot.slane %v452, 7
  %v534 = vrot.slane %v453, 7
  %v535 = vrot.slane %v454, 7
  %v536 = vrot.slane %v455, 7
  %v537 = vrot.slane %v456, 7
  %v538 = vrot.slane %v457, 7
  %v539 = vrot.slane %v458, 7
  %v540 = vrot.slane %v459, 7
  %v541 = vrot.slane %v460, 7
  %v542 = vrot.slane %v461, 7
  %v543 = vrot.slane %v462, 7
  %v544 = vrot.slane %v463, 7
  %v545 = vrot.slane %v464, 7
  %v546 = vrot.slane %v465, 7
  %v547 = vrot.slane %v466, 7
  %vm548 = vcmp.lt.s32.totalorder %v468, 1
  %v549 = vsel %vm548, %v546, %v547
  %v550 = vsel %vm548, %v545, %v546
  %v551 = vsel %vm548, %v544, %v545
  %v552 = vsel %vm548, %v543, %v544
  %v553 = vsel %vm548, %v542, %v543
  %v554 = vsel %vm548, %v541, %v542
  %v555 = vsel %vm548, %v540, %v541
  %v556 = vsel %vm548, %v539, %v540
  %v557 = vsel %vm548, %v538, %v539
  %v558 = vsel %vm548, %v537, %v538
  %v559 = vsel %vm548, %v536, %v537
  %v560 = vsel %vm548, %v535, %v536
  %v561 = vsel %vm548, %v534, %v535
  %v562 = vsel %vm548, %v533, %v534
  %v563 = vsel %vm548, %v532, %v533
  %v564 = vsel %vm548, %v547, %v532
  %vm565 = vcmp.ge.s32.totalorder %v516, 1
  %vm566 = vcmp.ge.s32.totalorder %v517, 1
  %vm567 = vcmp.ge.s32.totalorder %v518, 1
  %vm568 = vcmp.ge.s32.totalorder %v519, 1
  %vm569 = vcmp.ge.s32.totalorder %v520, 1
  %vm570 = vcmp.ge.s32.totalorder %v521, 1
  %vm571 = vcmp.ge.s32.totalorder %v522, 1
  %vm572 = vcmp.ge.s32.totalorder %v523, 1
  %vm573 = vcmp.ge.s32.totalorder %v524, 1
  %vm574 = vcmp.ge.s32.totalorder %v525, 1
  %vm575 = vcmp.ge.s32.totalorder %v526, 1
  %vm576 = vcmp.ge.s32.totalorder %v527, 1
  %vm577 = vcmp.ge.s32.totalorder %v528, 1
  %vm578 = vcmp.ge.s32.totalorder %v529, 1
  %vm579 = vcmp.ge.s32.totalorder %v530, 1
  %vm580 = vcmp.ge.s32.totalorder %v531, 1
  %vm581 = vcmp.ge.s32.totalorder %v484, 1
  %vm582 = vcmp.ge.s32.totalorder %v485, 1
  %vm583 = vcmp.ge.s32.totalorder %v486, 1
  %vm584 = vcmp.ge.s32.totalorder %v487, 1
  %vm585 = vcmp.ge.s32.totalorder %v488, 1
  %vm586 = vcmp.ge.s32.totalorder %v489, 1
  %vm587 = vcmp.ge.s32.totalorder %v490, 1
  %vm588 = vcmp.ge.s32.totalorder %v491, 1
  %vm589 = vcmp.ge.s32.totalorder %v492, 1
  %vm590 = vcmp.ge.s32.totalorder %v493, 1
  %vm591 = vcmp.ge.s32.totalorder %v494, 1
  %vm592 = vcmp.ge.s32.totalorder %v495, 1
  %vm593 = vcmp.ge.s32.totalorder %v496, 1
  %vm594 = vcmp.ge.s32.totalorder %v497, 1
  %vm595 = vcmp.ge.s32.totalorder %v498, 1
  %vm596 = vcmp.ge.s32.totalorder %v499, 1
  %vm597 = vmand %vm565, %vm581
  %vm598 = vmand %vm566, %vm582
  %vm599 = vmand %vm567, %vm583
  %vm600 = vmand %vm568, %vm584
  %vm601 = vmand %vm569, %vm585
  %vm602 = vmand %vm570, %vm586
  %vm603 = vmand %vm571, %vm587
  %vm604 = vmand %vm572, %vm588
  %vm605 = vmand %vm573, %vm589
  %vm606 = vmand %vm574, %vm590
  %vm607 = vmand %vm575, %vm591
  %vm608 = vmand %vm576, %vm592
  %vm609 = vmand %vm577, %vm593
  %vm610 = vmand %vm578, %vm594
  %vm611 = vmand %vm579, %vm595
  %vm612 = vmand %vm580, %vm596
  %v613 = vsel %vm597, 1, 0
  %v614 = vsel %vm598, 1, 0
  %v615 = vsel %vm599, 1, 0
  %v616 = vsel %vm600, 1, 0
  %v617 = vsel %vm601, 1, 0
  %v618 = vsel %vm602, 1, 0
  %v619 = vsel %vm603, 1, 0
  %v620 = vsel %vm604, 1, 0
  %v621 = vsel %vm605, 1, 0
  %v622 = vsel %vm606, 1, 0
  %v623 = vsel %vm607, 1, 0
  %v624 = vsel %vm608, 1, 0
  %v625 = vsel %vm609, 1, 0
  %v626 = vsel %vm610, 1, 0
  %v627 = vsel %vm611, 1, 0
  %v628 = vsel %vm612, 1, 0
  %v629 = vcvt.s32.f32 %v613
  %v630 = vcvt.s32.f32 %v614
  %v631 = vcvt.s32.f32 %v615
  %v632 = vcvt.s32.f32 %v616
  %v633 = vcvt.s32.f32 %v617
  %v634 = vcvt.s32.f32 %v618
  %v635 = vcvt.s32.f32 %v619
  %v636 = vcvt.s32.f32 %v620
  %v637 = vcvt.s32.f32 %v621
  %v638 = vcvt.s32.f32 %v622
  %v639 = vcvt.s32.f32 %v623
  %v640 = vcvt.s32.f32 %v624
  %v641 = vcvt.s32.f32 %v625
  %v642 = vcvt.s32.f32 %v626
  %v643 = vcvt.s32.f32 %v627
  %v644 = vcvt.s32.f32 %v628
  %v645 = vmul.f32 %v549, %v629
  %v646 = vmul.f32 %v564, %v630
  %v647 = vmul.f32 %v563, %v631
  %v648 = vmul.f32 %v562, %v632
  %v649 = vmul.f32 %v561, %v633
  %v650 = vmul.f32 %v560, %v634
  %v651 = vmul.f32 %v559, %v635
  %v652 = vmul.f32 %v558, %v636
  %v653 = vmul.f32 %v557, %v637
  %v654 = vmul.f32 %v556, %v638
  %v655 = vmul.f32 %v555, %v639
  %v656 = vmul.f32 %v554, %v640
  %v657 = vmul.f32 %v553, %v641
  %v658 = vmul.f32 %v552, %v642
  %v659 = vmul.f32 %v551, %v643
  %v660 = vmul.f32 %v550, %v644
  %v661 = vmax.f32 %v451, %v645
  %v662 = vmax.f32 %v452, %v646
  %v663 = vmax.f32 %v453, %v647
  %v664 = vmax.f32 %v454, %v648
  %v665 = vmax.f32 %v455, %v649
  %v666 = vmax.f32 %v456, %v650
  %v667 = vmax.f32 %v457, %v651
  %v668 = vmax.f32 %v458, %v652
  %v669 = vmax.f32 %v459, %v653
  %v670 = vmax.f32 %v460, %v654
  %v671 = vmax.f32 %v461, %v655
  %v672 = vmax.f32 %v462, %v656
  %v673 = vmax.f32 %v463, %v657
  %v674 = vmax.f32 %v464, %v658
  %v675 = vmax.f32 %v465, %v659
  %v676 = vmax.f32 %v466, %v660
  %v677 = vsel %vm565, 1, 0
  %v678 = vsel %vm566, 1, 0
  %v679 = vsel %vm567, 1, 0
  %v680 = vsel %vm568, 1, 0
  %v681 = vsel %vm569, 1, 0
  %v682 = vsel %vm570, 1, 0
  %v683 = vsel %vm571, 1, 0
  %v684 = vsel %vm572, 1, 0
  %v685 = vsel %vm573, 1, 0
  %v686 = vsel %vm574, 1, 0
  %v687 = vsel %vm575, 1, 0
  %v688 = vsel %vm576, 1, 0
  %v689 = vsel %vm577, 1, 0
  %v690 = vsel %vm578, 1, 0
  %v691 = vsel %vm579, 1, 0
  %v692 = vsel %vm580, 1, 0
  %v693 = vcvt.s32.f32 %v677
  %v694 = vcvt.s32.f32 %v678
  %v695 = vcvt.s32.f32 %v679
  %v696 = vcvt.s32.f32 %v680
  %v697 = vcvt.s32.f32 %v681
  %v698 = vcvt.s32.f32 %v682
  %v699 = vcvt.s32.f32 %v683
  %v700 = vcvt.s32.f32 %v684
  %v701 = vcvt.s32.f32 %v685
  %v702 = vcvt.s32.f32 %v686
  %v703 = vcvt.s32.f32 %v687
  %v704 = vcvt.s32.f32 %v688
  %v705 = vcvt.s32.f32 %v689
  %v706 = vcvt.s32.f32 %v690
  %v707 = vcvt.s32.f32 %v691
  %v708 = vcvt.s32.f32 %v692
  %v709 = vmul.f32 %v466, %v693
  %v710 = vmul.f32 %v451, %v694
  %v711 = vmul.f32 %v452, %v695
  %v712 = vmul.f32 %v453, %v696
  %v713 = vmul.f32 %v454, %v697
  %v714 = vmul.f32 %v455, %v698
  %v715 = vmul.f32 %v456, %v699
  %v716 = vmul.f32 %v457, %v700
  %v717 = vmul.f32 %v458, %v701
  %v718 = vmul.f32 %v459, %v702
  %v719 = vmul.f32 %v460, %v703
  %v720 = vmul.f32 %v461, %v704
  %v721 = vmul.f32 %v462, %v705
  %v722 = vmul.f32 %v463, %v706
  %v723 = vmul.f32 %v464, %v707
  %v724 = vmul.f32 %v465, %v708
  %v725 = vmax.f32 %v661, %v709
  %v726 = vmax.f32 %v662, %v710
  %v727 = vmax.f32 %v663, %v711
  %v728 = vmax.f32 %v664, %v712
  %v729 = vmax.f32 %v665, %v713
  %v730 = vmax.f32 %v666, %v714
  %v731 = vmax.f32 %v667, %v715
  %v732 = vmax.f32 %v668, %v716
  %v733 = vmax.f32 %v669, %v717
  %v734 = vmax.f32 %v670, %v718
  %v735 = vmax.f32 %v671, %v719
  %v736 = vmax.f32 %v672, %v720
  %v737 = vmax.f32 %v673, %v721
  %v738 = vmax.f32 %v674, %v722
  %v739 = vmax.f32 %v675, %v723
  %v740 = vmax.f32 %v676, %v724
  %v741 = vrot.slane %v451, 1
  %v742 = vrot.slane %v452, 1
  %v743 = vrot.slane %v453, 1
  %v744 = vrot.slane %v454, 1
  %v745 = vrot.slane %v455, 1
  %v746 = vrot.slane %v456, 1
  %v747 = vrot.slane %v457, 1
  %v748 = vrot.slane %v458, 1
  %v749 = vrot.slane %v459, 1
  %v750 = vrot.slane %v460, 1
  %v751 = vrot.slane %v461, 1
  %v752 = vrot.slane %v462, 1
  %v753 = vrot.slane %v463, 1
  %v754 = vrot.slane %v464, 1
  %v755 = vrot.slane %v465, 1
  %v756 = vrot.slane %v466, 1
  %vm757 = vcmp.lt.s32.totalorder %v468, 7
  %v758 = vsel %vm757, %v755, %v756
  %v759 = vsel %vm757, %v754, %v755
  %v760 = vsel %vm757, %v753, %v754
  %v761 = vsel %vm757, %v752, %v753
  %v762 = vsel %vm757, %v751, %v752
  %v763 = vsel %vm757, %v750, %v751
  %v764 = vsel %vm757, %v749, %v750
  %v765 = vsel %vm757, %v748, %v749
  %v766 = vsel %vm757, %v747, %v748
  %v767 = vsel %vm757, %v746, %v747
  %v768 = vsel %vm757, %v745, %v746
  %v769 = vsel %vm757, %v744, %v745
  %v770 = vsel %vm757, %v743, %v744
  %v771 = vsel %vm757, %v742, %v743
  %v772 = vsel %vm757, %v741, %v742
  %v773 = vsel %vm757, %v756, %v741
  %vm774 = vcmp.lt.s32.totalorder %v484, 7
  %vm775 = vcmp.lt.s32.totalorder %v485, 7
  %vm776 = vcmp.lt.s32.totalorder %v486, 7
  %vm777 = vcmp.lt.s32.totalorder %v487, 7
  %vm778 = vcmp.lt.s32.totalorder %v488, 7
  %vm779 = vcmp.lt.s32.totalorder %v489, 7
  %vm780 = vcmp.lt.s32.totalorder %v490, 7
  %vm781 = vcmp.lt.s32.totalorder %v491, 7
  %vm782 = vcmp.lt.s32.totalorder %v492, 7
  %vm783 = vcmp.lt.s32.totalorder %v493, 7
  %vm784 = vcmp.lt.s32.totalorder %v494, 7
  %vm785 = vcmp.lt.s32.totalorder %v495, 7
  %vm786 = vcmp.lt.s32.totalorder %v496, 7
  %vm787 = vcmp.lt.s32.totalorder %v497, 7
  %vm788 = vcmp.lt.s32.totalorder %v498, 7
  %vm789 = vcmp.lt.s32.totalorder %v499, 7
  %vm790 = vmand %vm565, %vm774
  %vm791 = vmand %vm566, %vm775
  %vm792 = vmand %vm567, %vm776
  %vm793 = vmand %vm568, %vm777
  %vm794 = vmand %vm569, %vm778
  %vm795 = vmand %vm570, %vm779
  %vm796 = vmand %vm571, %vm780
  %vm797 = vmand %vm572, %vm781
  %vm798 = vmand %vm573, %vm782
  %vm799 = vmand %vm574, %vm783
  %vm800 = vmand %vm575, %vm784
  %vm801 = vmand %vm576, %vm785
  %vm802 = vmand %vm577, %vm786
  %vm803 = vmand %vm578, %vm787
  %vm804 = vmand %vm579, %vm788
  %vm805 = vmand %vm580, %vm789
  %v806 = vsel %vm790, 1, 0
  %v807 = vsel %vm791, 1, 0
  %v808 = vsel %vm792, 1, 0
  %v809 = vsel %vm793, 1, 0
  %v810 = vsel %vm794, 1, 0
  %v811 = vsel %vm795, 1, 0
  %v812 = vsel %vm796, 1, 0
  %v813 = vsel %vm797, 1, 0
  %v814 = vsel %vm798, 1, 0
  %v815 = vsel %vm799, 1, 0
  %v816 = vsel %vm800, 1, 0
  %v817 = vsel %vm801, 1, 0
  %v818 = vsel %vm802, 1, 0
  %v819 = vsel %vm803, 1, 0
  %v820 = vsel %vm804, 1, 0
  %v821 = vsel %vm805, 1, 0
  %v822 = vcvt.s32.f32 %v806
  %v823 = vcvt.s32.f32 %v807
  %v824 = vcvt.s32.f32 %v808
  %v825 = vcvt.s32.f32 %v809
  %v826 = vcvt.s32.f32 %v810
  %v827 = vcvt.s32.f32 %v811
  %v828 = vcvt.s32.f32 %v812
  %v829 = vcvt.s32.f32 %v813
  %v830 = vcvt.s32.f32 %v814
  %v831 = vcvt.s32.f32 %v815
  %v832 = vcvt.s32.f32 %v816
  %v833 = vcvt.s32.f32 %v817
  %v834 = vcvt.s32.f32 %v818
  %v835 = vcvt.s32.f32 %v819
  %v836 = vcvt.s32.f32 %v820
  %v837 = vcvt.s32.f32 %v821
  %v838 = vmul.f32 %v773, %v822
  %v839 = vmul.f32 %v772, %v823
  %v840 = vmul.f32 %v771, %v824
  %v841 = vmul.f32 %v770, %v825
  %v842 = vmul.f32 %v769, %v826
  %v843 = vmul.f32 %v768, %v827
  %v844 = vmul.f32 %v767, %v828
  %v845 = vmul.f32 %v766, %v829
  %v846 = vmul.f32 %v765, %v830
  %v847 = vmul.f32 %v764, %v831
  %v848 = vmul.f32 %v763, %v832
  %v849 = vmul.f32 %v762, %v833
  %v850 = vmul.f32 %v761, %v834
  %v851 = vmul.f32 %v760, %v835
  %v852 = vmul.f32 %v759, %v836
  %v853 = vmul.f32 %v758, %v837
  %v854 = vmax.f32 %v725, %v838
  %v855 = vmax.f32 %v726, %v839
  %v856 = vmax.f32 %v727, %v840
  %v857 = vmax.f32 %v728, %v841
  %v858 = vmax.f32 %v729, %v842
  %v859 = vmax.f32 %v730, %v843
  %v860 = vmax.f32 %v731, %v844
  %v861 = vmax.f32 %v732, %v845
  %v862 = vmax.f32 %v733, %v846
  %v863 = vmax.f32 %v734, %v847
  %v864 = vmax.f32 %v735, %v848
  %v865 = vmax.f32 %v736, %v849
  %v866 = vmax.f32 %v737, %v850
  %v867 = vmax.f32 %v738, %v851
  %v868 = vmax.f32 %v739, %v852
  %v869 = vmax.f32 %v740, %v853
  %v870 = vsel %vm581, 1, 0
  %v871 = vsel %vm582, 1, 0
  %v872 = vsel %vm583, 1, 0
  %v873 = vsel %vm584, 1, 0
  %v874 = vsel %vm585, 1, 0
  %v875 = vsel %vm586, 1, 0
  %v876 = vsel %vm587, 1, 0
  %v877 = vsel %vm588, 1, 0
  %v878 = vsel %vm589, 1, 0
  %v879 = vsel %vm590, 1, 0
  %v880 = vsel %vm591, 1, 0
  %v881 = vsel %vm592, 1, 0
  %v882 = vsel %vm593, 1, 0
  %v883 = vsel %vm594, 1, 0
  %v884 = vsel %vm595, 1, 0
  %v885 = vsel %vm596, 1, 0
  %v886 = vcvt.s32.f32 %v870
  %v887 = vcvt.s32.f32 %v871
  %v888 = vcvt.s32.f32 %v872
  %v889 = vcvt.s32.f32 %v873
  %v890 = vcvt.s32.f32 %v874
  %v891 = vcvt.s32.f32 %v875
  %v892 = vcvt.s32.f32 %v876
  %v893 = vcvt.s32.f32 %v877
  %v894 = vcvt.s32.f32 %v878
  %v895 = vcvt.s32.f32 %v879
  %v896 = vcvt.s32.f32 %v880
  %v897 = vcvt.s32.f32 %v881
  %v898 = vcvt.s32.f32 %v882
  %v899 = vcvt.s32.f32 %v883
  %v900 = vcvt.s32.f32 %v884
  %v901 = vcvt.s32.f32 %v885
  %v902 = vmul.f32 %v564, %v886
  %v903 = vmul.f32 %v563, %v887
  %v904 = vmul.f32 %v562, %v888
  %v905 = vmul.f32 %v561, %v889
  %v906 = vmul.f32 %v560, %v890
  %v907 = vmul.f32 %v559, %v891
  %v908 = vmul.f32 %v558, %v892
  %v909 = vmul.f32 %v557, %v893
  %v910 = vmul.f32 %v556, %v894
  %v911 = vmul.f32 %v555, %v895
  %v912 = vmul.f32 %v554, %v896
  %v913 = vmul.f32 %v553, %v897
  %v914 = vmul.f32 %v552, %v898
  %v915 = vmul.f32 %v551, %v899
  %v916 = vmul.f32 %v550, %v900
  %v917 = vmul.f32 %v549, %v901
  %v918 = vmax.f32 %v854, %v902
  %v919 = vmax.f32 %v855, %v903
  %v920 = vmax.f32 %v856, %v904
  %v921 = vmax.f32 %v857, %v905
  %v922 = vmax.f32 %v858, %v906
  %v923 = vmax.f32 %v859, %v907
  %v924 = vmax.f32 %v860, %v908
  %v925 = vmax.f32 %v861, %v909
  %v926 = vmax.f32 %v862, %v910
  %v927 = vmax.f32 %v863, %v911
  %v928 = vmax.f32 %v864, %v912
  %v929 = vmax.f32 %v865, %v913
  %v930 = vmax.f32 %v866, %v914
  %v931 = vmax.f32 %v867, %v915
  %v932 = vmax.f32 %v868, %v916
  %v933 = vmax.f32 %v869, %v917
  %v934 = vsel %vm774, 1, 0
  %v935 = vsel %vm775, 1, 0
  %v936 = vsel %vm776, 1, 0
  %v937 = vsel %vm777, 1, 0
  %v938 = vsel %vm778, 1, 0
  %v939 = vsel %vm779, 1, 0
  %v940 = vsel %vm780, 1, 0
  %v941 = vsel %vm781, 1, 0
  %v942 = vsel %vm782, 1, 0
  %v943 = vsel %vm783, 1, 0
  %v944 = vsel %vm784, 1, 0
  %v945 = vsel %vm785, 1, 0
  %v946 = vsel %vm786, 1, 0
  %v947 = vsel %vm787, 1, 0
  %v948 = vsel %vm788, 1, 0
  %v949 = vsel %vm789, 1, 0
  %v950 = vcvt.s32.f32 %v934
  %v951 = vcvt.s32.f32 %v935
  %v952 = vcvt.s32.f32 %v936
  %v953 = vcvt.s32.f32 %v937
  %v954 = vcvt.s32.f32 %v938
  %v955 = vcvt.s32.f32 %v939
  %v956 = vcvt.s32.f32 %v940
  %v957 = vcvt.s32.f32 %v941
  %v958 = vcvt.s32.f32 %v942
  %v959 = vcvt.s32.f32 %v943
  %v960 = vcvt.s32.f32 %v944
  %v961 = vcvt.s32.f32 %v945
  %v962 = vcvt.s32.f32 %v946
  %v963 = vcvt.s32.f32 %v947
  %v964 = vcvt.s32.f32 %v948
  %v965 = vcvt.s32.f32 %v949
  %v966 = vmul.f32 %v772, %v950
  %v967 = vmul.f32 %v771, %v951
  %v968 = vmul.f32 %v770, %v952
  %v969 = vmul.f32 %v769, %v953
  %v970 = vmul.f32 %v768, %v954
  %v971 = vmul.f32 %v767, %v955
  %v972 = vmul.f32 %v766, %v956
  %v973 = vmul.f32 %v765, %v957
  %v974 = vmul.f32 %v764, %v958
  %v975 = vmul.f32 %v763, %v959
  %v976 = vmul.f32 %v762, %v960
  %v977 = vmul.f32 %v761, %v961
  %v978 = vmul.f32 %v760, %v962
  %v979 = vmul.f32 %v759, %v963
  %v980 = vmul.f32 %v758, %v964
  %v981 = vmul.f32 %v773, %v965
  %v982 = vmax.f32 %v918, %v966
  %v983 = vmax.f32 %v919, %v967
  %v984 = vmax.f32 %v920, %v968
  %v985 = vmax.f32 %v921, %v969
  %v986 = vmax.f32 %v922, %v970
  %v987 = vmax.f32 %v923, %v971
  %v988 = vmax.f32 %v924, %v972
  %v989 = vmax.f32 %v925, %v973
  %v990 = vmax.f32 %v926, %v974
  %v991 = vmax.f32 %v927, %v975
  %v992 = vmax.f32 %v928, %v976
  %v993 = vmax.f32 %v929, %v977
  %v994 = vmax.f32 %v930, %v978
  %v995 = vmax.f32 %v931, %v979
  %v996 = vmax.f32 %v932, %v980
  %v997 = vmax.f32 %v933, %v981
  %vm998 = vcmp.lt.s32.totalorder %v516, 7
  %vm999 = vcmp.lt.s32.totalorder %v517, 7
  %vm1000 = vcmp.lt.s32.totalorder %v518, 7
  %vm1001 = vcmp.lt.s32.totalorder %v519, 7
  %vm1002 = vcmp.lt.s32.totalorder %v520, 7
  %vm1003 = vcmp.lt.s32.totalorder %v521, 7
  %vm1004 = vcmp.lt.s32.totalorder %v522, 7
  %vm1005 = vcmp.lt.s32.totalorder %v523, 7
  %vm1006 = vcmp.lt.s32.totalorder %v524, 7
  %vm1007 = vcmp.lt.s32.totalorder %v525, 7
  %vm1008 = vcmp.lt.s32.totalorder %v526, 7
  %vm1009 = vcmp.lt.s32.totalorder %v527, 7
  %vm1010 = vcmp.lt.s32.totalorder %v528, 7
  %vm1011 = vcmp.lt.s32.totalorder %v529, 7
  %vm1012 = vcmp.lt.s32.totalorder %v530, 7
  %vm1013 = vcmp.lt.s32.totalorder %v531, 7
  %vm1014 = vmand %vm998, %vm581
  %vm1015 = vmand %vm999, %vm582
  %vm1016 = vmand %vm1000, %vm583
  %vm1017 = vmand %vm1001, %vm584
  %vm1018 = vmand %vm1002, %vm585
  %vm1019 = vmand %vm1003, %vm586
  %vm1020 = vmand %vm1004, %vm587
  %vm1021 = vmand %vm1005, %vm588
  %vm1022 = vmand %vm1006, %vm589
  %vm1023 = vmand %vm1007, %vm590
  %vm1024 = vmand %vm1008, %vm591
  %vm1025 = vmand %vm1009, %vm592
  %vm1026 = vmand %vm1010, %vm593
  %vm1027 = vmand %vm1011, %vm594
  %vm1028 = vmand %vm1012, %vm595
  %vm1029 = vmand %vm1013, %vm596
  %v1030 = vsel %vm1014, 1, 0
  %v1031 = vsel %vm1015, 1, 0
  %v1032 = vsel %vm1016, 1, 0
  %v1033 = vsel %vm1017, 1, 0
  %v1034 = vsel %vm1018, 1, 0
  %v1035 = vsel %vm1019, 1, 0
  %v1036 = vsel %vm1020, 1, 0
  %v1037 = vsel %vm1021, 1, 0
  %v1038 = vsel %vm1022, 1, 0
  %v1039 = vsel %vm1023, 1, 0
  %v1040 = vsel %vm1024, 1, 0
  %v1041 = vsel %vm1025, 1, 0
  %v1042 = vsel %vm1026, 1, 0
  %v1043 = vsel %vm1027, 1, 0
  %v1044 = vsel %vm1028, 1, 0
  %v1045 = vsel %vm1029, 1, 0
  %v1046 = vcvt.s32.f32 %v1030
  %v1047 = vcvt.s32.f32 %v1031
  %v1048 = vcvt.s32.f32 %v1032
  %v1049 = vcvt.s32.f32 %v1033
  %v1050 = vcvt.s32.f32 %v1034
  %v1051 = vcvt.s32.f32 %v1035
  %v1052 = vcvt.s32.f32 %v1036
  %v1053 = vcvt.s32.f32 %v1037
  %v1054 = vcvt.s32.f32 %v1038
  %v1055 = vcvt.s32.f32 %v1039
  %v1056 = vcvt.s32.f32 %v1040
  %v1057 = vcvt.s32.f32 %v1041
  %v1058 = vcvt.s32.f32 %v1042
  %v1059 = vcvt.s32.f32 %v1043
  %v1060 = vcvt.s32.f32 %v1044
  %v1061 = vcvt.s32.f32 %v1045
  %v1062 = vmul.f32 %v563, %v1046
  %v1063 = vmul.f32 %v562, %v1047
  %v1064 = vmul.f32 %v561, %v1048
  %v1065 = vmul.f32 %v560, %v1049
  %v1066 = vmul.f32 %v559, %v1050
  %v1067 = vmul.f32 %v558, %v1051
  %v1068 = vmul.f32 %v557, %v1052
  %v1069 = vmul.f32 %v556, %v1053
  %v1070 = vmul.f32 %v555, %v1054
  %v1071 = vmul.f32 %v554, %v1055
  %v1072 = vmul.f32 %v553, %v1056
  %v1073 = vmul.f32 %v552, %v1057
  %v1074 = vmul.f32 %v551, %v1058
  %v1075 = vmul.f32 %v550, %v1059
  %v1076 = vmul.f32 %v549, %v1060
  %v1077 = vmul.f32 %v564, %v1061
  %v1078 = vmax.f32 %v982, %v1062
  %v1079 = vmax.f32 %v983, %v1063
  %v1080 = vmax.f32 %v984, %v1064
  %v1081 = vmax.f32 %v985, %v1065
  %v1082 = vmax.f32 %v986, %v1066
  %v1083 = vmax.f32 %v987, %v1067
  %v1084 = vmax.f32 %v988, %v1068
  %v1085 = vmax.f32 %v989, %v1069
  %v1086 = vmax.f32 %v990, %v1070
  %v1087 = vmax.f32 %v991, %v1071
  %v1088 = vmax.f32 %v992, %v1072
  %v1089 = vmax.f32 %v993, %v1073
  %v1090 = vmax.f32 %v994, %v1074
  %v1091 = vmax.f32 %v995, %v1075
  %v1092 = vmax.f32 %v996, %v1076
  %v1093 = vmax.f32 %v997, %v1077
  %v1094 = vsel %vm998, 1, 0
  %v1095 = vsel %vm999, 1, 0
  %v1096 = vsel %vm1000, 1, 0
  %v1097 = vsel %vm1001, 1, 0
  %v1098 = vsel %vm1002, 1, 0
  %v1099 = vsel %vm1003, 1, 0
  %v1100 = vsel %vm1004, 1, 0
  %v1101 = vsel %vm1005, 1, 0
  %v1102 = vsel %vm1006, 1, 0
  %v1103 = vsel %vm1007, 1, 0
  %v1104 = vsel %vm1008, 1, 0
  %v1105 = vsel %vm1009, 1, 0
  %v1106 = vsel %vm1010, 1, 0
  %v1107 = vsel %vm1011, 1, 0
  %v1108 = vsel %vm1012, 1, 0
  %v1109 = vsel %vm1013, 1, 0
  %v1110 = vcvt.s32.f32 %v1094
  %v1111 = vcvt.s32.f32 %v1095
  %v1112 = vcvt.s32.f32 %v1096
  %v1113 = vcvt.s32.f32 %v1097
  %v1114 = vcvt.s32.f32 %v1098
  %v1115 = vcvt.s32.f32 %v1099
  %v1116 = vcvt.s32.f32 %v1100
  %v1117 = vcvt.s32.f32 %v1101
  %v1118 = vcvt.s32.f32 %v1102
  %v1119 = vcvt.s32.f32 %v1103
  %v1120 = vcvt.s32.f32 %v1104
  %v1121 = vcvt.s32.f32 %v1105
  %v1122 = vcvt.s32.f32 %v1106
  %v1123 = vcvt.s32.f32 %v1107
  %v1124 = vcvt.s32.f32 %v1108
  %v1125 = vcvt.s32.f32 %v1109
  %v1126 = vmul.f32 %v452, %v1110
  %v1127 = vmul.f32 %v453, %v1111
  %v1128 = vmul.f32 %v454, %v1112
  %v1129 = vmul.f32 %v455, %v1113
  %v1130 = vmul.f32 %v456, %v1114
  %v1131 = vmul.f32 %v457, %v1115
  %v1132 = vmul.f32 %v458, %v1116
  %v1133 = vmul.f32 %v459, %v1117
  %v1134 = vmul.f32 %v460, %v1118
  %v1135 = vmul.f32 %v461, %v1119
  %v1136 = vmul.f32 %v462, %v1120
  %v1137 = vmul.f32 %v463, %v1121
  %v1138 = vmul.f32 %v464, %v1122
  %v1139 = vmul.f32 %v465, %v1123
  %v1140 = vmul.f32 %v466, %v1124
  %v1141 = vmul.f32 %v451, %v1125
  %v1142 = vmax.f32 %v1078, %v1126
  %v1143 = vmax.f32 %v1079, %v1127
  %v1144 = vmax.f32 %v1080, %v1128
  %v1145 = vmax.f32 %v1081, %v1129
  %v1146 = vmax.f32 %v1082, %v1130
  %v1147 = vmax.f32 %v1083, %v1131
  %v1148 = vmax.f32 %v1084, %v1132
  %v1149 = vmax.f32 %v1085, %v1133
  %v1150 = vmax.f32 %v1086, %v1134
  %v1151 = vmax.f32 %v1087, %v1135
  %v1152 = vmax.f32 %v1088, %v1136
  %v1153 = vmax.f32 %v1089, %v1137
  %v1154 = vmax.f32 %v1090, %v1138
  %v1155 = vmax.f32 %v1091, %v1139
  %v1156 = vmax.f32 %v1092, %v1140
  %v1157 = vmax.f32 %v1093, %v1141
  %vm1158 = vmand %vm998, %vm774
  %vm1159 = vmand %vm999, %vm775
  %vm1160 = vmand %vm1000, %vm776
  %vm1161 = vmand %vm1001, %vm777
  %vm1162 = vmand %vm1002, %vm778
  %vm1163 = vmand %vm1003, %vm779
  %vm1164 = vmand %vm1004, %vm780
  %vm1165 = vmand %vm1005, %vm781
  %vm1166 = vmand %vm1006, %vm782
  %vm1167 = vmand %vm1007, %vm783
  %vm1168 = vmand %vm1008, %vm784
  %vm1169 = vmand %vm1009, %vm785
  %vm1170 = vmand %vm1010, %vm786
  %vm1171 = vmand %vm1011, %vm787
  %vm1172 = vmand %vm1012, %vm788
  %vm1173 = vmand %vm1013, %vm789
  %v1174 = vsel %vm1158, 1, 0
  %v1175 = vsel %vm1159, 1, 0
  %v1176 = vsel %vm1160, 1, 0
  %v1177 = vsel %vm1161, 1, 0
  %v1178 = vsel %vm1162, 1, 0
  %v1179 = vsel %vm1163, 1, 0
  %v1180 = vsel %vm1164, 1, 0
  %v1181 = vsel %vm1165, 1, 0
  %v1182 = vsel %vm1166, 1, 0
  %v1183 = vsel %vm1167, 1, 0
  %v1184 = vsel %vm1168, 1, 0
  %v1185 = vsel %vm1169, 1, 0
  %v1186 = vsel %vm1170, 1, 0
  %v1187 = vsel %vm1171, 1, 0
  %v1188 = vsel %vm1172, 1, 0
  %v1189 = vsel %vm1173, 1, 0
  %v1190 = vcvt.s32.f32 %v1174
  %v1191 = vcvt.s32.f32 %v1175
  %v1192 = vcvt.s32.f32 %v1176
  %v1193 = vcvt.s32.f32 %v1177
  %v1194 = vcvt.s32.f32 %v1178
  %v1195 = vcvt.s32.f32 %v1179
  %v1196 = vcvt.s32.f32 %v1180
  %v1197 = vcvt.s32.f32 %v1181
  %v1198 = vcvt.s32.f32 %v1182
  %v1199 = vcvt.s32.f32 %v1183
  %v1200 = vcvt.s32.f32 %v1184
  %v1201 = vcvt.s32.f32 %v1185
  %v1202 = vcvt.s32.f32 %v1186
  %v1203 = vcvt.s32.f32 %v1187
  %v1204 = vcvt.s32.f32 %v1188
  %v1205 = vcvt.s32.f32 %v1189
  %v1206 = vmul.f32 %v771, %v1190
  %v1207 = vmul.f32 %v770, %v1191
  %v1208 = vmul.f32 %v769, %v1192
  %v1209 = vmul.f32 %v768, %v1193
  %v1210 = vmul.f32 %v767, %v1194
  %v1211 = vmul.f32 %v766, %v1195
  %v1212 = vmul.f32 %v765, %v1196
  %v1213 = vmul.f32 %v764, %v1197
  %v1214 = vmul.f32 %v763, %v1198
  %v1215 = vmul.f32 %v762, %v1199
  %v1216 = vmul.f32 %v761, %v1200
  %v1217 = vmul.f32 %v760, %v1201
  %v1218 = vmul.f32 %v759, %v1202
  %v1219 = vmul.f32 %v758, %v1203
  %v1220 = vmul.f32 %v773, %v1204
  %v1221 = vmul.f32 %v772, %v1205
  %v1222 = vmax.f32 %v1142, %v1206
  %v1223 = vmax.f32 %v1143, %v1207
  %v1224 = vmax.f32 %v1144, %v1208
  %v1225 = vmax.f32 %v1145, %v1209
  %v1226 = vmax.f32 %v1146, %v1210
  %v1227 = vmax.f32 %v1147, %v1211
  %v1228 = vmax.f32 %v1148, %v1212
  %v1229 = vmax.f32 %v1149, %v1213
  %v1230 = vmax.f32 %v1150, %v1214
  %v1231 = vmax.f32 %v1151, %v1215
  %v1232 = vmax.f32 %v1152, %v1216
  %v1233 = vmax.f32 %v1153, %v1217
  %v1234 = vmax.f32 %v1154, %v1218
  %v1235 = vmax.f32 %v1155, %v1219
  %v1236 = vmax.f32 %v1156, %v1220
  %v1237 = vmax.f32 %v1157, %v1221
  %v1238 = vld [vmem:[%s93] sm:$0xf]
  %v1239 = vld [vmem:[%s93 + $0x4] sm:$0xf]
  %v1240 = vld [vmem:[%s93 + $0x8] sm:$0xf]
  %v1241 = vld [vmem:[%s93 + $0xc] sm:$0xf]
  %v1242 = vpack.c.bf16 %v1223, %v1222
  %v1243 = vpack.c.bf16 %v1225, %v1224
  %v1244 = vpack.c.bf16 %v1227, %v1226
  %v1245 = vpack.c.bf16 %v1229, %v1228
  %v1246 = vpack.c.bf16 %v1231, %v1230
  %v1247 = vpack.c.bf16 %v1233, %v1232
  %v1248 = vpack.c.bf16 %v1235, %v1234
  %v1249 = vpack.c.bf16 %v1237, %v1236
  %v1254 = vunpack.c.l.b16 %v1238
  %v1255 = vunpack.c.l.b16 %v1239
  %v1256 = vunpack.c.l.b16 %v1240
  %v1257 = vunpack.c.l.b16 %v1241
  %v1258 = vpack.c.b16 %v1255, %v1254
  %v1259 = vpack.c.b16 %v1257, %v1256
  %1262 = vmatprep.subr.bf16.mxu0 0
  %1263 = vmatpush1.bf16.msra.mxu0 %v1249
  %1264 = vmatprep.subr.bf16.mxu0 0
  %1265 = vmatpush1.bf16.msra.mxu0 %v1248
  %1266 = vmatprep.subr.bf16.mxu0 0
  %1267 = vmatpush1.bf16.msra.mxu0 %v1247
  %1268 = vmatprep.subr.bf16.mxu0 0
  %1269 = vmatpush1.bf16.msra.mxu0 %v1246
  %1270 = vmatprep.subr.bf16.mxu0 0
  %1271 = vmatpush1.bf16.msra.mxu0 %v1245
  %1272 = vmatprep.subr.bf16.mxu0 0
  %1273 = vmatpush1.bf16.msra.mxu0 %v1244
  %1274 = vmatprep.subr.bf16.mxu0 0
  %1275 = vmatpush1.bf16.msra.mxu0 %v1243
  %1276 = vmatprep.subr.bf16.mxu0 0
  %1277 = vmatpush1.bf16.msra.mxu0 %v1242
  %1278 = vmatprep.subr.bf16.mxu0 0
  %1279 = vmatpush2.bf16.msra.mxu0 0
  %1280 = vmatprep.subr.bf16.mxu0 0
  %1281 = vmatpush2.bf16.msra.mxu0 0
  %1282 = vmatprep.subr.bf16.mxu0 0
  %1283 = vmatpush2.bf16.msra.mxu0 0
  %1284 = vmatprep.subr.bf16.mxu0 0
  %1285 = vmatpush2.bf16.msra.mxu0 0
  %1286 = vmatprep.subr.bf16.mxu0 0
  %1287 = vmatpush2.bf16.msra.mxu0 0
  %1288 = vmatprep.subr.bf16.mxu0 0
  %1289 = vmatpush2.bf16.msra.mxu0 0
  %1290 = vmatprep.subr.bf16.mxu0 0
  %1291 = vmatpush2.bf16.msra.mxu0 0
  %1292 = vmatprep.subr.bf16.mxu0 0
  %1293 = vmatpush2.bf16.msra.mxu0 0
  %1294 = vmatprep.mubr.bf16.mxu0 0
  %1295 = vmatmul.mubr.bf16.gmra.mxu0 %v1258
  %v1296 = vpop.f32.mrf.mxu0
  %v1297 = vadd.f32 0.0, %v1296
  %v1298 = vpop.f32.mrf.mxu0
  %v1299 = vpop.f32.mrf.mxu0
  %v1300 = vadd.f32 0.0, %v1299
  %v1301 = vpop.f32.mrf.mxu0
  %1302 = vmatprep.mubr.bf16.mxu0 0
  %1303 = vmatmul.mubr.bf16.gmra.mxu0 %v1259
  %v1304 = vpop.f32.mrf.mxu0
  %v1305 = vadd.f32 0.0, %v1304
  %v1306 = vpop.f32.mrf.mxu0
  %v1307 = vpop.f32.mrf.mxu0
  %v1308 = vadd.f32 0.0, %v1307
  %v1309 = vpop.f32.mrf.mxu0
  %1310 = vdwg.mxu0
  %v1311 = vand.u32 %v468, 3
  %v1312 = vand.u32 %v469, 3
  %v1313 = vand.u32 %v470, 3
  %v1314 = vand.u32 %v471, 3
  %v1315 = vand.u32 %v468, 15
  %v1316 = vand.u32 %v469, 15
  %v1317 = vand.u32 %v470, 15
  %v1318 = vand.u32 %v471, 15
  %v1319 = vshra.s32 %v1315, 2
  %v1320 = vshra.s32 %v1316, 2
  %v1321 = vshra.s32 %v1317, 2
  %v1322 = vshra.s32 %v1318, 2
  %v1323 = vrot.slane %v1297, 3
  %v1324 = vrot.slane %v1300, 3
  %v1325 = vrot.slane %v1305, 3
  %v1326 = vrot.slane %v1308, 3
  %vm1327 = vcmp.lt.s32.totalorder %v468, 5
  %v1328 = vsel %vm1327, %v1325, %v1326
  %v1329 = vsel %vm1327, %v1324, %v1325
  %v1330 = vsel %vm1327, %v1323, %v1324
  %v1331 = vsel %vm1327, %v1326, %v1323
  %vm1332 = vcmp.ge.s32.totalorder %v1319, 1
  %vm1333 = vcmp.ge.s32.totalorder %v1320, 1
  %vm1334 = vcmp.ge.s32.totalorder %v1321, 1
  %vm1335 = vcmp.ge.s32.totalorder %v1322, 1
  %vm1336 = vcmp.ge.s32.totalorder %v1311, 1
  %vm1337 = vcmp.ge.s32.totalorder %v1312, 1
  %vm1338 = vcmp.ge.s32.totalorder %v1313, 1
  %vm1339 = vcmp.ge.s32.totalorder %v1314, 1
  %vm1340 = vmand %vm1332, %vm1336
  %vm1341 = vmand %vm1333, %vm1337
  %vm1342 = vmand %vm1334, %vm1338
  %vm1343 = vmand %vm1335, %vm1339
  %v1344 = vsel %vm1340, 1, 0
  %v1345 = vsel %vm1341, 1, 0
  %v1346 = vsel %vm1342, 1, 0
  %v1347 = vsel %vm1343, 1, 0
  %v1348 = vcvt.s32.f32 %v1344
  %v1349 = vcvt.s32.f32 %v1345
  %v1350 = vcvt.s32.f32 %v1346
  %v1351 = vcvt.s32.f32 %v1347
  %v1352 = vmul.f32 %v1331, %v1348
  %v1353 = vmul.f32 %v1330, %v1349
  %v1354 = vmul.f32 %v1329, %v1350
  %v1355 = vmul.f32 %v1328, %v1351
  %v1356 = vrot.slane %v1297, 4
  %v1357 = vrot.slane %v1300, 4
  %v1358 = vrot.slane %v1305, 4
  %v1359 = vrot.slane %v1308, 4
  %vm1360 = vcmp.lt.s32.totalorder %v468, 4
  %v1361 = vsel %vm1360, %v1358, %v1359
  %v1362 = vsel %vm1360, %v1357, %v1358
  %v1363 = vsel %vm1360, %v1356, %v1357
  %v1364 = vsel %vm1360, %v1359, %v1356
  %v1365 = vsel %vm1332, 1, 0
  %v1366 = vsel %vm1333, 1, 0
  %v1367 = vsel %vm1334, 1, 0
  %v1368 = vsel %vm1335, 1, 0
  %v1369 = vcvt.s32.f32 %v1365
  %v1370 = vcvt.s32.f32 %v1366
  %v1371 = vcvt.s32.f32 %v1367
  %v1372 = vcvt.s32.f32 %v1368
  %v1373 = vmul.f32 %v1364, %v1369
  %v1374 = vmul.f32 %v1363, %v1370
  %v1375 = vmul.f32 %v1362, %v1371
  %v1376 = vmul.f32 %v1361, %v1372
  %1377 = vrot.lane.b32.xlu0 %v1373, 16
  %v1378 = vpop.permute.xlu0 %1377
  %1379 = vrot.lane.b32.xlu0 %v1374, 16
  %v1380 = vpop.permute.xlu0 %1379
  %1381 = vrot.lane.b32.xlu0 %v1375, 16
  %v1382 = vpop.permute.xlu0 %1381
  %1383 = vrot.lane.b32.xlu0 %v1376, 16
  %v1384 = vpop.permute.xlu0 %1383
  %v1385 = vadd.f32 %v1352, %v1378
  %v1386 = vadd.f32 %v1353, %v1380
  %v1387 = vadd.f32 %v1354, %v1382
  %v1388 = vadd.f32 %v1355, %v1384
  %v1389 = vrot.slane %v1297, 5
  %v1390 = vrot.slane %v1300, 5
  %v1391 = vrot.slane %v1305, 5
  %v1392 = vrot.slane %v1308, 5
  %vm1393 = vcmp.lt.s32.totalorder %v468, 3
  %v1394 = vsel %vm1393, %v1391, %v1392
  %v1395 = vsel %vm1393, %v1390, %v1391
  %v1396 = vsel %vm1393, %v1389, %v1390
  %v1397 = vsel %vm1393, %v1392, %v1389
  %vm1398 = vcmp.lt.s32.totalorder %v1311, 3
  %vm1399 = vcmp.lt.s32.totalorder %v1312, 3
  %vm1400 = vcmp.lt.s32.totalorder %v1313, 3
  %vm1401 = vcmp.lt.s32.totalorder %v1314, 3
  %vm1402 = vmand %vm1332, %vm1398
  %vm1403 = vmand %vm1333, %vm1399
  %vm1404 = vmand %vm1334, %vm1400
  %vm1405 = vmand %vm1335, %vm1401
  %v1406 = vsel %vm1402, 1, 0
  %v1407 = vsel %vm1403, 1, 0
  %v1408 = vsel %vm1404, 1, 0
  %v1409 = vsel %vm1405, 1, 0
  %v1410 = vcvt.s32.f32 %v1406
  %v1411 = vcvt.s32.f32 %v1407
  %v1412 = vcvt.s32.f32 %v1408
  %v1413 = vcvt.s32.f32 %v1409
  %v1414 = vmul.f32 %v1397, %v1410
  %v1415 = vmul.f32 %v1396, %v1411
  %v1416 = vmul.f32 %v1395, %v1412
  %v1417 = vmul.f32 %v1394, %v1413
  %1418 = vrot.lane.b32.xlu0 %v1414, 32
  %v1419 = vpop.permute.xlu0 %1418
  %1420 = vrot.lane.b32.xlu0 %v1415, 32
  %v1421 = vpop.permute.xlu0 %1420
  %1422 = vrot.lane.b32.xlu0 %v1416, 32
  %v1423 = vpop.permute.xlu0 %1422
  %1424 = vrot.lane.b32.xlu0 %v1417, 32
  %v1425 = vpop.permute.xlu0 %1424
  %v1426 = vadd.f32 %v1385, %v1419
  %v1427 = vadd.f32 %v1386, %v1421
  %v1428 = vadd.f32 %v1387, %v1423
  %v1429 = vadd.f32 %v1388, %v1425
  %v1430 = vrot.slane %v1297, 7
  %v1431 = vrot.slane %v1300, 7
  %v1432 = vrot.slane %v1305, 7
  %v1433 = vrot.slane %v1308, 7
  %v1434 = vsel %vm548, %v1432, %v1433
  %v1435 = vsel %vm548, %v1431, %v1432
  %v1436 = vsel %vm548, %v1430, %v1431
  %v1437 = vsel %vm548, %v1433, %v1430
  %v1438 = vsel %vm1336, 1, 0
  %v1439 = vsel %vm1337, 1, 0
  %v1440 = vsel %vm1338, 1, 0
  %v1441 = vsel %vm1339, 1, 0
  %v1442 = vcvt.s32.f32 %v1438
  %v1443 = vcvt.s32.f32 %v1439
  %v1444 = vcvt.s32.f32 %v1440
  %v1445 = vcvt.s32.f32 %v1441
  %v1446 = vmul.f32 %v1437, %v1442
  %v1447 = vmul.f32 %v1436, %v1443
  %v1448 = vmul.f32 %v1435, %v1444
  %v1449 = vmul.f32 %v1434, %v1445
  %1450 = vrot.lane.b32.xlu0 %v1446, 48
  %v1451 = vpop.permute.xlu0 %1450
  %1452 = vrot.lane.b32.xlu0 %v1447, 48
  %v1453 = vpop.permute.xlu0 %1452
  %1454 = vrot.lane.b32.xlu0 %v1448, 48
  %v1455 = vpop.permute.xlu0 %1454
  %1456 = vrot.lane.b32.xlu0 %v1449, 48
  %v1457 = vpop.permute.xlu0 %1456
  %v1458 = vadd.f32 %v1426, %v1451
  %v1459 = vadd.f32 %v1427, %v1453
  %v1460 = vadd.f32 %v1428, %v1455
  %v1461 = vadd.f32 %v1429, %v1457
  %1462 = vrot.lane.b32.xlu0 %v1297, 64
  %v1463 = vpop.permute.xlu0 %1462
  %1464 = vrot.lane.b32.xlu0 %v1300, 64
  %v1465 = vpop.permute.xlu0 %1464
  %1466 = vrot.lane.b32.xlu0 %v1305, 64
  %v1467 = vpop.permute.xlu0 %1466
  %1468 = vrot.lane.b32.xlu0 %v1308, 64
  %v1469 = vpop.permute.xlu0 %1468
  %v1470 = vadd.f32 %v1458, %v1463
  %v1471 = vadd.f32 %v1459, %v1465
  %v1472 = vadd.f32 %v1460, %v1467
  %v1473 = vadd.f32 %v1461, %v1469
  %v1474 = vrot.slane %v1297, 1
  %v1475 = vrot.slane %v1300, 1
  %v1476 = vrot.slane %v1305, 1
  %v1477 = vrot.slane %v1308, 1
  %v1478 = vsel %vm757, %v1476, %v1477
  %v1479 = vsel %vm757, %v1475, %v1476
  %v1480 = vsel %vm757, %v1474, %v1475
  %v1481 = vsel %vm757, %v1477, %v1474
  %v1482 = vsel %vm1398, 1, 0
  %v1483 = vsel %vm1399, 1, 0
  %v1484 = vsel %vm1400, 1, 0
  %v1485 = vsel %vm1401, 1, 0
  %v1486 = vcvt.s32.f32 %v1482
  %v1487 = vcvt.s32.f32 %v1483
  %v1488 = vcvt.s32.f32 %v1484
  %v1489 = vcvt.s32.f32 %v1485
  %v1490 = vmul.f32 %v1480, %v1486
  %v1491 = vmul.f32 %v1479, %v1487
  %v1492 = vmul.f32 %v1478, %v1488
  %v1493 = vmul.f32 %v1481, %v1489
  %1494 = vrot.lane.b32.xlu0 %v1490, 80
  %v1495 = vpop.permute.xlu0 %1494
  %1496 = vrot.lane.b32.xlu0 %v1491, 80
  %v1497 = vpop.permute.xlu0 %1496
  %1498 = vrot.lane.b32.xlu0 %v1492, 80
  %v1499 = vpop.permute.xlu0 %1498
  %1500 = vrot.lane.b32.xlu0 %v1493, 80
  %v1501 = vpop.permute.xlu0 %1500
  %v1502 = vadd.f32 %v1470, %v1495
  %v1503 = vadd.f32 %v1471, %v1497
  %v1504 = vadd.f32 %v1472, %v1499
  %v1505 = vadd.f32 %v1473, %v1501
  %vm1506 = vcmp.lt.s32.totalorder %v1319, 3
  %vm1507 = vcmp.lt.s32.totalorder %v1320, 3
  %vm1508 = vcmp.lt.s32.totalorder %v1321, 3
  %vm1509 = vcmp.lt.s32.totalorder %v1322, 3
  %vm1510 = vmand %vm1506, %vm1336
  %vm1511 = vmand %vm1507, %vm1337
  %vm1512 = vmand %vm1508, %vm1338
  %vm1513 = vmand %vm1509, %vm1339
  %v1514 = vsel %vm1510, 1, 0
  %v1515 = vsel %vm1511, 1, 0
  %v1516 = vsel %vm1512, 1, 0
  %v1517 = vsel %vm1513, 1, 0
  %v1518 = vcvt.s32.f32 %v1514
  %v1519 = vcvt.s32.f32 %v1515
  %v1520 = vcvt.s32.f32 %v1516
  %v1521 = vcvt.s32.f32 %v1517
  %v1522 = vmul.f32 %v1330, %v1518
  %v1523 = vmul.f32 %v1329, %v1519
  %v1524 = vmul.f32 %v1328, %v1520
  %v1525 = vmul.f32 %v1331, %v1521
  %1526 = vrot.lane.b32.xlu0 %v1522, 96
  %v1527 = vpop.permute.xlu0 %1526
  %1528 = vrot.lane.b32.xlu0 %v1523, 96
  %v1529 = vpop.permute.xlu0 %1528
  %1530 = vrot.lane.b32.xlu0 %v1524, 96
  %v1531 = vpop.permute.xlu0 %1530
  %1532 = vrot.lane.b32.xlu0 %v1525, 96
  %v1533 = vpop.permute.xlu0 %1532
  %v1534 = vadd.f32 %v1502, %v1527
  %v1535 = vadd.f32 %v1503, %v1529
  %v1536 = vadd.f32 %v1504, %v1531
  %v1537 = vadd.f32 %v1505, %v1533
  %v1538 = vsel %vm1506, 1, 0
  %v1539 = vsel %vm1507, 1, 0
  %v1540 = vsel %vm1508, 1, 0
  %v1541 = vsel %vm1509, 1, 0
  %v1542 = vcvt.s32.f32 %v1538
  %v1543 = vcvt.s32.f32 %v1539
  %v1544 = vcvt.s32.f32 %v1540
  %v1545 = vcvt.s32.f32 %v1541
  %v1546 = vmul.f32 %v1363, %v1542
  %v1547 = vmul.f32 %v1362, %v1543
  %v1548 = vmul.f32 %v1361, %v1544
  %v1549 = vmul.f32 %v1364, %v1545
  %1550 = vrot.lane.b32.xlu0 %v1546, 112
  %v1551 = vpop.permute.xlu0 %1550
  %1552 = vrot.lane.b32.xlu0 %v1547, 112
  %v1553 = vpop.permute.xlu0 %1552
  %1554 = vrot.lane.b32.xlu0 %v1548, 112
  %v1555 = vpop.permute.xlu0 %1554
  %1556 = vrot.lane.b32.xlu0 %v1549, 112
  %v1557 = vpop.permute.xlu0 %1556
  %v1558 = vadd.f32 %v1534, %v1551
  %v1559 = vadd.f32 %v1535, %v1553
  %v1560 = vadd.f32 %v1536, %v1555
  %v1561 = vadd.f32 %v1537, %v1557
  %vm1562 = vmand %vm1506, %vm1398
  %vm1563 = vmand %vm1507, %vm1399
  %vm1564 = vmand %vm1508, %vm1400
  %vm1565 = vmand %vm1509, %vm1401
  %v1566 = vsel %vm1562, 1, 0
  %v1567 = vsel %vm1563, 1, 0
  %v1568 = vsel %vm1564, 1, 0
  %v1569 = vsel %vm1565, 1, 0
  %v1570 = vcvt.s32.f32 %v1566
  %v1571 = vcvt.s32.f32 %v1567
  %v1572 = vcvt.s32.f32 %v1568
  %v1573 = vcvt.s32.f32 %v1569
  %v1574 = vmul.f32 %v1396, %v1570
  %v1575 = vmul.f32 %v1395, %v1571
  %v1576 = vmul.f32 %v1394, %v1572
  %v1577 = vmul.f32 %v1397, %v1573
  %v1578 = vpack.c.bf16 %v1559, %v1558
  %v1579 = vpack.c.bf16 %v1561, %v1560
  %v1580 = vpack.c.bf16 %v1575, %v1574
  %v1581 = vpack.c.bf16 %v1577, %v1576
  %v1582 = vld [vmem:[%s5] sm:$0xf]
  %v1583 = vld [vmem:[%s5 + $0x4] sm:$0xf]
  %v1584 = vld [vmem:[%s5 + $0x8] sm:$0xf]
  %v1585 = vld [vmem:[%s5 + $0xc] sm:$0xf]
  %v1586 = vld [vmem:[%s5 + $0x10] sm:$0xf]
  %v1587 = vld [vmem:[%s5 + $0x14] sm:$0xf]
  %v1588 = vld [vmem:[%s5 + $0x18] sm:$0xf]
  %v1589 = vld [vmem:[%s5 + $0x1c] sm:$0xf]
  %v1590 = vld [vmem:[%s5 + $0x20] sm:$0xf]
  %v1591 = vld [vmem:[%s5 + $0x24] sm:$0xf]
  %v1592 = vld [vmem:[%s5 + $0x28] sm:$0xf]
  %v1593 = vld [vmem:[%s5 + $0x2c] sm:$0xf]
  %v1594 = vld [vmem:[%s5 + $0x30] sm:$0xf]
  %v1595 = vld [vmem:[%s5 + $0x34] sm:$0xf]
  %v1596 = vld [vmem:[%s5 + $0x38] sm:$0xf]
  %v1597 = vld [vmem:[%s5 + $0x3c] sm:$0xf]
  %v1598 = vld [vmem:[%s5 + $0x40] sm:$0xf]
  %v1599 = vld [vmem:[%s5 + $0x44] sm:$0xf]
  %v1600 = vld [vmem:[%s5 + $0x48] sm:$0xf]
  %v1601 = vld [vmem:[%s5 + $0x4c] sm:$0xf]
  %v1602 = vld [vmem:[%s5 + $0x50] sm:$0xf]
  %v1603 = vld [vmem:[%s5 + $0x54] sm:$0xf]
  %v1604 = vld [vmem:[%s5 + $0x58] sm:$0xf]
  %v1605 = vld [vmem:[%s5 + $0x5c] sm:$0xf]
  %v1606 = vld [vmem:[%s5 + $0x60] sm:$0xf]
  %v1607 = vld [vmem:[%s5 + $0x64] sm:$0xf]
  %v1608 = vld [vmem:[%s5 + $0x68] sm:$0xf]
  %v1609 = vld [vmem:[%s5 + $0x6c] sm:$0xf]
  %v1610 = vld [vmem:[%s5 + $0x70] sm:$0xf]
  %v1611 = vld [vmem:[%s5 + $0x74] sm:$0xf]
  %v1612 = vld [vmem:[%s5 + $0x78] sm:$0xf]
  %v1613 = vld [vmem:[%s5 + $0x7c] sm:$0xf]
  %v1646 = vunpack.c.l.b16 %v1582
  %v1647 = vunpack.c.l.b16 %v1583
  %v1648 = vunpack.c.l.b16 %v1584
  %v1649 = vunpack.c.l.b16 %v1585
  %v1650 = vunpack.c.l.b16 %v1586
  %v1651 = vunpack.c.l.b16 %v1587
  %v1652 = vunpack.c.l.b16 %v1588
  %v1653 = vunpack.c.l.b16 %v1589
  %v1654 = vunpack.c.l.b16 %v1590
  %v1655 = vunpack.c.l.b16 %v1591
  %v1656 = vunpack.c.l.b16 %v1592
  %v1657 = vunpack.c.l.b16 %v1593
  %v1658 = vunpack.c.l.b16 %v1594
  %v1659 = vunpack.c.l.b16 %v1595
  %v1660 = vunpack.c.l.b16 %v1596
  %v1661 = vunpack.c.l.b16 %v1597
  %v1662 = vunpack.c.l.b16 %v1598
  %v1663 = vunpack.c.l.b16 %v1599
  %v1664 = vunpack.c.l.b16 %v1600
  %v1665 = vunpack.c.l.b16 %v1601
  %v1666 = vunpack.c.l.b16 %v1602
  %v1667 = vunpack.c.l.b16 %v1603
  %v1668 = vunpack.c.l.b16 %v1604
  %v1669 = vunpack.c.l.b16 %v1605
  %v1670 = vunpack.c.l.b16 %v1606
  %v1671 = vunpack.c.l.b16 %v1607
  %v1672 = vunpack.c.l.b16 %v1608
  %v1673 = vunpack.c.l.b16 %v1609
  %v1674 = vunpack.c.l.b16 %v1610
  %v1675 = vunpack.c.l.b16 %v1611
  %v1676 = vunpack.c.l.b16 %v1612
  %v1677 = vunpack.c.l.b16 %v1613
  %v1678 = vpack.c.b16 %v1647, %v1646
  %v1679 = vpack.c.b16 %v1649, %v1648
  %v1680 = vpack.c.b16 %v1651, %v1650
  %v1681 = vpack.c.b16 %v1653, %v1652
  %v1682 = vpack.c.b16 %v1655, %v1654
  %v1683 = vpack.c.b16 %v1657, %v1656
  %v1684 = vpack.c.b16 %v1659, %v1658
  %v1685 = vpack.c.b16 %v1661, %v1660
  %v1686 = vpack.c.b16 %v1663, %v1662
  %v1687 = vpack.c.b16 %v1665, %v1664
  %v1688 = vpack.c.b16 %v1667, %v1666
  %v1689 = vpack.c.b16 %v1669, %v1668
  %v1690 = vpack.c.b16 %v1671, %v1670
  %v1691 = vpack.c.b16 %v1673, %v1672
  %v1692 = vpack.c.b16 %v1675, %v1674
  %v1693 = vpack.c.b16 %v1677, %v1676
  %1710 = vmatprep.subr.bf16.mxu0 0
  %1711 = vmatpush1.bf16.msra.mxu0 %v1685
  %1712 = vmatprep.subr.bf16.mxu0 0
  %1713 = vmatpush1.bf16.msra.mxu0 %v1684
  %1714 = vmatprep.subr.bf16.mxu0 0
  %1715 = vmatpush1.bf16.msra.mxu0 %v1683
  %1716 = vmatprep.subr.bf16.mxu0 0
  %1717 = vmatpush1.bf16.msra.mxu0 %v1682
  %1718 = vmatprep.subr.bf16.mxu0 0
  %1719 = vmatpush1.bf16.msra.mxu0 %v1681
  %1720 = vmatprep.subr.bf16.mxu0 0
  %1721 = vmatpush1.bf16.msra.mxu0 %v1680
  %1722 = vmatprep.subr.bf16.mxu0 0
  %1723 = vmatpush1.bf16.msra.mxu0 %v1679
  %1724 = vmatprep.subr.bf16.mxu0 0
  %1725 = vmatpush1.bf16.msra.mxu0 %v1678
  %1726 = vmatprep.subr.bf16.mxu0 0
  %1727 = vmatpush2.bf16.msra.mxu0 %v1693
  %1728 = vmatprep.subr.bf16.mxu0 0
  %1729 = vmatpush2.bf16.msra.mxu0 %v1692
  %1730 = vmatprep.subr.bf16.mxu0 0
  %1731 = vmatpush2.bf16.msra.mxu0 %v1691
  %1732 = vmatprep.subr.bf16.mxu0 0
  %1733 = vmatpush2.bf16.msra.mxu0 %v1690
  %1734 = vmatprep.subr.bf16.mxu0 0
  %1735 = vmatpush2.bf16.msra.mxu0 %v1689
  %1736 = vmatprep.subr.bf16.mxu0 0
  %1737 = vmatpush2.bf16.msra.mxu0 %v1688
  %1738 = vmatprep.subr.bf16.mxu0 0
  %1739 = vmatpush2.bf16.msra.mxu0 %v1687
  %1740 = vmatprep.subr.bf16.mxu0 0
  %1741 = vmatpush2.bf16.msra.mxu0 %v1686
  %1742 = vmatprep.mubr.bf16.mxu0 %v1580
  %1743 = vmatmul.mubr.bf16.gmra.mxu0 %v1578
  %v1744 = vpop.f32.mrf.mxu0
  %v1745 = vadd.f32 0.0, %v1744
  %v1746 = vpop.f32.mrf.mxu0
  %v1747 = vpop.f32.mrf.mxu0
  %v1748 = vadd.f32 0.0, %v1747
  %v1749 = vpop.f32.mrf.mxu0
  %1750 = vmatprep.mubr.bf16.mxu0 %v1581
  %1751 = vmatmul.mubr.bf16.gmra.mxu0 %v1579
  %v1752 = vpop.f32.mrf.mxu0
  %v1753 = vadd.f32 0.0, %v1752
  %v1754 = vpop.f32.mrf.mxu0
  %v1755 = vpop.f32.mrf.mxu0
  %v1756 = vadd.f32 0.0, %v1755
  %v1757 = vpop.f32.mrf.mxu0
  %1758 = vdwg.mxu0
  %v1759 = vld [vmem:[%s1] sm:$0x1]
  %v1761 = vlaneseq
  %v1762 = vshrl.u32 %v1761, 7
  %v1763 = vsub.s32 0, %v1762
  %v1764 = vrot.slane %v1759, %v1763
  %v1766 = vmul.f32 %v1745, %v1764
  %v1767 = vmul.f32 %v1748, %v1764
  %v1768 = vmul.f32 %v1753, %v1764
  %v1769 = vmul.f32 %v1756, %v1764
  %v1770 = vld [vmem:[%s3] sm:$0x1]
  %v1772 = vlaneseq
  %v1773 = vshrl.u32 %v1772, 7
  %v1774 = vsub.s32 0, %v1773
  %v1775 = vrot.slane %v1770, %v1774
  %v1777 = vadd.f32 %v1766, %v1775
  %v1778 = vadd.f32 %v1767, %v1775
  %v1779 = vadd.f32 %v1768, %v1775
  %v1780 = vadd.f32 %v1769, %v1775
  %v1781 = vmax.f32 %v1777, 0.0
  %v1782 = vmax.f32 %v1778, 0.0
  %v1783 = vmax.f32 %v1779, 0.0
  %v1784 = vmax.f32 %v1780, 0.0
  %v1785 = vrot.slane %v1781, 3
  %v1786 = vrot.slane %v1782, 3
  %v1787 = vrot.slane %v1783, 3
  %v1788 = vrot.slane %v1784, 3
  %v1789 = vsel %vm1327, %v1787, %v1788
  %v1790 = vsel %vm1327, %v1786, %v1787
  %v1791 = vsel %vm1327, %v1785, %v1786
  %v1792 = vsel %vm1327, %v1788, %v1785
  %v1793 = vmul.f32 %v1792, %v1348
  %v1794 = vmul.f32 %v1791, %v1349
  %v1795 = vmul.f32 %v1790, %v1350
  %v1796 = vmul.f32 %v1789, %v1351
  %v1797 = vrot.slane %v1781, 4
  %v1798 = vrot.slane %v1782, 4
  %v1799 = vrot.slane %v1783, 4
  %v1800 = vrot.slane %v1784, 4
  %v1801 = vsel %vm1360, %v1799, %v1800
  %v1802 = vsel %vm1360, %v1798, %v1799
  %v1803 = vsel %vm1360, %v1797, %v1798
  %v1804 = vsel %vm1360, %v1800, %v1797
  %v1805 = vmul.f32 %v1804, %v1369
  %v1806 = vmul.f32 %v1803, %v1370
  %v1807 = vmul.f32 %v1802, %v1371
  %v1808 = vmul.f32 %v1801, %v1372
  %1809 = vrot.lane.b32.xlu0 %v1805, 16
  %v1810 = vpop.permute.xlu0 %1809
  %1811 = vrot.lane.b32.xlu0 %v1806, 16
  %v1812 = vpop.permute.xlu0 %1811
  %1813 = vrot.lane.b32.xlu0 %v1807, 16
  %v1814 = vpop.permute.xlu0 %1813
  %1815 = vrot.lane.b32.xlu0 %v1808, 16
  %v1816 = vpop.permute.xlu0 %1815
  %v1817 = vadd.f32 %v1793, %v1810
  %v1818 = vadd.f32 %v1794, %v1812
  %v1819 = vadd.f32 %v1795, %v1814
  %v1820 = vadd.f32 %v1796, %v1816
  %v1821 = vrot.slane %v1781, 5
  %v1822 = vrot.slane %v1782, 5
  %v1823 = vrot.slane %v1783, 5
  %v1824 = vrot.slane %v1784, 5
  %v1825 = vsel %vm1393, %v1823, %v1824
  %v1826 = vsel %vm1393, %v1822, %v1823
  %v1827 = vsel %vm1393, %v1821, %v1822
  %v1828 = vsel %vm1393, %v1824, %v1821
  %v1829 = vmul.f32 %v1828, %v1410
  %v1830 = vmul.f32 %v1827, %v1411
  %v1831 = vmul.f32 %v1826, %v1412
  %v1832 = vmul.f32 %v1825, %v1413
  %1833 = vrot.lane.b32.xlu0 %v1829, 32
  %v1834 = vpop.permute.xlu0 %1833
  %1835 = vrot.lane.b32.xlu0 %v1830, 32
  %v1836 = vpop.permute.xlu0 %1835
  %1837 = vrot.lane.b32.xlu0 %v1831, 32
  %v1838 = vpop.permute.xlu0 %1837
  %1839 = vrot.lane.b32.xlu0 %v1832, 32
  %v1840 = vpop.permute.xlu0 %1839
  %v1841 = vadd.f32 %v1817, %v1834
  %v1842 = vadd.f32 %v1818, %v1836
  %v1843 = vadd.f32 %v1819, %v1838
  %v1844 = vadd.f32 %v1820, %v1840
  %v1845 = vrot.slane %v1781, 7
  %v1846 = vrot.slane %v1782, 7
  %v1847 = vrot.slane %v1783, 7
  %v1848 = vrot.slane %v1784, 7
  %v1849 = vsel %vm548, %v1847, %v1848
  %v1850 = vsel %vm548, %v1846, %v1847
  %v1851 = vsel %vm548, %v1845, %v1846
  %v1852 = vsel %vm548, %v1848, %v1845
  %v1853 = vmul.f32 %v1852, %v1442
  %v1854 = vmul.f32 %v1851, %v1443
  %v1855 = vmul.f32 %v1850, %v1444
  %v1856 = vmul.f32 %v1849, %v1445
  %1857 = vrot.lane.b32.xlu0 %v1853, 48
  %v1858 = vpop.permute.xlu0 %1857
  %1859 = vrot.lane.b32.xlu0 %v1854, 48
  %v1860 = vpop.permute.xlu0 %1859
  %1861 = vrot.lane.b32.xlu0 %v1855, 48
  %v1862 = vpop.permute.xlu0 %1861
  %1863 = vrot.lane.b32.xlu0 %v1856, 48
  %v1864 = vpop.permute.xlu0 %1863
  %v1865 = vadd.f32 %v1841, %v1858
  %v1866 = vadd.f32 %v1842, %v1860
  %v1867 = vadd.f32 %v1843, %v1862
  %v1868 = vadd.f32 %v1844, %v1864
  %1869 = vrot.lane.b32.xlu0 %v1781, 64
  %v1870 = vpop.permute.xlu0 %1869
  %1871 = vrot.lane.b32.xlu0 %v1782, 64
  %v1872 = vpop.permute.xlu0 %1871
  %1873 = vrot.lane.b32.xlu0 %v1783, 64
  %v1874 = vpop.permute.xlu0 %1873
  %1875 = vrot.lane.b32.xlu0 %v1784, 64
  %v1876 = vpop.permute.xlu0 %1875
  %v1877 = vadd.f32 %v1865, %v1870
  %v1878 = vadd.f32 %v1866, %v1872
  %v1879 = vadd.f32 %v1867, %v1874
  %v1880 = vadd.f32 %v1868, %v1876
  %v1881 = vrot.slane %v1781, 1
  %v1882 = vrot.slane %v1782, 1
  %v1883 = vrot.slane %v1783, 1
  %v1884 = vrot.slane %v1784, 1
  %v1885 = vsel %vm757, %v1883, %v1884
  %v1886 = vsel %vm757, %v1882, %v1883
  %v1887 = vsel %vm757, %v1881, %v1882
  %v1888 = vsel %vm757, %v1884, %v1881
  %v1889 = vmul.f32 %v1887, %v1486
  %v1890 = vmul.f32 %v1886, %v1487
  %v1891 = vmul.f32 %v1885, %v1488
  %v1892 = vmul.f32 %v1888, %v1489
  %1893 = vrot.lane.b32.xlu0 %v1889, 80
  %v1894 = vpop.permute.xlu0 %1893
  %1895 = vrot.lane.b32.xlu0 %v1890, 80
  %v1896 = vpop.permute.xlu0 %1895
  %1897 = vrot.lane.b32.xlu0 %v1891, 80
  %v1898 = vpop.permute.xlu0 %1897
  %1899 = vrot.lane.b32.xlu0 %v1892, 80
  %v1900 = vpop.permute.xlu0 %1899
  %v1901 = vadd.f32 %v1877, %v1894
  %v1902 = vadd.f32 %v1878, %v1896
  %v1903 = vadd.f32 %v1879, %v1898
  %v1904 = vadd.f32 %v1880, %v1900
  %v1905 = vmul.f32 %v1791, %v1518
  %v1906 = vmul.f32 %v1790, %v1519
  %v1907 = vmul.f32 %v1789, %v1520
  %v1908 = vmul.f32 %v1792, %v1521
  %1909 = vrot.lane.b32.xlu0 %v1905, 96
  %v1910 = vpop.permute.xlu0 %1909
  %1911 = vrot.lane.b32.xlu0 %v1906, 96
  %v1912 = vpop.permute.xlu0 %1911
  %1913 = vrot.lane.b32.xlu0 %v1907, 96
  %v1914 = vpop.permute.xlu0 %1913
  %1915 = vrot.lane.b32.xlu0 %v1908, 96
  %v1916 = vpop.permute.xlu0 %1915
  %v1917 = vadd.f32 %v1901, %v1910
  %v1918 = vadd.f32 %v1902, %v1912
  %v1919 = vadd.f32 %v1903, %v1914
  %v1920 = vadd.f32 %v1904, %v1916
  %v1921 = vmul.f32 %v1803, %v1542
  %v1922 = vmul.f32 %v1802, %v1543
  %v1923 = vmul.f32 %v1801, %v1544
  %v1924 = vmul.f32 %v1804, %v1545
  %1925 = vrot.lane.b32.xlu0 %v1921, 112
  %v1926 = vpop.permute.xlu0 %1925
  %1927 = vrot.lane.b32.xlu0 %v1922, 112
  %v1928 = vpop.permute.xlu0 %1927
  %1929 = vrot.lane.b32.xlu0 %v1923, 112
  %v1930 = vpop.permute.xlu0 %1929
  %1931 = vrot.lane.b32.xlu0 %v1924, 112
  %v1932 = vpop.permute.xlu0 %1931
  %v1933 = vadd.f32 %v1917, %v1926
  %v1934 = vadd.f32 %v1918, %v1928
  %v1935 = vadd.f32 %v1919, %v1930
  %v1936 = vadd.f32 %v1920, %v1932
  %v1937 = vmul.f32 %v1827, %v1570
  %v1938 = vmul.f32 %v1826, %v1571
  %v1939 = vmul.f32 %v1825, %v1572
  %v1940 = vmul.f32 %v1828, %v1573
  %v1941 = vpack.c.bf16 %v1934, %v1933
  %v1942 = vpack.c.bf16 %v1936, %v1935
  %v1943 = vpack.c.bf16 %v1938, %v1937
  %v1944 = vpack.c.bf16 %v1940, %v1939
  %v1945 = vld [vmem:[%s11] sm:$0xf]
  %v1946 = vld [vmem:[%s11 + $0x4] sm:$0xf]
  %v1947 = vld [vmem:[%s11 + $0x8] sm:$0xf]
  %v1948 = vld [vmem:[%s11 + $0xc] sm:$0xf]
  %v1949 = vld [vmem:[%s11 + $0x10] sm:$0xf]
  %v1950 = vld [vmem:[%s11 + $0x14] sm:$0xf]
  %v1951 = vld [vmem:[%s11 + $0x18] sm:$0xf]
  %v1952 = vld [vmem:[%s11 + $0x1c] sm:$0xf]
  %v1953 = vld [vmem:[%s11 + $0x20] sm:$0xf]
  %v1954 = vld [vmem:[%s11 + $0x24] sm:$0xf]
  %v1955 = vld [vmem:[%s11 + $0x28] sm:$0xf]
  %v1956 = vld [vmem:[%s11 + $0x2c] sm:$0xf]
  %v1957 = vld [vmem:[%s11 + $0x30] sm:$0xf]
  %v1958 = vld [vmem:[%s11 + $0x34] sm:$0xf]
  %v1959 = vld [vmem:[%s11 + $0x38] sm:$0xf]
  %v1960 = vld [vmem:[%s11 + $0x3c] sm:$0xf]
  %v1961 = vld [vmem:[%s11 + $0x40] sm:$0xf]
  %v1962 = vld [vmem:[%s11 + $0x44] sm:$0xf]
  %v1963 = vld [vmem:[%s11 + $0x48] sm:$0xf]
  %v1964 = vld [vmem:[%s11 + $0x4c] sm:$0xf]
  %v1965 = vld [vmem:[%s11 + $0x50] sm:$0xf]
  %v1966 = vld [vmem:[%s11 + $0x54] sm:$0xf]
  %v1967 = vld [vmem:[%s11 + $0x58] sm:$0xf]
  %v1968 = vld [vmem:[%s11 + $0x5c] sm:$0xf]
  %v1969 = vld [vmem:[%s11 + $0x60] sm:$0xf]
  %v1970 = vld [vmem:[%s11 + $0x64] sm:$0xf]
  %v1971 = vld [vmem:[%s11 + $0x68] sm:$0xf]
  %v1972 = vld [vmem:[%s11 + $0x6c] sm:$0xf]
  %v1973 = vld [vmem:[%s11 + $0x70] sm:$0xf]
  %v1974 = vld [vmem:[%s11 + $0x74] sm:$0xf]
  %v1975 = vld [vmem:[%s11 + $0x78] sm:$0xf]
  %v1976 = vld [vmem:[%s11 + $0x7c] sm:$0xf]
  %v2009 = vunpack.c.l.b16 %v1945
  %v2010 = vunpack.c.l.b16 %v1946
  %v2011 = vunpack.c.l.b16 %v1947
  %v2012 = vunpack.c.l.b16 %v1948
  %v2013 = vunpack.c.l.b16 %v1949
  %v2014 = vunpack.c.l.b16 %v1950
  %v2015 = vunpack.c.l.b16 %v1951
  %v2016 = vunpack.c.l.b16 %v1952
  %v2017 = vunpack.c.l.b16 %v1953
  %v2018 = vunpack.c.l.b16 %v1954
  %v2019 = vunpack.c.l.b16 %v1955
  %v2020 = vunpack.c.l.b16 %v1956
  %v2021 = vunpack.c.l.b16 %v1957
  %v2022 = vunpack.c.l.b16 %v1958
  %v2023 = vunpack.c.l.b16 %v1959
  %v2024 = vunpack.c.l.b16 %v1960
  %v2025 = vunpack.c.l.b16 %v1961
  %v2026 = vunpack.c.l.b16 %v1962
  %v2027 = vunpack.c.l.b16 %v1963
  %v2028 = vunpack.c.l.b16 %v1964
  %v2029 = vunpack.c.l.b16 %v1965
  %v2030 = vunpack.c.l.b16 %v1966
  %v2031 = vunpack.c.l.b16 %v1967
  %v2032 = vunpack.c.l.b16 %v1968
  %v2033 = vunpack.c.l.b16 %v1969
  %v2034 = vunpack.c.l.b16 %v1970
  %v2035 = vunpack.c.l.b16 %v1971
  %v2036 = vunpack.c.l.b16 %v1972
  %v2037 = vunpack.c.l.b16 %v1973
  %v2038 = vunpack.c.l.b16 %v1974
  %v2039 = vunpack.c.l.b16 %v1975
  %v2040 = vunpack.c.l.b16 %v1976
  %v2041 = vpack.c.b16 %v2010, %v2009
  %v2042 = vpack.c.b16 %v2012, %v2011
  %v2043 = vpack.c.b16 %v2014, %v2013
  %v2044 = vpack.c.b16 %v2016, %v2015
  %v2045 = vpack.c.b16 %v2018, %v2017
  %v2046 = vpack.c.b16 %v2020, %v2019
  %v2047 = vpack.c.b16 %v2022, %v2021
  %v2048 = vpack.c.b16 %v2024, %v2023
  %v2049 = vpack.c.b16 %v2026, %v2025
  %v2050 = vpack.c.b16 %v2028, %v2027
  %v2051 = vpack.c.b16 %v2030, %v2029
  %v2052 = vpack.c.b16 %v2032, %v2031
  %v2053 = vpack.c.b16 %v2034, %v2033
  %v2054 = vpack.c.b16 %v2036, %v2035
  %v2055 = vpack.c.b16 %v2038, %v2037
  %v2056 = vpack.c.b16 %v2040, %v2039
  %2073 = vmatprep.subr.bf16.mxu0 0
  %2074 = vmatpush1.bf16.msra.mxu0 %v2048
  %2075 = vmatprep.subr.bf16.mxu0 0
  %2076 = vmatpush1.bf16.msra.mxu0 %v2047
  %2077 = vmatprep.subr.bf16.mxu0 0
  %2078 = vmatpush1.bf16.msra.mxu0 %v2046
  %2079 = vmatprep.subr.bf16.mxu0 0
  %2080 = vmatpush1.bf16.msra.mxu0 %v2045
  %2081 = vmatprep.subr.bf16.mxu0 0
  %2082 = vmatpush1.bf16.msra.mxu0 %v2044
  %2083 = vmatprep.subr.bf16.mxu0 0
  %2084 = vmatpush1.bf16.msra.mxu0 %v2043
  %2085 = vmatprep.subr.bf16.mxu0 0
  %2086 = vmatpush1.bf16.msra.mxu0 %v2042
  %2087 = vmatprep.subr.bf16.mxu0 0
  %2088 = vmatpush1.bf16.msra.mxu0 %v2041
  %2089 = vmatprep.subr.bf16.mxu0 0
  %2090 = vmatpush2.bf16.msra.mxu0 %v2056
  %2091 = vmatprep.subr.bf16.mxu0 0
  %2092 = vmatpush2.bf16.msra.mxu0 %v2055
  %2093 = vmatprep.subr.bf16.mxu0 0
  %2094 = vmatpush2.bf16.msra.mxu0 %v2054
  %2095 = vmatprep.subr.bf16.mxu0 0
  %2096 = vmatpush2.bf16.msra.mxu0 %v2053
  %2097 = vmatprep.subr.bf16.mxu0 0
  %2098 = vmatpush2.bf16.msra.mxu0 %v2052
  %2099 = vmatprep.subr.bf16.mxu0 0
  %2100 = vmatpush2.bf16.msra.mxu0 %v2051
  %2101 = vmatprep.subr.bf16.mxu0 0
  %2102 = vmatpush2.bf16.msra.mxu0 %v2050
  %2103 = vmatprep.subr.bf16.mxu0 0
  %2104 = vmatpush2.bf16.msra.mxu0 %v2049
  %2105 = vmatprep.mubr.bf16.mxu0 %v1943
  %2106 = vmatmul.mubr.bf16.gmra.mxu0 %v1941
  %v2107 = vpop.f32.mrf.mxu0
  %v2108 = vadd.f32 0.0, %v2107
  %v2109 = vpop.f32.mrf.mxu0
  %v2110 = vpop.f32.mrf.mxu0
  %v2111 = vadd.f32 0.0, %v2110
  %v2112 = vpop.f32.mrf.mxu0
  %2113 = vmatprep.mubr.bf16.mxu0 %v1944
  %2114 = vmatmul.mubr.bf16.gmra.mxu0 %v1942
  %v2115 = vpop.f32.mrf.mxu0
  %v2116 = vadd.f32 0.0, %v2115
  %v2117 = vpop.f32.mrf.mxu0
  %v2118 = vpop.f32.mrf.mxu0
  %v2119 = vadd.f32 0.0, %v2118
  %v2120 = vpop.f32.mrf.mxu0
  %2121 = vdwg.mxu0
  %v2122 = vld [vmem:[%s7] sm:$0x1]
  %v2124 = vlaneseq
  %v2125 = vshrl.u32 %v2124, 7
  %v2126 = vsub.s32 0, %v2125
  %v2127 = vrot.slane %v2122, %v2126
  %v2129 = vmul.f32 %v2108, %v2127
  %v2130 = vmul.f32 %v2111, %v2127
  %v2131 = vmul.f32 %v2116, %v2127
  %v2132 = vmul.f32 %v2119, %v2127
  %v2133 = vld [vmem:[%s9] sm:$0x1]
  %v2135 = vlaneseq
  %v2136 = vshrl.u32 %v2135, 7
  %v2137 = vsub.s32 0, %v2136
  %v2138 = vrot.slane %v2133, %v2137
  %v2140 = vadd.f32 %v2129, %v2138
  %v2141 = vadd.f32 %v2130, %v2138
  %v2142 = vadd.f32 %v2131, %v2138
  %v2143 = vadd.f32 %v2132, %v2138
  %v2144 = vadd.f32 %v2140, %v1297
  %v2145 = vadd.f32 %v2141, %v1300
  %v2146 = vadd.f32 %v2142, %v1305
  %v2147 = vadd.f32 %v2143, %v1308
  %v2148 = vmax.f32 %v2144, 0.0
  %v2149 = vmax.f32 %v2145, 0.0
  %v2150 = vmax.f32 %v2146, 0.0
  %v2151 = vmax.f32 %v2147, 0.0
  %v2152 = vpack.c.bf16 %v2149, %v2148
  %v2153 = vpack.c.bf16 %v2151, %v2150
  %v2154 = vld [vmem:[%s29] sm:$0xf]
  %vm2155 = vcmask 261120
  %v2157 = vsel %vm2155, %v2154, 0
  %2159 = vmatprep.subr.bf16.mxu0 0
  %2160 = vmatpush1.bf16.msra.mxu0 0
  %2161 = vmatprep.subr.bf16.mxu0 0
  %2162 = vmatpush1.bf16.msra.mxu0 0
  %2163 = vmatprep.subr.bf16.mxu0 0
  %2164 = vmatpush1.bf16.msra.mxu0 0
  %2165 = vmatprep.subr.bf16.mxu0 0
  %2166 = vmatpush1.bf16.msra.mxu0 0
  %2167 = vmatprep.subr.bf16.mxu0 0
  %2168 = vmatpush1.bf16.msra.mxu0 0
  %2169 = vmatprep.subr.bf16.mxu0 0
  %2170 = vmatpush1.bf16.msra.mxu0 0
  %2171 = vmatprep.subr.bf16.mxu0 0
  %2172 = vmatpush1.bf16.msra.mxu0 %v2153
  %2173 = vmatprep.subr.bf16.mxu0 0
  %2174 = vmatpush1.bf16.msra.mxu0 %v2152
  %2175 = vmatprep.subr.bf16.mxu0 0
  %2176 = vmatpush2.bf16.msra.mxu0 0
  %2177 = vmatprep.subr.bf16.mxu0 0
  %2178 = vmatpush2.bf16.msra.mxu0 0
  %2179 = vmatprep.subr.bf16.mxu0 0
  %2180 = vmatpush2.bf16.msra.mxu0 0
  %2181 = vmatprep.subr.bf16.mxu0 0
  %2182 = vmatpush2.bf16.msra.mxu0 0
  %2183 = vmatprep.subr.bf16.mxu0 0
  %2184 = vmatpush2.bf16.msra.mxu0 0
  %2185 = vmatprep.subr.bf16.mxu0 0
  %2186 = vmatpush2.bf16.msra.mxu0 0
  %2187 = vmatprep.subr.bf16.mxu0 0
  %2188 = vmatpush2.bf16.msra.mxu0 0
  %2189 = vmatprep.subr.bf16.mxu0 0
  %2190 = vmatpush2.bf16.msra.mxu0 0
  %2191 = vmatprep.mubr.bf16.mxu0 0
  %2192 = vmatmul.mubr.bf16.gmra.mxu0 %v2157
  %v2193 = vpop.f32.mrf.mxu0
  %v2194 = vadd.f32 0.0, %v2193
  %v2195 = vpop.f32.mrf.mxu0
  %v2196 = vpop.f32.mrf.mxu0
  %v2197 = vpop.f32.mrf.mxu0
  %2198 = vdwg.mxu0
  %v2199 = vpack.c.bf16 %v2194, %v2194
  %v2200 = vld [vmem:[%s33] sm:$0xf]
  %v2201 = vld [vmem:[%s33 + $0x4] sm:$0xf]
  %v2202 = vld [vmem:[%s33 + $0x8] sm:$0xf]
  %v2203 = vld [vmem:[%s33 + $0xc] sm:$0xf]
  %v2204 = vld [vmem:[%s33 + $0x10] sm:$0xf]
  %v2205 = vld [vmem:[%s33 + $0x14] sm:$0xf]
  %v2206 = vld [vmem:[%s33 + $0x18] sm:$0xf]
  %v2207 = vld [vmem:[%s33 + $0x1c] sm:$0xf]
  %v2208 = vld [vmem:[%s33 + $0x20] sm:$0xf]
  %v2209 = vld [vmem:[%s33 + $0x24] sm:$0xf]
  %v2210 = vld [vmem:[%s33 + $0x28] sm:$0xf]
  %v2211 = vld [vmem:[%s33 + $0x2c] sm:$0xf]
  %v2212 = vld [vmem:[%s33 + $0x30] sm:$0xf]
  %v2213 = vld [vmem:[%s33 + $0x34] sm:$0xf]
  %v2214 = vld [vmem:[%s33 + $0x38] sm:$0xf]
  %v2215 = vld [vmem:[%s33 + $0x3c] sm:$0xf]
  %v2232 = vunpack.c.l.b16 %v2200
  %v2233 = vunpack.c.l.b16 %v2201
  %v2234 = vunpack.c.l.b16 %v2202
  %v2235 = vunpack.c.l.b16 %v2203
  %v2236 = vunpack.c.l.b16 %v2204
  %v2237 = vunpack.c.l.b16 %v2205
  %v2238 = vunpack.c.l.b16 %v2206
  %v2239 = vunpack.c.l.b16 %v2207
  %v2240 = vunpack.c.l.b16 %v2208
  %v2241 = vunpack.c.l.b16 %v2209
  %v2242 = vunpack.c.l.b16 %v2210
  %v2243 = vunpack.c.l.b16 %v2211
  %v2244 = vunpack.c.l.b16 %v2212
  %v2245 = vunpack.c.l.b16 %v2213
  %v2246 = vunpack.c.l.b16 %v2214
  %v2247 = vunpack.c.l.b16 %v2215
  %v2248 = vpack.c.b16 %v2233, %v2232
  %v2249 = vpack.c.b16 %v2235, %v2234
  %v2250 = vpack.c.b16 %v2237, %v2236
  %v2251 = vpack.c.b16 %v2239, %v2238
  %v2252 = vpack.c.b16 %v2241, %v2240
  %v2253 = vpack.c.b16 %v2243, %v2242
  %v2254 = vpack.c.b16 %v2245, %v2244
  %v2255 = vpack.c.b16 %v2247, %v2246
  %2264 = vmatprep.subr.bf16.mxu0 0
  %2265 = vmatpush1.bf16.msra.mxu0 %v2255
  %2266 = vmatprep.subr.bf16.mxu0 0
  %2267 = vmatpush1.bf16.msra.mxu0 %v2254
  %2268 = vmatprep.subr.bf16.mxu0 0
  %2269 = vmatpush1.bf16.msra.mxu0 %v2253
  %2270 = vmatprep.subr.bf16.mxu0 0
  %2271 = vmatpush1.bf16.msra.mxu0 %v2252
  %2272 = vmatprep.subr.bf16.mxu0 0
  %2273 = vmatpush1.bf16.msra.mxu0 %v2251
  %2274 = vmatprep.subr.bf16.mxu0 0
  %2275 = vmatpush1.bf16.msra.mxu0 %v2250
  %2276 = vmatprep.subr.bf16.mxu0 0
  %2277 = vmatpush1.bf16.msra.mxu0 %v2249
  %2278 = vmatprep.subr.bf16.mxu0 0
  %2279 = vmatpush1.bf16.msra.mxu0 %v2248
  %2280 = vmatprep.subr.bf16.mxu0 0
  %2281 = vmatpush2.bf16.msra.mxu0 0
  %2282 = vmatprep.subr.bf16.mxu0 0
  %2283 = vmatpush2.bf16.msra.mxu0 0
  %2284 = vmatprep.subr.bf16.mxu0 0
  %2285 = vmatpush2.bf16.msra.mxu0 0
  %2286 = vmatprep.subr.bf16.mxu0 0
  %2287 = vmatpush2.bf16.msra.mxu0 0
  %2288 = vmatprep.subr.bf16.mxu0 0
  %2289 = vmatpush2.bf16.msra.mxu0 0
  %2290 = vmatprep.subr.bf16.mxu0 0
  %2291 = vmatpush2.bf16.msra.mxu0 0
  %2292 = vmatprep.subr.bf16.mxu0 0
  %2293 = vmatpush2.bf16.msra.mxu0 0
  %2294 = vmatprep.subr.bf16.mxu0 0
  %2295 = vmatpush2.bf16.msra.mxu0 0
  %2296 = vmatprep.mubr.bf16.mxu0 0
  %2297 = vmatmul.mubr.bf16.gmra.mxu0 %v2199
  %v2298 = vpop.f32.mrf.mxu0
  %v2299 = vadd.f32 0.0, %v2298
  %v2300 = vpop.f32.mrf.mxu0
  %v2301 = vpop.f32.mrf.mxu0
  %v2302 = vpop.f32.mrf.mxu0
  %2303 = vdwg.mxu0
  %v2304 = vld [vmem:[%s27] sm:$0x1]
  %v2306 = vlaneseq
  %v2307 = vshrl.u32 %v2306, 7
  %v2308 = vsub.s32 0, %v2307
  %v2309 = vrot.slane %v2304, %v2308
  %v2311 = vmul.f32 %v2299, %v2309
  %v2312 = vld [vmem:[%s31] sm:$0x1]
  %v2314 = vlaneseq
  %v2315 = vshrl.u32 %v2314, 7
  %v2316 = vsub.s32 0, %v2315
  %v2317 = vrot.slane %v2312, %v2316
  %v2319 = vadd.f32 %v2311, %v2317
  %v2320 = vld [vmem:[%s15] sm:$0xf]
  %s2321 = scalar_lea.vmem %s15, 4
  %v2322 = vld [vmem:[%s2321] sm:$0xf]
  %v2324 = vsel %vm2155, %v2322, 0
  %2326 = vmatprep.subr.bf16.mxu0 0
  %2327 = vmatpush1.bf16.msra.mxu0 0
  %2328 = vmatprep.subr.bf16.mxu0 0
  %2329 = vmatpush1.bf16.msra.mxu0 0
  %2330 = vmatprep.subr.bf16.mxu0 0
  %2331 = vmatpush1.bf16.msra.mxu0 0
  %2332 = vmatprep.subr.bf16.mxu0 0
  %2333 = vmatpush1.bf16.msra.mxu0 0
  %2334 = vmatprep.subr.bf16.mxu0 0
  %2335 = vmatpush1.bf16.msra.mxu0 0
  %2336 = vmatprep.subr.bf16.mxu0 0
  %2337 = vmatpush1.bf16.msra.mxu0 0
  %2338 = vmatprep.subr.bf16.mxu0 0
  %2339 = vmatpush1.bf16.msra.mxu0 %v2153
  %2340 = vmatprep.subr.bf16.mxu0 0
  %2341 = vmatpush1.bf16.msra.mxu0 %v2152
  %2342 = vmatprep.subr.bf16.mxu0 0
  %2343 = vmatpush2.bf16.msra.mxu0 0
  %2344 = vmatprep.subr.bf16.mxu0 0
  %2345 = vmatpush2.bf16.msra.mxu0 0
  %2346 = vmatprep.subr.bf16.mxu0 0
  %2347 = vmatpush2.bf16.msra.mxu0 0
  %2348 = vmatprep.subr.bf16.mxu0 0
  %2349 = vmatpush2.bf16.msra.mxu0 0
  %2350 = vmatprep.subr.bf16.mxu0 0
  %2351 = vmatpush2.bf16.msra.mxu0 0
  %2352 = vmatprep.subr.bf16.mxu0 0
  %2353 = vmatpush2.bf16.msra.mxu0 0
  %2354 = vmatprep.subr.bf16.mxu0 0
  %2355 = vmatpush2.bf16.msra.mxu0 0
  %2356 = vmatprep.subr.bf16.mxu0 0
  %2357 = vmatpush2.bf16.msra.mxu0 0
  %2358 = vmatprep.mubr.bf16.mxu0 0
  %2359 = vmatmul.mubr.bf16.gmra.mxu0 %v2324
  %v2360 = vpop.f32.mrf.mxu0
  %v2361 = vadd.f32 0.0, %v2360
  %v2362 = vpop.f32.mrf.mxu0
  %v2363 = vpop.f32.mrf.mxu0
  %v2364 = vpop.f32.mrf.mxu0
  %2365 = vdwg.mxu0
  %2366 = vrot.lane.b32.xlu0 %v2361, 16
  %v2367 = vpop.permute.xlu0 %2366
  %v2369 = vsel %vm2155, %v2320, 0
  %2371 = vmatprep.subr.bf16.mxu0 0
  %2372 = vmatpush1.bf16.msra.mxu0 0
  %2373 = vmatprep.subr.bf16.mxu0 0
  %2374 = vmatpush1.bf16.msra.mxu0 0
  %2375 = vmatprep.subr.bf16.mxu0 0
  %2376 = vmatpush1.bf16.msra.mxu0 0
  %2377 = vmatprep.subr.bf16.mxu0 0
  %2378 = vmatpush1.bf16.msra.mxu0 0
  %2379 = vmatprep.subr.bf16.mxu0 0
  %2380 = vmatpush1.bf16.msra.mxu0 0
  %2381 = vmatprep.subr.bf16.mxu0 0
  %2382 = vmatpush1.bf16.msra.mxu0 0
  %2383 = vmatprep.subr.bf16.mxu0 0
  %2384 = vmatpush1.bf16.msra.mxu0 %v2153
  %2385 = vmatprep.subr.bf16.mxu0 0
  %2386 = vmatpush1.bf16.msra.mxu0 %v2152
  %2387 = vmatprep.subr.bf16.mxu0 0
  %2388 = vmatpush2.bf16.msra.mxu0 0
  %2389 = vmatprep.subr.bf16.mxu0 0
  %2390 = vmatpush2.bf16.msra.mxu0 0
  %2391 = vmatprep.subr.bf16.mxu0 0
  %2392 = vmatpush2.bf16.msra.mxu0 0
  %2393 = vmatprep.subr.bf16.mxu0 0
  %2394 = vmatpush2.bf16.msra.mxu0 0
  %2395 = vmatprep.subr.bf16.mxu0 0
  %2396 = vmatpush2.bf16.msra.mxu0 0
  %2397 = vmatprep.subr.bf16.mxu0 0
  %2398 = vmatpush2.bf16.msra.mxu0 0
  %2399 = vmatprep.subr.bf16.mxu0 0
  %2400 = vmatpush2.bf16.msra.mxu0 0
  %2401 = vmatprep.subr.bf16.mxu0 0
  %2402 = vmatpush2.bf16.msra.mxu0 0
  %2403 = vmatprep.mubr.bf16.mxu0 0
  %2404 = vmatmul.mubr.bf16.gmra.mxu0 %v2369
  %v2405 = vpop.f32.mrf.mxu0
  %v2406 = vadd.f32 %v2367, %v2405
  %v2407 = vpop.f32.mrf.mxu0
  %v2408 = vpop.f32.mrf.mxu0
  %v2409 = vpop.f32.mrf.mxu0
  %2410 = vdwg.mxu0
  %s2411 = scalar_lea.vmem %s15, 8
  %v2412 = vld [vmem:[%s2411] sm:$0xf]
  %v2414 = vsel %vm2155, %v2412, 0
  %2416 = vmatprep.subr.bf16.mxu0 0
  %2417 = vmatpush1.bf16.msra.mxu0 0
  %2418 = vmatprep.subr.bf16.mxu0 0
  %2419 = vmatpush1.bf16.msra.mxu0 0
  %2420 = vmatprep.subr.bf16.mxu0 0
  %2421 = vmatpush1.bf16.msra.mxu0 0
  %2422 = vmatprep.subr.bf16.mxu0 0
  %2423 = vmatpush1.bf16.msra.mxu0 0
  %2424 = vmatprep.subr.bf16.mxu0 0
  %2425 = vmatpush1.bf16.msra.mxu0 0
  %2426 = vmatprep.subr.bf16.mxu0 0
  %2427 = vmatpush1.bf16.msra.mxu0 0
  %2428 = vmatprep.subr.bf16.mxu0 0
  %2429 = vmatpush1.bf16.msra.mxu0 %v2153
  %2430 = vmatprep.subr.bf16.mxu0 0
  %2431 = vmatpush1.bf16.msra.mxu0 %v2152
  %2432 = vmatprep.subr.bf16.mxu0 0
  %2433 = vmatpush2.bf16.msra.mxu0 0
  %2434 = vmatprep.subr.bf16.mxu0 0
  %2435 = vmatpush2.bf16.msra.mxu0 0
  %2436 = vmatprep.subr.bf16.mxu0 0
  %2437 = vmatpush2.bf16.msra.mxu0 0
  %2438 = vmatprep.subr.bf16.mxu0 0
  %2439 = vmatpush2.bf16.msra.mxu0 0
  %2440 = vmatprep.subr.bf16.mxu0 0
  %2441 = vmatpush2.bf16.msra.mxu0 0
  %2442 = vmatprep.subr.bf16.mxu0 0
  %2443 = vmatpush2.bf16.msra.mxu0 0
  %2444 = vmatprep.subr.bf16.mxu0 0
  %2445 = vmatpush2.bf16.msra.mxu0 0
  %2446 = vmatprep.subr.bf16.mxu0 0
  %2447 = vmatpush2.bf16.msra.mxu0 0
  %2448 = vmatprep.mubr.bf16.mxu0 0
  %2449 = vmatmul.mubr.bf16.gmra.mxu0 %v2414
  %v2450 = vpop.f32.mrf.mxu0
  %v2451 = vadd.f32 0.0, %v2450
  %v2452 = vpop.f32.mrf.mxu0
  %v2453 = vpop.f32.mrf.mxu0
  %v2454 = vpop.f32.mrf.mxu0
  %2455 = vdwg.mxu0
  %2456 = vrot.lane.b32.xlu0 %v2451, 32
  %v2457 = vpop.permute.xlu0 %2456
  %v2458 = vadd.f32 %v2406, %v2457
  %s2459 = scalar_lea.vmem %s15, 12
  %v2460 = vld [vmem:[%s2459] sm:$0xf]
  %v2462 = vsel %vm2155, %v2460, 0
  %2464 = vmatprep.subr.bf16.mxu0 0
  %2465 = vmatpush1.bf16.msra.mxu0 0
  %2466 = vmatprep.subr.bf16.mxu0 0
  %2467 = vmatpush1.bf16.msra.mxu0 0
  %2468 = vmatprep.subr.bf16.mxu0 0
  %2469 = vmatpush1.bf16.msra.mxu0 0
  %2470 = vmatprep.subr.bf16.mxu0 0
  %2471 = vmatpush1.bf16.msra.mxu0 0
  %2472 = vmatprep.subr.bf16.mxu0 0
  %2473 = vmatpush1.bf16.msra.mxu0 0
  %2474 = vmatprep.subr.bf16.mxu0 0
  %2475 = vmatpush1.bf16.msra.mxu0 0
  %2476 = vmatprep.subr.bf16.mxu0 0
  %2477 = vmatpush1.bf16.msra.mxu0 %v2153
  %2478 = vmatprep.subr.bf16.mxu0 0
  %2479 = vmatpush1.bf16.msra.mxu0 %v2152
  %2480 = vmatprep.subr.bf16.mxu0 0
  %2481 = vmatpush2.bf16.msra.mxu0 0
  %2482 = vmatprep.subr.bf16.mxu0 0
  %2483 = vmatpush2.bf16.msra.mxu0 0
  %2484 = vmatprep.subr.bf16.mxu0 0
  %2485 = vmatpush2.bf16.msra.mxu0 0
  %2486 = vmatprep.subr.bf16.mxu0 0
  %2487 = vmatpush2.bf16.msra.mxu0 0
  %2488 = vmatprep.subr.bf16.mxu0 0
  %2489 = vmatpush2.bf16.msra.mxu0 0
  %2490 = vmatprep.subr.bf16.mxu0 0
  %2491 = vmatpush2.bf16.msra.mxu0 0
  %2492 = vmatprep.subr.bf16.mxu0 0
  %2493 = vmatpush2.bf16.msra.mxu0 0
  %2494 = vmatprep.subr.bf16.mxu0 0
  %2495 = vmatpush2.bf16.msra.mxu0 0
  %2496 = vmatprep.mubr.bf16.mxu0 0
  %2497 = vmatmul.mubr.bf16.gmra.mxu0 %v2462
  %v2498 = vpop.f32.mrf.mxu0
  %v2499 = vadd.f32 0.0, %v2498
  %v2500 = vpop.f32.mrf.mxu0
  %v2501 = vpop.f32.mrf.mxu0
  %v2502 = vpop.f32.mrf.mxu0
  %2503 = vdwg.mxu0
  %2504 = vrot.lane.b32.xlu0 %v2499, 48
  %v2505 = vpop.permute.xlu0 %2504
  %v2506 = vadd.f32 %v2458, %v2505
  %s2507 = scalar_lea.vmem %s15, 16
  %v2508 = vld [vmem:[%s2507] sm:$0xf]
  %v2510 = vsel %vm2155, %v2508, 0
  %2512 = vmatprep.subr.bf16.mxu0 0
  %2513 = vmatpush1.bf16.msra.mxu0 0
  %2514 = vmatprep.subr.bf16.mxu0 0
  %2515 = vmatpush1.bf16.msra.mxu0 0
  %2516 = vmatprep.subr.bf16.mxu0 0
  %2517 = vmatpush1.bf16.msra.mxu0 0
  %2518 = vmatprep.subr.bf16.mxu0 0
  %2519 = vmatpush1.bf16.msra.mxu0 0
  %2520 = vmatprep.subr.bf16.mxu0 0
  %2521 = vmatpush1.bf16.msra.mxu0 0
  %2522 = vmatprep.subr.bf16.mxu0 0
  %2523 = vmatpush1.bf16.msra.mxu0 0
  %2524 = vmatprep.subr.bf16.mxu0 0
  %2525 = vmatpush1.bf16.msra.mxu0 %v2153
  %2526 = vmatprep.subr.bf16.mxu0 0
  %2527 = vmatpush1.bf16.msra.mxu0 %v2152
  %2528 = vmatprep.subr.bf16.mxu0 0
  %2529 = vmatpush2.bf16.msra.mxu0 0
  %2530 = vmatprep.subr.bf16.mxu0 0
  %2531 = vmatpush2.bf16.msra.mxu0 0
  %2532 = vmatprep.subr.bf16.mxu0 0
  %2533 = vmatpush2.bf16.msra.mxu0 0
  %2534 = vmatprep.subr.bf16.mxu0 0
  %2535 = vmatpush2.bf16.msra.mxu0 0
  %2536 = vmatprep.subr.bf16.mxu0 0
  %2537 = vmatpush2.bf16.msra.mxu0 0
  %2538 = vmatprep.subr.bf16.mxu0 0
  %2539 = vmatpush2.bf16.msra.mxu0 0
  %2540 = vmatprep.subr.bf16.mxu0 0
  %2541 = vmatpush2.bf16.msra.mxu0 0
  %2542 = vmatprep.subr.bf16.mxu0 0
  %2543 = vmatpush2.bf16.msra.mxu0 0
  %2544 = vmatprep.mubr.bf16.mxu0 0
  %2545 = vmatmul.mubr.bf16.gmra.mxu0 %v2510
  %v2546 = vpop.f32.mrf.mxu0
  %v2547 = vadd.f32 0.0, %v2546
  %v2548 = vpop.f32.mrf.mxu0
  %v2549 = vpop.f32.mrf.mxu0
  %v2550 = vpop.f32.mrf.mxu0
  %2551 = vdwg.mxu0
  %2552 = vrot.lane.b32.xlu0 %v2547, 64
  %v2553 = vpop.permute.xlu0 %2552
  %v2554 = vadd.f32 %v2506, %v2553
  %s2555 = scalar_lea.vmem %s15, 20
  %v2556 = vld [vmem:[%s2555] sm:$0xf]
  %v2558 = vsel %vm2155, %v2556, 0
  %2560 = vmatprep.subr.bf16.mxu0 0
  %2561 = vmatpush1.bf16.msra.mxu0 0
  %2562 = vmatprep.subr.bf16.mxu0 0
  %2563 = vmatpush1.bf16.msra.mxu0 0
  %2564 = vmatprep.subr.bf16.mxu0 0
  %2565 = vmatpush1.bf16.msra.mxu0 0
  %2566 = vmatprep.subr.bf16.mxu0 0
  %2567 = vmatpush1.bf16.msra.mxu0 0
  %2568 = vmatprep.subr.bf16.mxu0 0
  %2569 = vmatpush1.bf16.msra.mxu0 0
  %2570 = vmatprep.subr.bf16.mxu0 0
  %2571 = vmatpush1.bf16.msra.mxu0 0
  %2572 = vmatprep.subr.bf16.mxu0 0
  %2573 = vmatpush1.bf16.msra.mxu0 %v2153
  %2574 = vmatprep.subr.bf16.mxu0 0
  %2575 = vmatpush1.bf16.msra.mxu0 %v2152
  %2576 = vmatprep.subr.bf16.mxu0 0
  %2577 = vmatpush2.bf16.msra.mxu0 0
  %2578 = vmatprep.subr.bf16.mxu0 0
  %2579 = vmatpush2.bf16.msra.mxu0 0
  %2580 = vmatprep.subr.bf16.mxu0 0
  %2581 = vmatpush2.bf16.msra.mxu0 0
  %2582 = vmatprep.subr.bf16.mxu0 0
  %2583 = vmatpush2.bf16.msra.mxu0 0
  %2584 = vmatprep.subr.bf16.mxu0 0
  %2585 = vmatpush2.bf16.msra.mxu0 0
  %2586 = vmatprep.subr.bf16.mxu0 0
  %2587 = vmatpush2.bf16.msra.mxu0 0
  %2588 = vmatprep.subr.bf16.mxu0 0
  %2589 = vmatpush2.bf16.msra.mxu0 0
  %2590 = vmatprep.subr.bf16.mxu0 0
  %2591 = vmatpush2.bf16.msra.mxu0 0
  %2592 = vmatprep.mubr.bf16.mxu0 0
  %2593 = vmatmul.mubr.bf16.gmra.mxu0 %v2558
  %v2594 = vpop.f32.mrf.mxu0
  %v2595 = vadd.f32 0.0, %v2594
  %v2596 = vpop.f32.mrf.mxu0
  %v2597 = vpop.f32.mrf.mxu0
  %v2598 = vpop.f32.mrf.mxu0
  %2599 = vdwg.mxu0
  %2600 = vrot.lane.b32.xlu0 %v2595, 80
  %v2601 = vpop.permute.xlu0 %2600
  %v2602 = vadd.f32 %v2554, %v2601
  %s2603 = scalar_lea.vmem %s15, 24
  %v2604 = vld [vmem:[%s2603] sm:$0xf]
  %v2606 = vsel %vm2155, %v2604, 0
  %2608 = vmatprep.subr.bf16.mxu0 0
  %2609 = vmatpush1.bf16.msra.mxu0 0
  %2610 = vmatprep.subr.bf16.mxu0 0
  %2611 = vmatpush1.bf16.msra.mxu0 0
  %2612 = vmatprep.subr.bf16.mxu0 0
  %2613 = vmatpush1.bf16.msra.mxu0 0
  %2614 = vmatprep.subr.bf16.mxu0 0
  %2615 = vmatpush1.bf16.msra.mxu0 0
  %2616 = vmatprep.subr.bf16.mxu0 0
  %2617 = vmatpush1.bf16.msra.mxu0 0
  %2618 = vmatprep.subr.bf16.mxu0 0
  %2619 = vmatpush1.bf16.msra.mxu0 0
  %2620 = vmatprep.subr.bf16.mxu0 0
  %2621 = vmatpush1.bf16.msra.mxu0 %v2153
  %2622 = vmatprep.subr.bf16.mxu0 0
  %2623 = vmatpush1.bf16.msra.mxu0 %v2152
  %2624 = vmatprep.subr.bf16.mxu0 0
  %2625 = vmatpush2.bf16.msra.mxu0 0
  %2626 = vmatprep.subr.bf16.mxu0 0
  %2627 = vmatpush2.bf16.msra.mxu0 0
  %2628 = vmatprep.subr.bf16.mxu0 0
  %2629 = vmatpush2.bf16.msra.mxu0 0
  %2630 = vmatprep.subr.bf16.mxu0 0
  %2631 = vmatpush2.bf16.msra.mxu0 0
  %2632 = vmatprep.subr.bf16.mxu0 0
  %2633 = vmatpush2.bf16.msra.mxu0 0
  %2634 = vmatprep.subr.bf16.mxu0 0
  %2635 = vmatpush2.bf16.msra.mxu0 0
  %2636 = vmatprep.subr.bf16.mxu0 0
  %2637 = vmatpush2.bf16.msra.mxu0 0
  %2638 = vmatprep.subr.bf16.mxu0 0
  %2639 = vmatpush2.bf16.msra.mxu0 0
  %2640 = vmatprep.mubr.bf16.mxu0 0
  %2641 = vmatmul.mubr.bf16.gmra.mxu0 %v2606
  %v2642 = vpop.f32.mrf.mxu0
  %v2643 = vadd.f32 0.0, %v2642
  %v2644 = vpop.f32.mrf.mxu0
  %v2645 = vpop.f32.mrf.mxu0
  %v2646 = vpop.f32.mrf.mxu0
  %2647 = vdwg.mxu0
  %2648 = vrot.lane.b32.xlu0 %v2643, 96
  %v2649 = vpop.permute.xlu0 %2648
  %v2650 = vadd.f32 %v2602, %v2649
  %s2651 = scalar_lea.vmem %s15, 28
  %v2652 = vld [vmem:[%s2651] sm:$0xf]
  %v2654 = vsel %vm2155, %v2652, 0
  %2656 = vmatprep.subr.bf16.mxu0 0
  %2657 = vmatpush1.bf16.msra.mxu0 0
  %2658 = vmatprep.subr.bf16.mxu0 0
  %2659 = vmatpush1.bf16.msra.mxu0 0
  %2660 = vmatprep.subr.bf16.mxu0 0
  %2661 = vmatpush1.bf16.msra.mxu0 0
  %2662 = vmatprep.subr.bf16.mxu0 0
  %2663 = vmatpush1.bf16.msra.mxu0 0
  %2664 = vmatprep.subr.bf16.mxu0 0
  %2665 = vmatpush1.bf16.msra.mxu0 0
  %2666 = vmatprep.subr.bf16.mxu0 0
  %2667 = vmatpush1.bf16.msra.mxu0 0
  %2668 = vmatprep.subr.bf16.mxu0 0
  %2669 = vmatpush1.bf16.msra.mxu0 %v2153
  %2670 = vmatprep.subr.bf16.mxu0 0
  %2671 = vmatpush1.bf16.msra.mxu0 %v2152
  %2672 = vmatprep.subr.bf16.mxu0 0
  %2673 = vmatpush2.bf16.msra.mxu0 0
  %2674 = vmatprep.subr.bf16.mxu0 0
  %2675 = vmatpush2.bf16.msra.mxu0 0
  %2676 = vmatprep.subr.bf16.mxu0 0
  %2677 = vmatpush2.bf16.msra.mxu0 0
  %2678 = vmatprep.subr.bf16.mxu0 0
  %2679 = vmatpush2.bf16.msra.mxu0 0
  %2680 = vmatprep.subr.bf16.mxu0 0
  %2681 = vmatpush2.bf16.msra.mxu0 0
  %2682 = vmatprep.subr.bf16.mxu0 0
  %2683 = vmatpush2.bf16.msra.mxu0 0
  %2684 = vmatprep.subr.bf16.mxu0 0
  %2685 = vmatpush2.bf16.msra.mxu0 0
  %2686 = vmatprep.subr.bf16.mxu0 0
  %2687 = vmatpush2.bf16.msra.mxu0 0
  %2688 = vmatprep.mubr.bf16.mxu0 0
  %2689 = vmatmul.mubr.bf16.gmra.mxu0 %v2654
  %v2690 = vpop.f32.mrf.mxu0
  %v2691 = vadd.f32 0.0, %v2690
  %v2692 = vpop.f32.mrf.mxu0
  %v2693 = vpop.f32.mrf.mxu0
  %v2694 = vpop.f32.mrf.mxu0
  %2695 = vdwg.mxu0
  %2696 = vrot.lane.b32.xlu0 %v2691, 112
  %v2697 = vpop.permute.xlu0 %2696
  %v2698 = vadd.f32 %v2650, %v2697
  %s2699 = scalar_lea.vmem %s15, 32
  %v2700 = vld [vmem:[%s2699] sm:$0xf]
  %v2702 = vsel %vm2155, %v2700, 0
  %2704 = vmatprep.subr.bf16.mxu0 0
  %2705 = vmatpush1.bf16.msra.mxu0 0
  %2706 = vmatprep.subr.bf16.mxu0 0
  %2707 = vmatpush1.bf16.msra.mxu0 0
  %2708 = vmatprep.subr.bf16.mxu0 0
  %2709 = vmatpush1.bf16.msra.mxu0 0
  %2710 = vmatprep.subr.bf16.mxu0 0
  %2711 = vmatpush1.bf16.msra.mxu0 0
  %2712 = vmatprep.subr.bf16.mxu0 0
  %2713 = vmatpush1.bf16.msra.mxu0 0
  %2714 = vmatprep.subr.bf16.mxu0 0
  %2715 = vmatpush1.bf16.msra.mxu0 0
  %2716 = vmatprep.subr.bf16.mxu0 0
  %2717 = vmatpush1.bf16.msra.mxu0 %v2153
  %2718 = vmatprep.subr.bf16.mxu0 0
  %2719 = vmatpush1.bf16.msra.mxu0 %v2152
  %2720 = vmatprep.subr.bf16.mxu0 0
  %2721 = vmatpush2.bf16.msra.mxu0 0
  %2722 = vmatprep.subr.bf16.mxu0 0
  %2723 = vmatpush2.bf16.msra.mxu0 0
  %2724 = vmatprep.subr.bf16.mxu0 0
  %2725 = vmatpush2.bf16.msra.mxu0 0
  %2726 = vmatprep.subr.bf16.mxu0 0
  %2727 = vmatpush2.bf16.msra.mxu0 0
  %2728 = vmatprep.subr.bf16.mxu0 0
  %2729 = vmatpush2.bf16.msra.mxu0 0
  %2730 = vmatprep.subr.bf16.mxu0 0
  %2731 = vmatpush2.bf16.msra.mxu0 0
  %2732 = vmatprep.subr.bf16.mxu0 0
  %2733 = vmatpush2.bf16.msra.mxu0 0
  %2734 = vmatprep.subr.bf16.mxu0 0
  %2735 = vmatpush2.bf16.msra.mxu0 0
  %2736 = vmatprep.mubr.bf16.mxu0 0
  %2737 = vmatmul.mubr.bf16.gmra.mxu0 %v2702
  %v2738 = vpop.f32.mrf.mxu0
  %v2739 = vadd.f32 0.0, %v2738
  %v2740 = vpop.f32.mrf.mxu0
  %v2741 = vpop.f32.mrf.mxu0
  %v2742 = vpop.f32.mrf.mxu0
  %2743 = vdwg.mxu0
  %v2744 = vpack.c.bf16 %v2698, %v2698
  %v2745 = vpack.c.bf16 %v2739, %v2739
  %v2746 = vld [vmem:[%s19] sm:$0xf]
  %v2747 = vld [vmem:[%s19 + $0x4] sm:$0xf]
  %v2748 = vld [vmem:[%s19 + $0x8] sm:$0xf]
  %v2749 = vld [vmem:[%s19 + $0xc] sm:$0xf]
  %v2750 = vld [vmem:[%s19 + $0x10] sm:$0xf]
  %v2751 = vld [vmem:[%s19 + $0x14] sm:$0xf]
  %v2752 = vld [vmem:[%s19 + $0x18] sm:$0xf]
  %v2753 = vld [vmem:[%s19 + $0x1c] sm:$0xf]
  %v2754 = vld [vmem:[%s19 + $0x20] sm:$0xf]
  %v2755 = vld [vmem:[%s19 + $0x24] sm:$0xf]
  %v2756 = vld [vmem:[%s19 + $0x28] sm:$0xf]
  %v2757 = vld [vmem:[%s19 + $0x2c] sm:$0xf]
  %v2758 = vld [vmem:[%s19 + $0x30] sm:$0xf]
  %v2759 = vld [vmem:[%s19 + $0x34] sm:$0xf]
  %v2760 = vld [vmem:[%s19 + $0x38] sm:$0xf]
  %v2761 = vld [vmem:[%s19 + $0x3c] sm:$0xf]
  %v2762 = vld [vmem:[%s19 + $0x40] sm:$0xf]
  %v2763 = vld [vmem:[%s19 + $0x44] sm:$0xf]
  %v2764 = vld [vmem:[%s19 + $0x48] sm:$0xf]
  %v2765 = vld [vmem:[%s19 + $0x4c] sm:$0xf]
  %v2766 = vld [vmem:[%s19 + $0x50] sm:$0xf]
  %v2767 = vld [vmem:[%s19 + $0x54] sm:$0xf]
  %v2768 = vld [vmem:[%s19 + $0x58] sm:$0xf]
  %v2769 = vld [vmem:[%s19 + $0x5c] sm:$0xf]
  %v2770 = vld [vmem:[%s19 + $0x60] sm:$0xf]
  %v2771 = vld [vmem:[%s19 + $0x64] sm:$0xf]
  %v2772 = vld [vmem:[%s19 + $0x68] sm:$0xf]
  %v2773 = vld [vmem:[%s19 + $0x6c] sm:$0xf]
  %v2774 = vld [vmem:[%s19 + $0x70] sm:$0xf]
  %v2775 = vld [vmem:[%s19 + $0x74] sm:$0xf]
  %v2776 = vld [vmem:[%s19 + $0x78] sm:$0xf]
  %v2777 = vld [vmem:[%s19 + $0x7c] sm:$0xf]
  %v2810 = vunpack.c.l.b16 %v2746
  %v2811 = vunpack.c.l.b16 %v2747
  %v2812 = vunpack.c.l.b16 %v2748
  %v2813 = vunpack.c.l.b16 %v2749
  %v2814 = vunpack.c.l.b16 %v2750
  %v2815 = vunpack.c.l.b16 %v2751
  %v2816 = vunpack.c.l.b16 %v2752
  %v2817 = vunpack.c.l.b16 %v2753
  %v2818 = vunpack.c.l.b16 %v2754
  %v2819 = vunpack.c.l.b16 %v2755
  %v2820 = vunpack.c.l.b16 %v2756
  %v2821 = vunpack.c.l.b16 %v2757
  %v2822 = vunpack.c.l.b16 %v2758
  %v2823 = vunpack.c.l.b16 %v2759
  %v2824 = vunpack.c.l.b16 %v2760
  %v2825 = vunpack.c.l.b16 %v2761
  %v2826 = vunpack.c.l.b16 %v2762
  %v2827 = vunpack.c.l.b16 %v2763
  %v2828 = vunpack.c.l.b16 %v2764
  %v2829 = vunpack.c.l.b16 %v2765
  %v2830 = vunpack.c.l.b16 %v2766
  %v2831 = vunpack.c.l.b16 %v2767
  %v2832 = vunpack.c.l.b16 %v2768
  %v2833 = vunpack.c.l.b16 %v2769
  %v2834 = vunpack.c.l.b16 %v2770
  %v2835 = vunpack.c.l.b16 %v2771
  %v2836 = vunpack.c.l.b16 %v2772
  %v2837 = vunpack.c.l.b16 %v2773
  %v2838 = vunpack.c.l.b16 %v2774
  %v2839 = vunpack.c.l.b16 %v2775
  %v2840 = vunpack.c.l.b16 %v2776
  %v2841 = vunpack.c.l.b16 %v2777
  %v2842 = vpack.c.b16 %v2811, %v2810
  %v2843 = vpack.c.b16 %v2813, %v2812
  %v2844 = vpack.c.b16 %v2815, %v2814
  %v2845 = vpack.c.b16 %v2817, %v2816
  %v2846 = vpack.c.b16 %v2819, %v2818
  %v2847 = vpack.c.b16 %v2821, %v2820
  %v2848 = vpack.c.b16 %v2823, %v2822
  %v2849 = vpack.c.b16 %v2825, %v2824
  %v2850 = vpack.c.b16 %v2827, %v2826
  %v2851 = vpack.c.b16 %v2829, %v2828
  %v2852 = vpack.c.b16 %v2831, %v2830
  %v2853 = vpack.c.b16 %v2833, %v2832
  %v2854 = vpack.c.b16 %v2835, %v2834
  %v2855 = vpack.c.b16 %v2837, %v2836
  %v2856 = vpack.c.b16 %v2839, %v2838
  %v2857 = vpack.c.b16 %v2841, %v2840
  %2874 = vmatprep.subr.bf16.mxu0 0
  %2875 = vmatpush1.bf16.msra.mxu0 %v2849
  %2876 = vmatprep.subr.bf16.mxu0 0
  %2877 = vmatpush1.bf16.msra.mxu0 %v2848
  %2878 = vmatprep.subr.bf16.mxu0 0
  %2879 = vmatpush1.bf16.msra.mxu0 %v2847
  %2880 = vmatprep.subr.bf16.mxu0 0
  %2881 = vmatpush1.bf16.msra.mxu0 %v2846
  %2882 = vmatprep.subr.bf16.mxu0 0
  %2883 = vmatpush1.bf16.msra.mxu0 %v2845
  %2884 = vmatprep.subr.bf16.mxu0 0
  %2885 = vmatpush1.bf16.msra.mxu0 %v2844
  %2886 = vmatprep.subr.bf16.mxu0 0
  %2887 = vmatpush1.bf16.msra.mxu0 %v2843
  %2888 = vmatprep.subr.bf16.mxu0 0
  %2889 = vmatpush1.bf16.msra.mxu0 %v2842
  %2890 = vmatprep.subr.bf16.mxu0 0
  %2891 = vmatpush2.bf16.msra.mxu0 %v2857
  %2892 = vmatprep.subr.bf16.mxu0 0
  %2893 = vmatpush2.bf16.msra.mxu0 %v2856
  %2894 = vmatprep.subr.bf16.mxu0 0
  %2895 = vmatpush2.bf16.msra.mxu0 %v2855
  %2896 = vmatprep.subr.bf16.mxu0 0
  %2897 = vmatpush2.bf16.msra.mxu0 %v2854
  %2898 = vmatprep.subr.bf16.mxu0 0
  %2899 = vmatpush2.bf16.msra.mxu0 %v2853
  %2900 = vmatprep.subr.bf16.mxu0 0
  %2901 = vmatpush2.bf16.msra.mxu0 %v2852
  %2902 = vmatprep.subr.bf16.mxu0 0
  %2903 = vmatpush2.bf16.msra.mxu0 %v2851
  %2904 = vmatprep.subr.bf16.mxu0 0
  %2905 = vmatpush2.bf16.msra.mxu0 %v2850
  %2906 = vmatprep.mubr.bf16.mxu0 %v2745
  %2907 = vmatmul.mubr.bf16.gmra.mxu0 %v2744
  %v2908 = vpop.f32.mrf.mxu0
  %v2909 = vadd.f32 0.0, %v2908
  %v2910 = vpop.f32.mrf.mxu0
  %v2911 = vpop.f32.mrf.mxu0
  %v2912 = vpop.f32.mrf.mxu0
  %2913 = vdwg.mxu0
  %v2914 = vld [vmem:[%s13] sm:$0x1]
  %v2916 = vlaneseq
  %v2917 = vshrl.u32 %v2916, 7
  %v2918 = vsub.s32 0, %v2917
  %v2919 = vrot.slane %v2914, %v2918
  %v2921 = vmul.f32 %v2909, %v2919
  %v2922 = vld [vmem:[%s17] sm:$0x1]
  %v2924 = vlaneseq
  %v2925 = vshrl.u32 %v2924, 7
  %v2926 = vsub.s32 0, %v2925
  %v2927 = vrot.slane %v2922, %v2926
  %v2929 = vadd.f32 %v2921, %v2927
  %v2930 = vmax.f32 %v2929, 0.0
  %v2931 = vand.u32 %v468, 1
  %v2932 = vshra.s32 %v1311, 1
  %v2933 = vrot.slane %v2930, 5
  %vm2934 = vcmp.ge.s32.totalorder %v2932, 1
  %vm2935 = vcmp.ge.s32.totalorder %v2931, 1
  %vm2936 = vmand %vm2934, %vm2935
  %v2937 = vsel %vm2936, 1, 0
  %v2938 = vcvt.s32.f32 %v2937
  %v2939 = vmul.f32 %v2933, %v2938
  %v2940 = vrot.slane %v2930, 6
  %v2941 = vsel %vm2934, 1, 0
  %v2942 = vcvt.s32.f32 %v2941
  %v2943 = vmul.f32 %v2940, %v2942
  %2944 = vrot.lane.b32.xlu0 %v2943, 32
  %v2945 = vpop.permute.xlu0 %2944
  %v2946 = vadd.f32 %v2939, %v2945
  %v2947 = vrot.slane %v2930, 7
  %vm2948 = vcmp.lt.s32.totalorder %v2931, 1
  %vm2949 = vmand %vm2934, %vm2948
  %v2950 = vsel %vm2949, 1, 0
  %v2951 = vcvt.s32.f32 %v2950
  %v2952 = vmul.f32 %v2947, %v2951
  %2953 = vrot.lane.b32.xlu0 %v2952, 64
  %v2954 = vpop.permute.xlu0 %2953
  %v2955 = vadd.f32 %v2946, %v2954
  %v2956 = vsel %vm2935, 1, 0
  %v2957 = vcvt.s32.f32 %v2956
  %v2958 = vmul.f32 %v2947, %v2957
  %2959 = vrot.lane.b32.xlu0 %v2958, 96
  %v2960 = vpop.permute.xlu0 %2959
  %v2961 = vadd.f32 %v2955, %v2960
  %v2962 = vrot.slane %v2930, 1
  %v2963 = vsel %vm2948, 1, 0
  %v2964 = vcvt.s32.f32 %v2963
  %v2965 = vmul.f32 %v2962, %v2964
  %2966 = vrot.lane.b32.xlu0 %v2965, 32
  %v2967 = vpop.permute.xlu0 %2966
  %v2968 = vadd.f32 %v2930, %v2967
  %vm2969 = vcmp.lt.s32.totalorder %v2932, 1
  %vm2970 = vmand %vm2969, %vm2935
  %v2971 = vsel %vm2970, 1, 0
  %v2972 = vcvt.s32.f32 %v2971
  %v2973 = vmul.f32 %v2962, %v2972
  %2974 = vrot.lane.b32.xlu0 %v2973, 64
  %v2975 = vpop.permute.xlu0 %2974
  %v2976 = vadd.f32 %v2968, %v2975
  %v2977 = vrot.slane %v2930, 2
  %v2978 = vsel %vm2969, 1, 0
  %v2979 = vcvt.s32.f32 %v2978
  %v2980 = vmul.f32 %v2977, %v2979
  %2981 = vrot.lane.b32.xlu0 %v2980, 96
  %v2982 = vpop.permute.xlu0 %2981
  %v2983 = vadd.f32 %v2976, %v2982
  %v2984 = vrot.slane %v2930, 3
  %vm2985 = vmand %vm2969, %vm2948
  %v2986 = vsel %vm2985, 1, 0
  %v2987 = vcvt.s32.f32 %v2986
  %v2988 = vmul.f32 %v2984, %v2987
  %v2989 = vpack.c.bf16 %v2961, %v2961
  %v2990 = vpack.c.bf16 %v2983, %v2983
  %v2991 = vpack.c.bf16 %v2988, %v2988
  %v2992 = vld [vmem:[%s25] sm:$0xf]
  %v2993 = vld [vmem:[%s25 + $0x4] sm:$0xf]
  %v2994 = vld [vmem:[%s25 + $0x8] sm:$0xf]
  %v2995 = vld [vmem:[%s25 + $0xc] sm:$0xf]
  %v2996 = vld [vmem:[%s25 + $0x10] sm:$0xf]
  %v2997 = vld [vmem:[%s25 + $0x14] sm:$0xf]
  %v2998 = vld [vmem:[%s25 + $0x18] sm:$0xf]
  %v2999 = vld [vmem:[%s25 + $0x1c] sm:$0xf]
  %v3000 = vld [vmem:[%s25 + $0x20] sm:$0xf]
  %v3001 = vld [vmem:[%s25 + $0x24] sm:$0xf]
  %v3002 = vld [vmem:[%s25 + $0x28] sm:$0xf]
  %v3003 = vld [vmem:[%s25 + $0x2c] sm:$0xf]
  %v3004 = vld [vmem:[%s25 + $0x30] sm:$0xf]
  %v3005 = vld [vmem:[%s25 + $0x34] sm:$0xf]
  %v3006 = vld [vmem:[%s25 + $0x38] sm:$0xf]
  %v3007 = vld [vmem:[%s25 + $0x3c] sm:$0xf]
  %v3008 = vld [vmem:[%s25 + $0x40] sm:$0xf]
  %v3009 = vld [vmem:[%s25 + $0x44] sm:$0xf]
  %v3010 = vld [vmem:[%s25 + $0x48] sm:$0xf]
  %v3011 = vld [vmem:[%s25 + $0x4c] sm:$0xf]
  %v3012 = vld [vmem:[%s25 + $0x50] sm:$0xf]
  %v3013 = vld [vmem:[%s25 + $0x54] sm:$0xf]
  %v3014 = vld [vmem:[%s25 + $0x58] sm:$0xf]
  %v3015 = vld [vmem:[%s25 + $0x5c] sm:$0xf]
  %v3016 = vld [vmem:[%s25 + $0x60] sm:$0xf]
  %v3017 = vld [vmem:[%s25 + $0x64] sm:$0xf]
  %v3018 = vld [vmem:[%s25 + $0x68] sm:$0xf]
  %v3019 = vld [vmem:[%s25 + $0x6c] sm:$0xf]
  %v3020 = vld [vmem:[%s25 + $0x70] sm:$0xf]
  %v3021 = vld [vmem:[%s25 + $0x74] sm:$0xf]
  %v3022 = vld [vmem:[%s25 + $0x78] sm:$0xf]
  %v3023 = vld [vmem:[%s25 + $0x7c] sm:$0xf]
  %v3024 = vld [vmem:[%s25 + $0x80] sm:$0xf]
  %v3025 = vld [vmem:[%s25 + $0x84] sm:$0xf]
  %v3026 = vld [vmem:[%s25 + $0x88] sm:$0xf]
  %v3027 = vld [vmem:[%s25 + $0x8c] sm:$0xf]
  %v3028 = vld [vmem:[%s25 + $0x90] sm:$0xf]
  %v3029 = vld [vmem:[%s25 + $0x94] sm:$0xf]
  %v3030 = vld [vmem:[%s25 + $0x98] sm:$0xf]
  %v3031 = vld [vmem:[%s25 + $0x9c] sm:$0xf]
  %v3032 = vld [vmem:[%s25 + $0xa0] sm:$0xf]
  %v3033 = vld [vmem:[%s25 + $0xa4] sm:$0xf]
  %v3034 = vld [vmem:[%s25 + $0xa8] sm:$0xf]
  %v3035 = vld [vmem:[%s25 + $0xac] sm:$0xf]
  %v3036 = vld [vmem:[%s25 + $0xb0] sm:$0xf]
  %v3037 = vld [vmem:[%s25 + $0xb4] sm:$0xf]
  %v3038 = vld [vmem:[%s25 + $0xb8] sm:$0xf]
  %v3039 = vld [vmem:[%s25 + $0xbc] sm:$0xf]
  %v3088 = vunpack.c.l.b16 %v2992
  %v3089 = vunpack.c.l.b16 %v2993
  %v3090 = vunpack.c.l.b16 %v2994
  %v3091 = vunpack.c.l.b16 %v2995
  %v3092 = vunpack.c.l.b16 %v2996
  %v3093 = vunpack.c.l.b16 %v2997
  %v3094 = vunpack.c.l.b16 %v2998
  %v3095 = vunpack.c.l.b16 %v2999
  %v3096 = vunpack.c.l.b16 %v3000
  %v3097 = vunpack.c.l.b16 %v3001
  %v3098 = vunpack.c.l.b16 %v3002
  %v3099 = vunpack.c.l.b16 %v3003
  %v3100 = vunpack.c.l.b16 %v3004
  %v3101 = vunpack.c.l.b16 %v3005
  %v3102 = vunpack.c.l.b16 %v3006
  %v3103 = vunpack.c.l.b16 %v3007
  %v3104 = vunpack.c.l.b16 %v3008
  %v3105 = vunpack.c.l.b16 %v3009
  %v3106 = vunpack.c.l.b16 %v3010
  %v3107 = vunpack.c.l.b16 %v3011
  %v3108 = vunpack.c.l.b16 %v3012
  %v3109 = vunpack.c.l.b16 %v3013
  %v3110 = vunpack.c.l.b16 %v3014
  %v3111 = vunpack.c.l.b16 %v3015
  %v3112 = vunpack.c.l.b16 %v3016
  %v3113 = vunpack.c.l.b16 %v3017
  %v3114 = vunpack.c.l.b16 %v3018
  %v3115 = vunpack.c.l.b16 %v3019
  %v3116 = vunpack.c.l.b16 %v3020
  %v3117 = vunpack.c.l.b16 %v3021
  %v3118 = vunpack.c.l.b16 %v3022
  %v3119 = vunpack.c.l.b16 %v3023
  %v3120 = vunpack.c.l.b16 %v3024
  %v3121 = vunpack.c.l.b16 %v3025
  %v3122 = vunpack.c.l.b16 %v3026
  %v3123 = vunpack.c.l.b16 %v3027
  %v3124 = vunpack.c.l.b16 %v3028
  %v3125 = vunpack.c.l.b16 %v3029
  %v3126 = vunpack.c.l.b16 %v3030
  %v3127 = vunpack.c.l.b16 %v3031
  %v3128 = vunpack.c.l.b16 %v3032
  %v3129 = vunpack.c.l.b16 %v3033
  %v3130 = vunpack.c.l.b16 %v3034
  %v3131 = vunpack.c.l.b16 %v3035
  %v3132 = vunpack.c.l.b16 %v3036
  %v3133 = vunpack.c.l.b16 %v3037
  %v3134 = vunpack.c.l.b16 %v3038
  %v3135 = vunpack.c.l.b16 %v3039
  %v3136 = vpack.c.b16 %v3089, %v3088
  %v3137 = vpack.c.b16 %v3091, %v3090
  %v3138 = vpack.c.b16 %v3093, %v3092
  %v3139 = vpack.c.b16 %v3095, %v3094
  %v3140 = vpack.c.b16 %v3097, %v3096
  %v3141 = vpack.c.b16 %v3099, %v3098
  %v3142 = vpack.c.b16 %v3101, %v3100
  %v3143 = vpack.c.b16 %v3103, %v3102
  %v3144 = vpack.c.b16 %v3105, %v3104
  %v3145 = vpack.c.b16 %v3107, %v3106
  %v3146 = vpack.c.b16 %v3109, %v3108
  %v3147 = vpack.c.b16 %v3111, %v3110
  %v3148 = vpack.c.b16 %v3113, %v3112
  %v3149 = vpack.c.b16 %v3115, %v3114
  %v3150 = vpack.c.b16 %v3117, %v3116
  %v3151 = vpack.c.b16 %v3119, %v3118
  %v3152 = vpack.c.b16 %v3121, %v3120
  %v3153 = vpack.c.b16 %v3123, %v3122
  %v3154 = vpack.c.b16 %v3125, %v3124
  %v3155 = vpack.c.b16 %v3127, %v3126
  %v3156 = vpack.c.b16 %v3129, %v3128
  %v3157 = vpack.c.b16 %v3131, %v3130
  %v3158 = vpack.c.b16 %v3133, %v3132
  %v3159 = vpack.c.b16 %v3135, %v3134
  %3184 = vmatprep.subr.bf16.mxu0 0
  %3185 = vmatpush1.bf16.msra.mxu0 %v3143
  %3186 = vmatprep.subr.bf16.mxu0 0
  %3187 = vmatpush1.bf16.msra.mxu0 %v3142
  %3188 = vmatprep.subr.bf16.mxu0 0
  %3189 = vmatpush1.bf16.msra.mxu0 %v3141
  %3190 = vmatprep.subr.bf16.mxu0 0
  %3191 = vmatpush1.bf16.msra.mxu0 %v3140
  %3192 = vmatprep.subr.bf16.mxu0 0
  %3193 = vmatpush1.bf16.msra.mxu0 %v3139
  %3194 = vmatprep.subr.bf16.mxu0 0
  %3195 = vmatpush1.bf16.msra.mxu0 %v3138
  %3196 = vmatprep.subr.bf16.mxu0 0
  %3197 = vmatpush1.bf16.msra.mxu0 %v3137
  %3198 = vmatprep.subr.bf16.mxu0 0
  %3199 = vmatpush1.bf16.msra.mxu0 %v3136
  %3200 = vmatprep.subr.bf16.mxu0 0
  %3201 = vmatpush2.bf16.msra.mxu0 %v3151
  %3202 = vmatprep.subr.bf16.mxu0 0
  %3203 = vmatpush2.bf16.msra.mxu0 %v3150
  %3204 = vmatprep.subr.bf16.mxu0 0
  %3205 = vmatpush2.bf16.msra.mxu0 %v3149
  %3206 = vmatprep.subr.bf16.mxu0 0
  %3207 = vmatpush2.bf16.msra.mxu0 %v3148
  %3208 = vmatprep.subr.bf16.mxu0 0
  %3209 = vmatpush2.bf16.msra.mxu0 %v3147
  %3210 = vmatprep.subr.bf16.mxu0 0
  %3211 = vmatpush2.bf16.msra.mxu0 %v3146
  %3212 = vmatprep.subr.bf16.mxu0 0
  %3213 = vmatpush2.bf16.msra.mxu0 %v3145
  %3214 = vmatprep.subr.bf16.mxu0 0
  %3215 = vmatpush2.bf16.msra.mxu0 %v3144
  %3216 = vmatprep.mubr.bf16.mxu0 %v2990
  %3217 = vmatmul.mubr.bf16.gmra.mxu0 %v2989
  %v3218 = vpop.f32.mrf.mxu0
  %v3219 = vadd.f32 0.0, %v3218
  %v3220 = vpop.f32.mrf.mxu0
  %v3221 = vpop.f32.mrf.mxu0
  %v3222 = vpop.f32.mrf.mxu0
  %3223 = vdwg.mxu0
  %3224 = vmatprep.subr.bf16.mxu0 0
  %3225 = vmatpush1.bf16.msra.mxu0 %v3159
  %3226 = vmatprep.subr.bf16.mxu0 0
  %3227 = vmatpush1.bf16.msra.mxu0 %v3158
  %3228 = vmatprep.subr.bf16.mxu0 0
  %3229 = vmatpush1.bf16.msra.mxu0 %v3157
  %3230 = vmatprep.subr.bf16.mxu0 0
  %3231 = vmatpush1.bf16.msra.mxu0 %v3156
  %3232 = vmatprep.subr.bf16.mxu0 0
  %3233 = vmatpush1.bf16.msra.mxu0 %v3155
  %3234 = vmatprep.subr.bf16.mxu0 0
  %3235 = vmatpush1.bf16.msra.mxu0 %v3154
  %3236 = vmatprep.subr.bf16.mxu0 0
  %3237 = vmatpush1.bf16.msra.mxu0 %v3153
  %3238 = vmatprep.subr.bf16.mxu0 0
  %3239 = vmatpush1.bf16.msra.mxu0 %v3152
  %3240 = vmatprep.subr.bf16.mxu0 0
  %3241 = vmatpush2.bf16.msra.mxu0 0
  %3242 = vmatprep.subr.bf16.mxu0 0
  %3243 = vmatpush2.bf16.msra.mxu0 0
  %3244 = vmatprep.subr.bf16.mxu0 0
  %3245 = vmatpush2.bf16.msra.mxu0 0
  %3246 = vmatprep.subr.bf16.mxu0 0
  %3247 = vmatpush2.bf16.msra.mxu0 0
  %3248 = vmatprep.subr.bf16.mxu0 0
  %3249 = vmatpush2.bf16.msra.mxu0 0
  %3250 = vmatprep.subr.bf16.mxu0 0
  %3251 = vmatpush2.bf16.msra.mxu0 0
  %3252 = vmatprep.subr.bf16.mxu0 0
  %3253 = vmatpush2.bf16.msra.mxu0 0
  %3254 = vmatprep.subr.bf16.mxu0 0
  %3255 = vmatpush2.bf16.msra.mxu0 0
  %3256 = vmatprep.mubr.bf16.mxu0 0
  %3257 = vmatmul.mubr.bf16.gmra.mxu0 %v2991
  %v3258 = vpop.f32.mrf.mxu0
  %v3259 = vadd.f32 %v3219, %v3258
  %v3260 = vpop.f32.mrf.mxu0
  %v3261 = vpop.f32.mrf.mxu0
  %v3262 = vpop.f32.mrf.mxu0
  %3263 = vdwg.mxu0
  %v3264 = vld [vmem:[%s21] sm:$0x1]
  %v3266 = vlaneseq
  %v3267 = vshrl.u32 %v3266, 7
  %v3268 = vsub.s32 0, %v3267
  %v3269 = vrot.slane %v3264, %v3268
  %v3271 = vmul.f32 %v3259, %v3269
  %v3272 = vld [vmem:[%s23] sm:$0x1]
  %v3274 = vlaneseq
  %v3275 = vshrl.u32 %v3274, 7
  %v3276 = vsub.s32 0, %v3275
  %v3277 = vrot.slane %v3272, %v3276
  %v3279 = vadd.f32 %v3271, %v3277
  %v3280 = vadd.f32 %v3279, %v2319
  %v3281 = vmax.f32 %v3280, 0.0
  %v3282 = vpack.c.bf16 %v3281, %v3281
  %v3283 = vld [vmem:[%s51] sm:$0xf]
  %vm3284 = vcmask 64512
  %v3286 = vsel %vm3284, %v3283, 0
  %vm3288 = vcmask 1043456
  %v3290 = vsel %vm3288, %v3282, 0
  %3292 = vmatprep.subr.bf16.mxu0 0
  %3293 = vmatpush1.bf16.msra.mxu0 0
  %3294 = vmatprep.subr.bf16.mxu0 0
  %3295 = vmatpush1.bf16.msra.mxu0 0
  %3296 = vmatprep.subr.bf16.mxu0 0
  %3297 = vmatpush1.bf16.msra.mxu0 0
  %3298 = vmatprep.subr.bf16.mxu0 0
  %3299 = vmatpush1.bf16.msra.mxu0 0
  %3300 = vmatprep.subr.bf16.mxu0 0
  %3301 = vmatpush1.bf16.msra.mxu0 0
  %3302 = vmatprep.subr.bf16.mxu0 0
  %3303 = vmatpush1.bf16.msra.mxu0 0
  %3304 = vmatprep.subr.bf16.mxu0 0
  %3305 = vmatpush1.bf16.msra.mxu0 0
  %3306 = vmatprep.subr.bf16.mxu0 0
  %3307 = vmatpush1.bf16.msra.mxu0 %v3290
  %3308 = vmatprep.subr.bf16.mxu0 0
  %3309 = vmatpush2.bf16.msra.mxu0 0
  %3310 = vmatprep.subr.bf16.mxu0 0
  %3311 = vmatpush2.bf16.msra.mxu0 0
  %3312 = vmatprep.subr.bf16.mxu0 0
  %3313 = vmatpush2.bf16.msra.mxu0 0
  %3314 = vmatprep.subr.bf16.mxu0 0
  %3315 = vmatpush2.bf16.msra.mxu0 0
  %3316 = vmatprep.subr.bf16.mxu0 0
  %3317 = vmatpush2.bf16.msra.mxu0 0
  %3318 = vmatprep.subr.bf16.mxu0 0
  %3319 = vmatpush2.bf16.msra.mxu0 0
  %3320 = vmatprep.subr.bf16.mxu0 0
  %3321 = vmatpush2.bf16.msra.mxu0 0
  %3322 = vmatprep.subr.bf16.mxu0 0
  %3323 = vmatpush2.bf16.msra.mxu0 0
  %3324 = vmatprep.mubr.bf16.mxu0 0
  %3325 = vmatmul.mubr.bf16.gmra.mxu0 %v3286
  %v3326 = vpop.f32.mrf.mxu0
  %v3327 = vadd.f32 0.0, %v3326
  %v3328 = vpop.f32.mrf.mxu0
  %v3329 = vpop.f32.mrf.mxu0
  %v3330 = vpop.f32.mrf.mxu0
  %3331 = vdwg.mxu0
  %v3332 = vpack.c.bf16 %v3327, %v3327
  %v3333 = vld [vmem:[%s55] sm:$0xf]
  %v3334 = vld [vmem:[%s55 + $0x4] sm:$0xf]
  %v3335 = vld [vmem:[%s55 + $0x8] sm:$0xf]
  %v3336 = vld [vmem:[%s55 + $0xc] sm:$0xf]
  %v3337 = vld [vmem:[%s55 + $0x10] sm:$0xf]
  %v3338 = vld [vmem:[%s55 + $0x14] sm:$0xf]
  %v3339 = vld [vmem:[%s55 + $0x18] sm:$0xf]
  %v3340 = vld [vmem:[%s55 + $0x1c] sm:$0xf]
  %v3341 = vld [vmem:[%s55 + $0x20] sm:$0xf]
  %v3342 = vld [vmem:[%s55 + $0x24] sm:$0xf]
  %v3343 = vld [vmem:[%s55 + $0x28] sm:$0xf]
  %v3344 = vld [vmem:[%s55 + $0x2c] sm:$0xf]
  %v3345 = vld [vmem:[%s55 + $0x30] sm:$0xf]
  %v3346 = vld [vmem:[%s55 + $0x34] sm:$0xf]
  %v3347 = vld [vmem:[%s55 + $0x38] sm:$0xf]
  %v3348 = vld [vmem:[%s55 + $0x3c] sm:$0xf]
  %v3365 = vunpack.c.l.b16 %v3333
  %v3366 = vunpack.c.l.b16 %v3334
  %v3367 = vunpack.c.l.b16 %v3335
  %v3368 = vunpack.c.l.b16 %v3336
  %v3369 = vunpack.c.l.b16 %v3337
  %v3370 = vunpack.c.l.b16 %v3338
  %v3371 = vunpack.c.l.b16 %v3339
  %v3372 = vunpack.c.l.b16 %v3340
  %v3373 = vunpack.c.l.b16 %v3341
  %v3374 = vunpack.c.l.b16 %v3342
  %v3375 = vunpack.c.l.b16 %v3343
  %v3376 = vunpack.c.l.b16 %v3344
  %v3377 = vunpack.c.l.b16 %v3345
  %v3378 = vunpack.c.l.b16 %v3346
  %v3379 = vunpack.c.l.b16 %v3347
  %v3380 = vunpack.c.l.b16 %v3348
  %v3381 = vpack.c.b16 %v3366, %v3365
  %v3382 = vpack.c.b16 %v3368, %v3367
  %v3383 = vpack.c.b16 %v3370, %v3369
  %v3384 = vpack.c.b16 %v3372, %v3371
  %v3385 = vpack.c.b16 %v3374, %v3373
  %v3386 = vpack.c.b16 %v3376, %v3375
  %v3387 = vpack.c.b16 %v3378, %v3377
  %v3388 = vpack.c.b16 %v3380, %v3379
  %3397 = vmatprep.subr.bf16.mxu0 0
  %3398 = vmatpush1.bf16.msra.mxu0 %v3388
  %3399 = vmatprep.subr.bf16.mxu0 0
  %3400 = vmatpush1.bf16.msra.mxu0 %v3387
  %3401 = vmatprep.subr.bf16.mxu0 0
  %3402 = vmatpush1.bf16.msra.mxu0 %v3386
  %3403 = vmatprep.subr.bf16.mxu0 0
  %3404 = vmatpush1.bf16.msra.mxu0 %v3385
  %3405 = vmatprep.subr.bf16.mxu0 0
  %3406 = vmatpush1.bf16.msra.mxu0 %v3384
  %3407 = vmatprep.subr.bf16.mxu0 0
  %3408 = vmatpush1.bf16.msra.mxu0 %v3383
  %3409 = vmatprep.subr.bf16.mxu0 0
  %3410 = vmatpush1.bf16.msra.mxu0 %v3382
  %3411 = vmatprep.subr.bf16.mxu0 0
  %3412 = vmatpush1.bf16.msra.mxu0 %v3381
  %3413 = vmatprep.subr.bf16.mxu0 0
  %3414 = vmatpush2.bf16.msra.mxu0 0
  %3415 = vmatprep.subr.bf16.mxu0 0
  %3416 = vmatpush2.bf16.msra.mxu0 0
  %3417 = vmatprep.subr.bf16.mxu0 0
  %3418 = vmatpush2.bf16.msra.mxu0 0
  %3419 = vmatprep.subr.bf16.mxu0 0
  %3420 = vmatpush2.bf16.msra.mxu0 0
  %3421 = vmatprep.subr.bf16.mxu0 0
  %3422 = vmatpush2.bf16.msra.mxu0 0
  %3423 = vmatprep.subr.bf16.mxu0 0
  %3424 = vmatpush2.bf16.msra.mxu0 0
  %3425 = vmatprep.subr.bf16.mxu0 0
  %3426 = vmatpush2.bf16.msra.mxu0 0
  %3427 = vmatprep.subr.bf16.mxu0 0
  %3428 = vmatpush2.bf16.msra.mxu0 0
  %3429 = vmatprep.mubr.bf16.mxu0 0
  %3430 = vmatmul.mubr.bf16.gmra.mxu0 %v3332
  %v3431 = vpop.f32.mrf.mxu0
  %v3432 = vadd.f32 0.0, %v3431
  %v3433 = vpop.f32.mrf.mxu0
  %v3434 = vpop.f32.mrf.mxu0
  %v3435 = vpop.f32.mrf.mxu0
  %3436 = vdwg.mxu0
  %v3437 = vld [vmem:[%s49] sm:$0x1]
  %v3439 = vlaneseq
  %v3440 = vshrl.u32 %v3439, 7
  %v3441 = vsub.s32 0, %v3440
  %v3442 = vrot.slane %v3437, %v3441
  %v3444 = vmul.f32 %v3432, %v3442
  %v3445 = vld [vmem:[%s53] sm:$0x1]
  %v3447 = vlaneseq
  %v3448 = vshrl.u32 %v3447, 7
  %v3449 = vsub.s32 0, %v3448
  %v3450 = vrot.slane %v3445, %v3449
  %v3452 = vadd.f32 %v3444, %v3450
  %v3453 = vld [vmem:[%s37] sm:$0xf]
  %s3454 = scalar_lea.vmem %s37, 4
  %v3455 = vld [vmem:[%s3454] sm:$0xf]
  %v3457 = vsel %vm3284, %v3455, 0
  %3459 = vmatprep.subr.bf16.mxu0 0
  %3460 = vmatpush1.bf16.msra.mxu0 0
  %3461 = vmatprep.subr.bf16.mxu0 0
  %3462 = vmatpush1.bf16.msra.mxu0 0
  %3463 = vmatprep.subr.bf16.mxu0 0
  %3464 = vmatpush1.bf16.msra.mxu0 0
  %3465 = vmatprep.subr.bf16.mxu0 0
  %3466 = vmatpush1.bf16.msra.mxu0 0
  %3467 = vmatprep.subr.bf16.mxu0 0
  %3468 = vmatpush1.bf16.msra.mxu0 0
  %3469 = vmatprep.subr.bf16.mxu0 0
  %3470 = vmatpush1.bf16.msra.mxu0 0
  %3471 = vmatprep.subr.bf16.mxu0 0
  %3472 = vmatpush1.bf16.msra.mxu0 0
  %3473 = vmatprep.subr.bf16.mxu0 0
  %3474 = vmatpush1.bf16.msra.mxu0 %v3290
  %3475 = vmatprep.subr.bf16.mxu0 0
  %3476 = vmatpush2.bf16.msra.mxu0 0
  %3477 = vmatprep.subr.bf16.mxu0 0
  %3478 = vmatpush2.bf16.msra.mxu0 0
  %3479 = vmatprep.subr.bf16.mxu0 0
  %3480 = vmatpush2.bf16.msra.mxu0 0
  %3481 = vmatprep.subr.bf16.mxu0 0
  %3482 = vmatpush2.bf16.msra.mxu0 0
  %3483 = vmatprep.subr.bf16.mxu0 0
  %3484 = vmatpush2.bf16.msra.mxu0 0
  %3485 = vmatprep.subr.bf16.mxu0 0
  %3486 = vmatpush2.bf16.msra.mxu0 0
  %3487 = vmatprep.subr.bf16.mxu0 0
  %3488 = vmatpush2.bf16.msra.mxu0 0
  %3489 = vmatprep.subr.bf16.mxu0 0
  %3490 = vmatpush2.bf16.msra.mxu0 0
  %3491 = vmatprep.mubr.bf16.mxu0 0
  %3492 = vmatmul.mubr.bf16.gmra.mxu0 %v3457
  %v3493 = vpop.f32.mrf.mxu0
  %v3494 = vadd.f32 0.0, %v3493
  %v3495 = vpop.f32.mrf.mxu0
  %v3496 = vpop.f32.mrf.mxu0
  %v3497 = vpop.f32.mrf.mxu0
  %3498 = vdwg.mxu0
  %3499 = vrot.lane.b32.xlu0 %v3494, 32
  %v3500 = vpop.permute.xlu0 %3499
  %v3502 = vsel %vm3284, %v3453, 0
  %3504 = vmatprep.subr.bf16.mxu0 0
  %3505 = vmatpush1.bf16.msra.mxu0 0
  %3506 = vmatprep.subr.bf16.mxu0 0
  %3507 = vmatpush1.bf16.msra.mxu0 0
  %3508 = vmatprep.subr.bf16.mxu0 0
  %3509 = vmatpush1.bf16.msra.mxu0 0
  %3510 = vmatprep.subr.bf16.mxu0 0
  %3511 = vmatpush1.bf16.msra.mxu0 0
  %3512 = vmatprep.subr.bf16.mxu0 0
  %3513 = vmatpush1.bf16.msra.mxu0 0
  %3514 = vmatprep.subr.bf16.mxu0 0
  %3515 = vmatpush1.bf16.msra.mxu0 0
  %3516 = vmatprep.subr.bf16.mxu0 0
  %3517 = vmatpush1.bf16.msra.mxu0 0
  %3518 = vmatprep.subr.bf16.mxu0 0
  %3519 = vmatpush1.bf16.msra.mxu0 %v3290
  %3520 = vmatprep.subr.bf16.mxu0 0
  %3521 = vmatpush2.bf16.msra.mxu0 0
  %3522 = vmatprep.subr.bf16.mxu0 0
  %3523 = vmatpush2.bf16.msra.mxu0 0
  %3524 = vmatprep.subr.bf16.mxu0 0
  %3525 = vmatpush2.bf16.msra.mxu0 0
  %3526 = vmatprep.subr.bf16.mxu0 0
  %3527 = vmatpush2.bf16.msra.mxu0 0
  %3528 = vmatprep.subr.bf16.mxu0 0
  %3529 = vmatpush2.bf16.msra.mxu0 0
  %3530 = vmatprep.subr.bf16.mxu0 0
  %3531 = vmatpush2.bf16.msra.mxu0 0
  %3532 = vmatprep.subr.bf16.mxu0 0
  %3533 = vmatpush2.bf16.msra.mxu0 0
  %3534 = vmatprep.subr.bf16.mxu0 0
  %3535 = vmatpush2.bf16.msra.mxu0 0
  %3536 = vmatprep.mubr.bf16.mxu0 0
  %3537 = vmatmul.mubr.bf16.gmra.mxu0 %v3502
  %v3538 = vpop.f32.mrf.mxu0
  %v3539 = vadd.f32 %v3500, %v3538
  %v3540 = vpop.f32.mrf.mxu0
  %v3541 = vpop.f32.mrf.mxu0
  %v3542 = vpop.f32.mrf.mxu0
  %3543 = vdwg.mxu0
  %s3544 = scalar_lea.vmem %s37, 8
  %v3545 = vld [vmem:[%s3544] sm:$0xf]
  %v3547 = vsel %vm3284, %v3545, 0
  %3549 = vmatprep.subr.bf16.mxu0 0
  %3550 = vmatpush1.bf16.msra.mxu0 0
  %3551 = vmatprep.subr.bf16.mxu0 0
  %3552 = vmatpush1.bf16.msra.mxu0 0
  %3553 = vmatprep.subr.bf16.mxu0 0
  %3554 = vmatpush1.bf16.msra.mxu0 0
  %3555 = vmatprep.subr.bf16.mxu0 0
  %3556 = vmatpush1.bf16.msra.mxu0 0
  %3557 = vmatprep.subr.bf16.mxu0 0
  %3558 = vmatpush1.bf16.msra.mxu0 0
  %3559 = vmatprep.subr.bf16.mxu0 0
  %3560 = vmatpush1.bf16.msra.mxu0 0
  %3561 = vmatprep.subr.bf16.mxu0 0
  %3562 = vmatpush1.bf16.msra.mxu0 0
  %3563 = vmatprep.subr.bf16.mxu0 0
  %3564 = vmatpush1.bf16.msra.mxu0 %v3290
  %3565 = vmatprep.subr.bf16.mxu0 0
  %3566 = vmatpush2.bf16.msra.mxu0 0
  %3567 = vmatprep.subr.bf16.mxu0 0
  %3568 = vmatpush2.bf16.msra.mxu0 0
  %3569 = vmatprep.subr.bf16.mxu0 0
  %3570 = vmatpush2.bf16.msra.mxu0 0
  %3571 = vmatprep.subr.bf16.mxu0 0
  %3572 = vmatpush2.bf16.msra.mxu0 0
  %3573 = vmatprep.subr.bf16.mxu0 0
  %3574 = vmatpush2.bf16.msra.mxu0 0
  %3575 = vmatprep.subr.bf16.mxu0 0
  %3576 = vmatpush2.bf16.msra.mxu0 0
  %3577 = vmatprep.subr.bf16.mxu0 0
  %3578 = vmatpush2.bf16.msra.mxu0 0
  %3579 = vmatprep.subr.bf16.mxu0 0
  %3580 = vmatpush2.bf16.msra.mxu0 0
  %3581 = vmatprep.mubr.bf16.mxu0 0
  %3582 = vmatmul.mubr.bf16.gmra.mxu0 %v3547
  %v3583 = vpop.f32.mrf.mxu0
  %v3584 = vadd.f32 0.0, %v3583
  %v3585 = vpop.f32.mrf.mxu0
  %v3586 = vpop.f32.mrf.mxu0
  %v3587 = vpop.f32.mrf.mxu0
  %3588 = vdwg.mxu0
  %3589 = vrot.lane.b32.xlu0 %v3584, 64
  %v3590 = vpop.permute.xlu0 %3589
  %v3591 = vadd.f32 %v3539, %v3590
  %s3592 = scalar_lea.vmem %s37, 12
  %v3593 = vld [vmem:[%s3592] sm:$0xf]
  %v3595 = vsel %vm3284, %v3593, 0
  %3597 = vmatprep.subr.bf16.mxu0 0
  %3598 = vmatpush1.bf16.msra.mxu0 0
  %3599 = vmatprep.subr.bf16.mxu0 0
  %3600 = vmatpush1.bf16.msra.mxu0 0
  %3601 = vmatprep.subr.bf16.mxu0 0
  %3602 = vmatpush1.bf16.msra.mxu0 0
  %3603 = vmatprep.subr.bf16.mxu0 0
  %3604 = vmatpush1.bf16.msra.mxu0 0
  %3605 = vmatprep.subr.bf16.mxu0 0
  %3606 = vmatpush1.bf16.msra.mxu0 0
  %3607 = vmatprep.subr.bf16.mxu0 0
  %3608 = vmatpush1.bf16.msra.mxu0 0
  %3609 = vmatprep.subr.bf16.mxu0 0
  %3610 = vmatpush1.bf16.msra.mxu0 0
  %3611 = vmatprep.subr.bf16.mxu0 0
  %3612 = vmatpush1.bf16.msra.mxu0 %v3290
  %3613 = vmatprep.subr.bf16.mxu0 0
  %3614 = vmatpush2.bf16.msra.mxu0 0
  %3615 = vmatprep.subr.bf16.mxu0 0
  %3616 = vmatpush2.bf16.msra.mxu0 0
  %3617 = vmatprep.subr.bf16.mxu0 0
  %3618 = vmatpush2.bf16.msra.mxu0 0
  %3619 = vmatprep.subr.bf16.mxu0 0
  %3620 = vmatpush2.bf16.msra.mxu0 0
  %3621 = vmatprep.subr.bf16.mxu0 0
  %3622 = vmatpush2.bf16.msra.mxu0 0
  %3623 = vmatprep.subr.bf16.mxu0 0
  %3624 = vmatpush2.bf16.msra.mxu0 0
  %3625 = vmatprep.subr.bf16.mxu0 0
  %3626 = vmatpush2.bf16.msra.mxu0 0
  %3627 = vmatprep.subr.bf16.mxu0 0
  %3628 = vmatpush2.bf16.msra.mxu0 0
  %3629 = vmatprep.mubr.bf16.mxu0 0
  %3630 = vmatmul.mubr.bf16.gmra.mxu0 %v3595
  %v3631 = vpop.f32.mrf.mxu0
  %v3632 = vadd.f32 0.0, %v3631
  %v3633 = vpop.f32.mrf.mxu0
  %v3634 = vpop.f32.mrf.mxu0
  %v3635 = vpop.f32.mrf.mxu0
  %3636 = vdwg.mxu0
  %3637 = vrot.lane.b32.xlu0 %v3632, 96
  %v3638 = vpop.permute.xlu0 %3637
  %v3639 = vadd.f32 %v3591, %v3638
  %v3640 = vpack.c.bf16 %v3639, %v3639
  %v3641 = vld [vmem:[%s41] sm:$0xf]
  %v3642 = vld [vmem:[%s41 + $0x4] sm:$0xf]
  %v3643 = vld [vmem:[%s41 + $0x8] sm:$0xf]
  %v3644 = vld [vmem:[%s41 + $0xc] sm:$0xf]
  %v3645 = vld [vmem:[%s41 + $0x10] sm:$0xf]
  %v3646 = vld [vmem:[%s41 + $0x14] sm:$0xf]
  %v3647 = vld [vmem:[%s41 + $0x18] sm:$0xf]
  %v3648 = vld [vmem:[%s41 + $0x1c] sm:$0xf]
  %v3649 = vld [vmem:[%s41 + $0x20] sm:$0xf]
  %v3650 = vld [vmem:[%s41 + $0x24] sm:$0xf]
  %v3651 = vld [vmem:[%s41 + $0x28] sm:$0xf]
  %v3652 = vld [vmem:[%s41 + $0x2c] sm:$0xf]
  %v3653 = vld [vmem:[%s41 + $0x30] sm:$0xf]
  %v3654 = vld [vmem:[%s41 + $0x34] sm:$0xf]
  %v3655 = vld [vmem:[%s41 + $0x38] sm:$0xf]
  %v3656 = vld [vmem:[%s41 + $0x3c] sm:$0xf]
  %v3673 = vunpack.c.l.b16 %v3641
  %v3674 = vunpack.c.l.b16 %v3642
  %v3675 = vunpack.c.l.b16 %v3643
  %v3676 = vunpack.c.l.b16 %v3644
  %v3677 = vunpack.c.l.b16 %v3645
  %v3678 = vunpack.c.l.b16 %v3646
  %v3679 = vunpack.c.l.b16 %v3647
  %v3680 = vunpack.c.l.b16 %v3648
  %v3681 = vunpack.c.l.b16 %v3649
  %v3682 = vunpack.c.l.b16 %v3650
  %v3683 = vunpack.c.l.b16 %v3651
  %v3684 = vunpack.c.l.b16 %v3652
  %v3685 = vunpack.c.l.b16 %v3653
  %v3686 = vunpack.c.l.b16 %v3654
  %v3687 = vunpack.c.l.b16 %v3655
  %v3688 = vunpack.c.l.b16 %v3656
  %v3689 = vpack.c.b16 %v3674, %v3673
  %v3690 = vpack.c.b16 %v3676, %v3675
  %v3691 = vpack.c.b16 %v3678, %v3677
  %v3692 = vpack.c.b16 %v3680, %v3679
  %v3693 = vpack.c.b16 %v3682, %v3681
  %v3694 = vpack.c.b16 %v3684, %v3683
  %v3695 = vpack.c.b16 %v3686, %v3685
  %v3696 = vpack.c.b16 %v3688, %v3687
  %3705 = vmatprep.subr.bf16.mxu0 0
  %3706 = vmatpush1.bf16.msra.mxu0 %v3696
  %3707 = vmatprep.subr.bf16.mxu0 0
  %3708 = vmatpush1.bf16.msra.mxu0 %v3695
  %3709 = vmatprep.subr.bf16.mxu0 0
  %3710 = vmatpush1.bf16.msra.mxu0 %v3694
  %3711 = vmatprep.subr.bf16.mxu0 0
  %3712 = vmatpush1.bf16.msra.mxu0 %v3693
  %3713 = vmatprep.subr.bf16.mxu0 0
  %3714 = vmatpush1.bf16.msra.mxu0 %v3692
  %3715 = vmatprep.subr.bf16.mxu0 0
  %3716 = vmatpush1.bf16.msra.mxu0 %v3691
  %3717 = vmatprep.subr.bf16.mxu0 0
  %3718 = vmatpush1.bf16.msra.mxu0 %v3690
  %3719 = vmatprep.subr.bf16.mxu0 0
  %3720 = vmatpush1.bf16.msra.mxu0 %v3689
  %3721 = vmatprep.subr.bf16.mxu0 0
  %3722 = vmatpush2.bf16.msra.mxu0 0
  %3723 = vmatprep.subr.bf16.mxu0 0
  %3724 = vmatpush2.bf16.msra.mxu0 0
  %3725 = vmatprep.subr.bf16.mxu0 0
  %3726 = vmatpush2.bf16.msra.mxu0 0
  %3727 = vmatprep.subr.bf16.mxu0 0
  %3728 = vmatpush2.bf16.msra.mxu0 0
  %3729 = vmatprep.subr.bf16.mxu0 0
  %3730 = vmatpush2.bf16.msra.mxu0 0
  %3731 = vmatprep.subr.bf16.mxu0 0
  %3732 = vmatpush2.bf16.msra.mxu0 0
  %3733 = vmatprep.subr.bf16.mxu0 0
  %3734 = vmatpush2.bf16.msra.mxu0 0
  %3735 = vmatprep.subr.bf16.mxu0 0
  %3736 = vmatpush2.bf16.msra.mxu0 0
  %3737 = vmatprep.mubr.bf16.mxu0 0
  %3738 = vmatmul.mubr.bf16.gmra.mxu0 %v3640
  %v3739 = vpop.f32.mrf.mxu0
  %v3740 = vadd.f32 0.0, %v3739
  %v3741 = vpop.f32.mrf.mxu0
  %v3742 = vpop.f32.mrf.mxu0
  %v3743 = vpop.f32.mrf.mxu0
  %3744 = vdwg.mxu0
  %v3745 = vld [vmem:[%s35] sm:$0x1]
  %v3747 = vlaneseq
  %v3748 = vshrl.u32 %v3747, 7
  %v3749 = vsub.s32 0, %v3748
  %v3750 = vrot.slane %v3745, %v3749
  %v3752 = vmul.f32 %v3740, %v3750
  %v3753 = vld [vmem:[%s39] sm:$0x1]
  %v3755 = vlaneseq
  %v3756 = vshrl.u32 %v3755, 7
  %v3757 = vsub.s32 0, %v3756
  %v3758 = vrot.slane %v3753, %v3757
  %v3760 = vadd.f32 %v3752, %v3758
  %v3761 = vmax.f32 %v3760, 0.0
  %vm3762 = vcmp.lt.s32.totalorder %v468, 2
  %v3763 = vsel %vm3762, 1, 0
  %v3764 = vcvt.s32.f32 %v3763
  %v3765 = vmul.f32 %v3761, %v3764
  %v3766 = vpack.c.bf16 %v3765, %v3765
  %v3767 = vld [vmem:[%s47] sm:$0xf]
  %v3768 = vld [vmem:[%s47 + $0x4] sm:$0xf]
  %v3769 = vld [vmem:[%s47 + $0x8] sm:$0xf]
  %v3770 = vld [vmem:[%s47 + $0xc] sm:$0xf]
  %v3771 = vld [vmem:[%s47 + $0x10] sm:$0xf]
  %v3772 = vld [vmem:[%s47 + $0x14] sm:$0xf]
  %v3773 = vld [vmem:[%s47 + $0x18] sm:$0xf]
  %v3774 = vld [vmem:[%s47 + $0x1c] sm:$0xf]
  %v3775 = vld [vmem:[%s47 + $0x20] sm:$0xf]
  %v3776 = vld [vmem:[%s47 + $0x24] sm:$0xf]
  %v3777 = vld [vmem:[%s47 + $0x28] sm:$0xf]
  %v3778 = vld [vmem:[%s47 + $0x2c] sm:$0xf]
  %v3779 = vld [vmem:[%s47 + $0x30] sm:$0xf]
  %v3780 = vld [vmem:[%s47 + $0x34] sm:$0xf]
  %v3781 = vld [vmem:[%s47 + $0x38] sm:$0xf]
  %v3782 = vld [vmem:[%s47 + $0x3c] sm:$0xf]
  %v3799 = vunpack.c.l.b16 %v3767
  %v3800 = vunpack.c.l.b16 %v3768
  %v3801 = vunpack.c.l.b16 %v3769
  %v3802 = vunpack.c.l.b16 %v3770
  %v3803 = vunpack.c.l.b16 %v3771
  %v3804 = vunpack.c.l.b16 %v3772
  %v3805 = vunpack.c.l.b16 %v3773
  %v3806 = vunpack.c.l.b16 %v3774
  %v3807 = vunpack.c.l.b16 %v3775
  %v3808 = vunpack.c.l.b16 %v3776
  %v3809 = vunpack.c.l.b16 %v3777
  %v3810 = vunpack.c.l.b16 %v3778
  %v3811 = vunpack.c.l.b16 %v3779
  %v3812 = vunpack.c.l.b16 %v3780
  %v3813 = vunpack.c.l.b16 %v3781
  %v3814 = vunpack.c.l.b16 %v3782
  %v3815 = vpack.c.b16 %v3800, %v3799
  %v3816 = vpack.c.b16 %v3802, %v3801
  %v3817 = vpack.c.b16 %v3804, %v3803
  %v3818 = vpack.c.b16 %v3806, %v3805
  %v3819 = vpack.c.b16 %v3808, %v3807
  %v3820 = vpack.c.b16 %v3810, %v3809
  %v3821 = vpack.c.b16 %v3812, %v3811
  %v3822 = vpack.c.b16 %v3814, %v3813
  %3831 = vmatprep.subr.bf16.mxu0 0
  %3832 = vmatpush1.bf16.msra.mxu0 %v3822
  %3833 = vmatprep.subr.bf16.mxu0 0
  %3834 = vmatpush1.bf16.msra.mxu0 %v3821
  %3835 = vmatprep.subr.bf16.mxu0 0
  %3836 = vmatpush1.bf16.msra.mxu0 %v3820
  %3837 = vmatprep.subr.bf16.mxu0 0
  %3838 = vmatpush1.bf16.msra.mxu0 %v3819
  %3839 = vmatprep.subr.bf16.mxu0 0
  %3840 = vmatpush1.bf16.msra.mxu0 %v3818
  %3841 = vmatprep.subr.bf16.mxu0 0
  %3842 = vmatpush1.bf16.msra.mxu0 %v3817
  %3843 = vmatprep.subr.bf16.mxu0 0
  %3844 = vmatpush1.bf16.msra.mxu0 %v3816
  %3845 = vmatprep.subr.bf16.mxu0 0
  %3846 = vmatpush1.bf16.msra.mxu0 %v3815
  %3847 = vmatprep.subr.bf16.mxu0 0
  %3848 = vmatpush2.bf16.msra.mxu0 0
  %3849 = vmatprep.subr.bf16.mxu0 0
  %3850 = vmatpush2.bf16.msra.mxu0 0
  %3851 = vmatprep.subr.bf16.mxu0 0
  %3852 = vmatpush2.bf16.msra.mxu0 0
  %3853 = vmatprep.subr.bf16.mxu0 0
  %3854 = vmatpush2.bf16.msra.mxu0 0
  %3855 = vmatprep.subr.bf16.mxu0 0
  %3856 = vmatpush2.bf16.msra.mxu0 0
  %3857 = vmatprep.subr.bf16.mxu0 0
  %3858 = vmatpush2.bf16.msra.mxu0 0
  %3859 = vmatprep.subr.bf16.mxu0 0
  %3860 = vmatpush2.bf16.msra.mxu0 0
  %3861 = vmatprep.subr.bf16.mxu0 0
  %3862 = vmatpush2.bf16.msra.mxu0 0
  %3863 = vmatprep.mubr.bf16.mxu0 0
  %3864 = vmatmul.mubr.bf16.gmra.mxu0 %v3766
  %v3865 = vpop.f32.mrf.mxu0
  %v3866 = vadd.f32 0.0, %v3865
  %v3867 = vpop.f32.mrf.mxu0
  %v3868 = vpop.f32.mrf.mxu0
  %v3869 = vpop.f32.mrf.mxu0
  %3870 = vdwg.mxu0
  %v3871 = vld [vmem:[%s43] sm:$0x1]
  %v3873 = vlaneseq
  %v3874 = vshrl.u32 %v3873, 7
  %v3875 = vsub.s32 0, %v3874
  %v3876 = vrot.slane %v3871, %v3875
  %v3878 = vmul.f32 %v3866, %v3876
  %v3879 = vld [vmem:[%s45] sm:$0x1]
  %v3881 = vlaneseq
  %v3882 = vshrl.u32 %v3881, 7
  %v3883 = vsub.s32 0, %v3882
  %v3884 = vrot.slane %v3879, %v3883
  %v3886 = vadd.f32 %v3878, %v3884
  %v3887 = vadd.f32 %v3886, %v3452
  %v3888 = vmax.f32 %v3887, 0.0
  %v3889 = vpack.c.bf16 %v3888, %v3888
  %v3890 = vld [vmem:[%s73] sm:$0xf]
  %v3892 = vsel %vm3284, %v3890, 0
  %v3895 = vsel %vm3288, %v3889, 0
  %3897 = vmatprep.subr.bf16.mxu0 0
  %3898 = vmatpush1.bf16.msra.mxu0 0
  %3899 = vmatprep.subr.bf16.mxu0 0
  %3900 = vmatpush1.bf16.msra.mxu0 0
  %3901 = vmatprep.subr.bf16.mxu0 0
  %3902 = vmatpush1.bf16.msra.mxu0 0
  %3903 = vmatprep.subr.bf16.mxu0 0
  %3904 = vmatpush1.bf16.msra.mxu0 0
  %3905 = vmatprep.subr.bf16.mxu0 0
  %3906 = vmatpush1.bf16.msra.mxu0 0
  %3907 = vmatprep.subr.bf16.mxu0 0
  %3908 = vmatpush1.bf16.msra.mxu0 0
  %3909 = vmatprep.subr.bf16.mxu0 0
  %3910 = vmatpush1.bf16.msra.mxu0 0
  %3911 = vmatprep.subr.bf16.mxu0 0
  %3912 = vmatpush1.bf16.msra.mxu0 %v3895
  %3913 = vmatprep.subr.bf16.mxu0 0
  %3914 = vmatpush2.bf16.msra.mxu0 0
  %3915 = vmatprep.subr.bf16.mxu0 0
  %3916 = vmatpush2.bf16.msra.mxu0 0
  %3917 = vmatprep.subr.bf16.mxu0 0
  %3918 = vmatpush2.bf16.msra.mxu0 0
  %3919 = vmatprep.subr.bf16.mxu0 0
  %3920 = vmatpush2.bf16.msra.mxu0 0
  %3921 = vmatprep.subr.bf16.mxu0 0
  %3922 = vmatpush2.bf16.msra.mxu0 0
  %3923 = vmatprep.subr.bf16.mxu0 0
  %3924 = vmatpush2.bf16.msra.mxu0 0
  %3925 = vmatprep.subr.bf16.mxu0 0
  %3926 = vmatpush2.bf16.msra.mxu0 0
  %3927 = vmatprep.subr.bf16.mxu0 0
  %3928 = vmatpush2.bf16.msra.mxu0 0
  %3929 = vmatprep.mubr.bf16.mxu0 0
  %3930 = vmatmul.mubr.bf16.gmra.mxu0 %v3892
  %v3931 = vpop.f32.mrf.mxu0
  %v3932 = vadd.f32 0.0, %v3931
  %v3933 = vpop.f32.mrf.mxu0
  %v3934 = vpop.f32.mrf.mxu0
  %v3935 = vpop.f32.mrf.mxu0
  %3936 = vdwg.mxu0
  %v3937 = vpack.c.bf16 %v3932, %v3932
  %v3938 = vld [vmem:[%s77] sm:$0xf]
  %v3939 = vld [vmem:[%s77 + $0x4] sm:$0xf]
  %v3940 = vld [vmem:[%s77 + $0x8] sm:$0xf]
  %v3941 = vld [vmem:[%s77 + $0xc] sm:$0xf]
  %v3942 = vld [vmem:[%s77 + $0x10] sm:$0xf]
  %v3943 = vld [vmem:[%s77 + $0x14] sm:$0xf]
  %v3944 = vld [vmem:[%s77 + $0x18] sm:$0xf]
  %v3945 = vld [vmem:[%s77 + $0x1c] sm:$0xf]
  %v3946 = vld [vmem:[%s77 + $0x20] sm:$0xf]
  %v3947 = vld [vmem:[%s77 + $0x24] sm:$0xf]
  %v3948 = vld [vmem:[%s77 + $0x28] sm:$0xf]
  %v3949 = vld [vmem:[%s77 + $0x2c] sm:$0xf]
  %v3950 = vld [vmem:[%s77 + $0x30] sm:$0xf]
  %v3951 = vld [vmem:[%s77 + $0x34] sm:$0xf]
  %v3952 = vld [vmem:[%s77 + $0x38] sm:$0xf]
  %v3953 = vld [vmem:[%s77 + $0x3c] sm:$0xf]
  %v3970 = vunpack.c.l.b16 %v3938
  %v3971 = vunpack.c.l.b16 %v3939
  %v3972 = vunpack.c.l.b16 %v3940
  %v3973 = vunpack.c.l.b16 %v3941
  %v3974 = vunpack.c.l.b16 %v3942
  %v3975 = vunpack.c.l.b16 %v3943
  %v3976 = vunpack.c.l.b16 %v3944
  %v3977 = vunpack.c.l.b16 %v3945
  %v3978 = vunpack.c.l.b16 %v3946
  %v3979 = vunpack.c.l.b16 %v3947
  %v3980 = vunpack.c.l.b16 %v3948
  %v3981 = vunpack.c.l.b16 %v3949
  %v3982 = vunpack.c.l.b16 %v3950
  %v3983 = vunpack.c.l.b16 %v3951
  %v3984 = vunpack.c.l.b16 %v3952
  %v3985 = vunpack.c.l.b16 %v3953
  %v3986 = vpack.c.b16 %v3971, %v3970
  %v3987 = vpack.c.b16 %v3973, %v3972
  %v3988 = vpack.c.b16 %v3975, %v3974
  %v3989 = vpack.c.b16 %v3977, %v3976
  %v3990 = vpack.c.b16 %v3979, %v3978
  %v3991 = vpack.c.b16 %v3981, %v3980
  %v3992 = vpack.c.b16 %v3983, %v3982
  %v3993 = vpack.c.b16 %v3985, %v3984
  %4002 = vmatprep.subr.bf16.mxu0 0
  %4003 = vmatpush1.bf16.msra.mxu0 %v3993
  %4004 = vmatprep.subr.bf16.mxu0 0
  %4005 = vmatpush1.bf16.msra.mxu0 %v3992
  %4006 = vmatprep.subr.bf16.mxu0 0
  %4007 = vmatpush1.bf16.msra.mxu0 %v3991
  %4008 = vmatprep.subr.bf16.mxu0 0
  %4009 = vmatpush1.bf16.msra.mxu0 %v3990
  %4010 = vmatprep.subr.bf16.mxu0 0
  %4011 = vmatpush1.bf16.msra.mxu0 %v3989
  %4012 = vmatprep.subr.bf16.mxu0 0
  %4013 = vmatpush1.bf16.msra.mxu0 %v3988
  %4014 = vmatprep.subr.bf16.mxu0 0
  %4015 = vmatpush1.bf16.msra.mxu0 %v3987
  %4016 = vmatprep.subr.bf16.mxu0 0
  %4017 = vmatpush1.bf16.msra.mxu0 %v3986
  %4018 = vmatprep.subr.bf16.mxu0 0
  %4019 = vmatpush2.bf16.msra.mxu0 0
  %4020 = vmatprep.subr.bf16.mxu0 0
  %4021 = vmatpush2.bf16.msra.mxu0 0
  %4022 = vmatprep.subr.bf16.mxu0 0
  %4023 = vmatpush2.bf16.msra.mxu0 0
  %4024 = vmatprep.subr.bf16.mxu0 0
  %4025 = vmatpush2.bf16.msra.mxu0 0
  %4026 = vmatprep.subr.bf16.mxu0 0
  %4027 = vmatpush2.bf16.msra.mxu0 0
  %4028 = vmatprep.subr.bf16.mxu0 0
  %4029 = vmatpush2.bf16.msra.mxu0 0
  %4030 = vmatprep.subr.bf16.mxu0 0
  %4031 = vmatpush2.bf16.msra.mxu0 0
  %4032 = vmatprep.subr.bf16.mxu0 0
  %4033 = vmatpush2.bf16.msra.mxu0 0
  %4034 = vmatprep.mubr.bf16.mxu0 0
  %4035 = vmatmul.mubr.bf16.gmra.mxu0 %v3937
  %v4036 = vpop.f32.mrf.mxu0
  %v4037 = vadd.f32 0.0, %v4036
  %v4038 = vpop.f32.mrf.mxu0
  %v4039 = vpop.f32.mrf.mxu0
  %v4040 = vpop.f32.mrf.mxu0
  %4041 = vdwg.mxu0
  %v4042 = vld [vmem:[%s71] sm:$0x1]
  %v4044 = vlaneseq
  %v4045 = vshrl.u32 %v4044, 7
  %v4046 = vsub.s32 0, %v4045
  %v4047 = vrot.slane %v4042, %v4046
  %v4049 = vmul.f32 %v4037, %v4047
  %v4050 = vld [vmem:[%s75] sm:$0x1]
  %v4052 = vlaneseq
  %v4053 = vshrl.u32 %v4052, 7
  %v4054 = vsub.s32 0, %v4053
  %v4055 = vrot.slane %v4050, %v4054
  %v4057 = vadd.f32 %v4049, %v4055
  %v4058 = vld [vmem:[%s59] sm:$0xf]
  %v4060 = vsel %vm3284, %v4058, 0
  %4062 = vmatprep.subr.bf16.mxu0 0
  %4063 = vmatpush1.bf16.msra.mxu0 0
  %4064 = vmatprep.subr.bf16.mxu0 0
  %4065 = vmatpush1.bf16.msra.mxu0 0
  %4066 = vmatprep.subr.bf16.mxu0 0
  %4067 = vmatpush1.bf16.msra.mxu0 0
  %4068 = vmatprep.subr.bf16.mxu0 0
  %4069 = vmatpush1.bf16.msra.mxu0 0
  %4070 = vmatprep.subr.bf16.mxu0 0
  %4071 = vmatpush1.bf16.msra.mxu0 0
  %4072 = vmatprep.subr.bf16.mxu0 0
  %4073 = vmatpush1.bf16.msra.mxu0 0
  %4074 = vmatprep.subr.bf16.mxu0 0
  %4075 = vmatpush1.bf16.msra.mxu0 0
  %4076 = vmatprep.subr.bf16.mxu0 0
  %4077 = vmatpush1.bf16.msra.mxu0 %v3895
  %4078 = vmatprep.subr.bf16.mxu0 0
  %4079 = vmatpush2.bf16.msra.mxu0 0
  %4080 = vmatprep.subr.bf16.mxu0 0
  %4081 = vmatpush2.bf16.msra.mxu0 0
  %4082 = vmatprep.subr.bf16.mxu0 0
  %4083 = vmatpush2.bf16.msra.mxu0 0
  %4084 = vmatprep.subr.bf16.mxu0 0
  %4085 = vmatpush2.bf16.msra.mxu0 0
  %4086 = vmatprep.subr.bf16.mxu0 0
  %4087 = vmatpush2.bf16.msra.mxu0 0
  %4088 = vmatprep.subr.bf16.mxu0 0
  %4089 = vmatpush2.bf16.msra.mxu0 0
  %4090 = vmatprep.subr.bf16.mxu0 0
  %4091 = vmatpush2.bf16.msra.mxu0 0
  %4092 = vmatprep.subr.bf16.mxu0 0
  %4093 = vmatpush2.bf16.msra.mxu0 0
  %4094 = vmatprep.mubr.bf16.mxu0 0
  %4095 = vmatmul.mubr.bf16.gmra.mxu0 %v4060
  %v4096 = vpop.f32.mrf.mxu0
  %v4097 = vadd.f32 0.0, %v4096
  %v4098 = vpop.f32.mrf.mxu0
  %v4099 = vpop.f32.mrf.mxu0
  %v4100 = vpop.f32.mrf.mxu0
  %4101 = vdwg.mxu0
  %v4102 = vpack.c.bf16 %v4097, %v4097
  %v4103 = vld [vmem:[%s63] sm:$0xf]
  %v4104 = vld [vmem:[%s63 + $0x4] sm:$0xf]
  %v4105 = vld [vmem:[%s63 + $0x8] sm:$0xf]
  %v4106 = vld [vmem:[%s63 + $0xc] sm:$0xf]
  %v4107 = vld [vmem:[%s63 + $0x10] sm:$0xf]
  %v4108 = vld [vmem:[%s63 + $0x14] sm:$0xf]
  %v4109 = vld [vmem:[%s63 + $0x18] sm:$0xf]
  %v4110 = vld [vmem:[%s63 + $0x1c] sm:$0xf]
  %v4111 = vld [vmem:[%s63 + $0x20] sm:$0xf]
  %v4112 = vld [vmem:[%s63 + $0x24] sm:$0xf]
  %v4113 = vld [vmem:[%s63 + $0x28] sm:$0xf]
  %v4114 = vld [vmem:[%s63 + $0x2c] sm:$0xf]
  %v4115 = vld [vmem:[%s63 + $0x30] sm:$0xf]
  %v4116 = vld [vmem:[%s63 + $0x34] sm:$0xf]
  %v4117 = vld [vmem:[%s63 + $0x38] sm:$0xf]
  %v4118 = vld [vmem:[%s63 + $0x3c] sm:$0xf]
  %v4135 = vunpack.c.l.b16 %v4103
  %v4136 = vunpack.c.l.b16 %v4104
  %v4137 = vunpack.c.l.b16 %v4105
  %v4138 = vunpack.c.l.b16 %v4106
  %v4139 = vunpack.c.l.b16 %v4107
  %v4140 = vunpack.c.l.b16 %v4108
  %v4141 = vunpack.c.l.b16 %v4109
  %v4142 = vunpack.c.l.b16 %v4110
  %v4143 = vunpack.c.l.b16 %v4111
  %v4144 = vunpack.c.l.b16 %v4112
  %v4145 = vunpack.c.l.b16 %v4113
  %v4146 = vunpack.c.l.b16 %v4114
  %v4147 = vunpack.c.l.b16 %v4115
  %v4148 = vunpack.c.l.b16 %v4116
  %v4149 = vunpack.c.l.b16 %v4117
  %v4150 = vunpack.c.l.b16 %v4118
  %v4151 = vpack.c.b16 %v4136, %v4135
  %v4152 = vpack.c.b16 %v4138, %v4137
  %v4153 = vpack.c.b16 %v4140, %v4139
  %v4154 = vpack.c.b16 %v4142, %v4141
  %v4155 = vpack.c.b16 %v4144, %v4143
  %v4156 = vpack.c.b16 %v4146, %v4145
  %v4157 = vpack.c.b16 %v4148, %v4147
  %v4158 = vpack.c.b16 %v4150, %v4149
  %4167 = vmatprep.subr.bf16.mxu0 0
  %4168 = vmatpush1.bf16.msra.mxu0 %v4158
  %4169 = vmatprep.subr.bf16.mxu0 0
  %4170 = vmatpush1.bf16.msra.mxu0 %v4157
  %4171 = vmatprep.subr.bf16.mxu0 0
  %4172 = vmatpush1.bf16.msra.mxu0 %v4156
  %4173 = vmatprep.subr.bf16.mxu0 0
  %4174 = vmatpush1.bf16.msra.mxu0 %v4155
  %4175 = vmatprep.subr.bf16.mxu0 0
  %4176 = vmatpush1.bf16.msra.mxu0 %v4154
  %4177 = vmatprep.subr.bf16.mxu0 0
  %4178 = vmatpush1.bf16.msra.mxu0 %v4153
  %4179 = vmatprep.subr.bf16.mxu0 0
  %4180 = vmatpush1.bf16.msra.mxu0 %v4152
  %4181 = vmatprep.subr.bf16.mxu0 0
  %4182 = vmatpush1.bf16.msra.mxu0 %v4151
  %4183 = vmatprep.subr.bf16.mxu0 0
  %4184 = vmatpush2.bf16.msra.mxu0 0
  %4185 = vmatprep.subr.bf16.mxu0 0
  %4186 = vmatpush2.bf16.msra.mxu0 0
  %4187 = vmatprep.subr.bf16.mxu0 0
  %4188 = vmatpush2.bf16.msra.mxu0 0
  %4189 = vmatprep.subr.bf16.mxu0 0
  %4190 = vmatpush2.bf16.msra.mxu0 0
  %4191 = vmatprep.subr.bf16.mxu0 0
  %4192 = vmatpush2.bf16.msra.mxu0 0
  %4193 = vmatprep.subr.bf16.mxu0 0
  %4194 = vmatpush2.bf16.msra.mxu0 0
  %4195 = vmatprep.subr.bf16.mxu0 0
  %4196 = vmatpush2.bf16.msra.mxu0 0
  %4197 = vmatprep.subr.bf16.mxu0 0
  %4198 = vmatpush2.bf16.msra.mxu0 0
  %4199 = vmatprep.mubr.bf16.mxu0 0
  %4200 = vmatmul.mubr.bf16.gmra.mxu0 %v4102
  %v4201 = vpop.f32.mrf.mxu0
  %v4202 = vadd.f32 0.0, %v4201
  %v4203 = vpop.f32.mrf.mxu0
  %v4204 = vpop.f32.mrf.mxu0
  %v4205 = vpop.f32.mrf.mxu0
  %4206 = vdwg.mxu0
  %v4207 = vld [vmem:[%s57] sm:$0x1]
  %v4209 = vlaneseq
  %v4210 = vshrl.u32 %v4209, 7
  %v4211 = vsub.s32 0, %v4210
  %v4212 = vrot.slane %v4207, %v4211
  %v4214 = vmul.f32 %v4202, %v4212
  %v4215 = vld [vmem:[%s61] sm:$0x1]
  %v4217 = vlaneseq
  %v4218 = vshrl.u32 %v4217, 7
  %v4219 = vsub.s32 0, %v4218
  %v4220 = vrot.slane %v4215, %v4219
  %v4222 = vadd.f32 %v4214, %v4220
  %v4223 = vmax.f32 %v4222, 0.0
  %v4224 = vmul.f32 %v4223, %v3764
  %v4225 = vpack.c.bf16 %v4224, %v4224
  %v4226 = vld [vmem:[%s69] sm:$0xf]
  %v4227 = vld [vmem:[%s69 + $0x4] sm:$0xf]
  %v4228 = vld [vmem:[%s69 + $0x8] sm:$0xf]
  %v4229 = vld [vmem:[%s69 + $0xc] sm:$0xf]
  %v4230 = vld [vmem:[%s69 + $0x10] sm:$0xf]
  %v4231 = vld [vmem:[%s69 + $0x14] sm:$0xf]
  %v4232 = vld [vmem:[%s69 + $0x18] sm:$0xf]
  %v4233 = vld [vmem:[%s69 + $0x1c] sm:$0xf]
  %v4234 = vld [vmem:[%s69 + $0x20] sm:$0xf]
  %v4235 = vld [vmem:[%s69 + $0x24] sm:$0xf]
  %v4236 = vld [vmem:[%s69 + $0x28] sm:$0xf]
  %v4237 = vld [vmem:[%s69 + $0x2c] sm:$0xf]
  %v4238 = vld [vmem:[%s69 + $0x30] sm:$0xf]
  %v4239 = vld [vmem:[%s69 + $0x34] sm:$0xf]
  %v4240 = vld [vmem:[%s69 + $0x38] sm:$0xf]
  %v4241 = vld [vmem:[%s69 + $0x3c] sm:$0xf]
  %v4258 = vunpack.c.l.b16 %v4226
  %v4259 = vunpack.c.l.b16 %v4227
  %v4260 = vunpack.c.l.b16 %v4228
  %v4261 = vunpack.c.l.b16 %v4229
  %v4262 = vunpack.c.l.b16 %v4230
  %v4263 = vunpack.c.l.b16 %v4231
  %v4264 = vunpack.c.l.b16 %v4232
  %v4265 = vunpack.c.l.b16 %v4233
  %v4266 = vunpack.c.l.b16 %v4234
  %v4267 = vunpack.c.l.b16 %v4235
  %v4268 = vunpack.c.l.b16 %v4236
  %v4269 = vunpack.c.l.b16 %v4237
  %v4270 = vunpack.c.l.b16 %v4238
  %v4271 = vunpack.c.l.b16 %v4239
  %v4272 = vunpack.c.l.b16 %v4240
  %v4273 = vunpack.c.l.b16 %v4241
  %v4274 = vpack.c.b16 %v4259, %v4258
  %v4275 = vpack.c.b16 %v4261, %v4260
  %v4276 = vpack.c.b16 %v4263, %v4262
  %v4277 = vpack.c.b16 %v4265, %v4264
  %v4278 = vpack.c.b16 %v4267, %v4266
  %v4279 = vpack.c.b16 %v4269, %v4268
  %v4280 = vpack.c.b16 %v4271, %v4270
  %v4281 = vpack.c.b16 %v4273, %v4272
  %4290 = vmatprep.subr.bf16.mxu0 0
  %4291 = vmatpush1.bf16.msra.mxu0 %v4281
  %4292 = vmatprep.subr.bf16.mxu0 0
  %4293 = vmatpush1.bf16.msra.mxu0 %v4280
  %4294 = vmatprep.subr.bf16.mxu0 0
  %4295 = vmatpush1.bf16.msra.mxu0 %v4279
  %4296 = vmatprep.subr.bf16.mxu0 0
  %4297 = vmatpush1.bf16.msra.mxu0 %v4278
  %4298 = vmatprep.subr.bf16.mxu0 0
  %4299 = vmatpush1.bf16.msra.mxu0 %v4277
  %4300 = vmatprep.subr.bf16.mxu0 0
  %4301 = vmatpush1.bf16.msra.mxu0 %v4276
  %4302 = vmatprep.subr.bf16.mxu0 0
  %4303 = vmatpush1.bf16.msra.mxu0 %v4275
  %4304 = vmatprep.subr.bf16.mxu0 0
  %4305 = vmatpush1.bf16.msra.mxu0 %v4274
  %4306 = vmatprep.subr.bf16.mxu0 0
  %4307 = vmatpush2.bf16.msra.mxu0 0
  %4308 = vmatprep.subr.bf16.mxu0 0
  %4309 = vmatpush2.bf16.msra.mxu0 0
  %4310 = vmatprep.subr.bf16.mxu0 0
  %4311 = vmatpush2.bf16.msra.mxu0 0
  %4312 = vmatprep.subr.bf16.mxu0 0
  %4313 = vmatpush2.bf16.msra.mxu0 0
  %4314 = vmatprep.subr.bf16.mxu0 0
  %4315 = vmatpush2.bf16.msra.mxu0 0
  %4316 = vmatprep.subr.bf16.mxu0 0
  %4317 = vmatpush2.bf16.msra.mxu0 0
  %4318 = vmatprep.subr.bf16.mxu0 0
  %4319 = vmatpush2.bf16.msra.mxu0 0
  %4320 = vmatprep.subr.bf16.mxu0 0
  %4321 = vmatpush2.bf16.msra.mxu0 0
  %4322 = vmatprep.mubr.bf16.mxu0 0
  %4323 = vmatmul.mubr.bf16.gmra.mxu0 %v4225
  %v4324 = vpop.f32.mrf.mxu0
  %v4325 = vadd.f32 0.0, %v4324
  %v4326 = vpop.f32.mrf.mxu0
  %v4327 = vpop.f32.mrf.mxu0
  %v4328 = vpop.f32.mrf.mxu0
  %4329 = vdwg.mxu0
  %v4330 = vld [vmem:[%s65] sm:$0x1]
  %v4332 = vlaneseq
  %v4333 = vshrl.u32 %v4332, 7
  %v4334 = vsub.s32 0, %v4333
  %v4335 = vrot.slane %v4330, %v4334
  %v4337 = vmul.f32 %v4325, %v4335
  %v4338 = vld [vmem:[%s67] sm:$0x1]
  %v4340 = vlaneseq
  %v4341 = vshrl.u32 %v4340, 7
  %v4342 = vsub.s32 0, %v4341
  %v4343 = vrot.slane %v4338, %v4342
  %v4345 = vadd.f32 %v4337, %v4343
  %v4346 = vadd.f32 %v4345, %v4057
  %v4347 = vmax.f32 %v4346, 0.0
  %v4348 = vpack.c.bf16 %v4347, %v4347
  %v4349 = vld [vmem:[%s91] sm:$0xf]
  %v4351 = vsel %vm3284, %v4349, 0
  %v4354 = vsel %vm3288, %v4348, 0
  %4356 = vmatprep.subr.bf16.mxu0 0
  %4357 = vmatpush1.bf16.msra.mxu0 0
  %4358 = vmatprep.subr.bf16.mxu0 0
  %4359 = vmatpush1.bf16.msra.mxu0 0
  %4360 = vmatprep.subr.bf16.mxu0 0
  %4361 = vmatpush1.bf16.msra.mxu0 0
  %4362 = vmatprep.subr.bf16.mxu0 0
  %4363 = vmatpush1.bf16.msra.mxu0 0
  %4364 = vmatprep.subr.bf16.mxu0 0
  %4365 = vmatpush1.bf16.msra.mxu0 0
  %4366 = vmatprep.subr.bf16.mxu0 0
  %4367 = vmatpush1.bf16.msra.mxu0 0
  %4368 = vmatprep.subr.bf16.mxu0 0
  %4369 = vmatpush1.bf16.msra.mxu0 0
  %4370 = vmatprep.subr.bf16.mxu0 0
  %4371 = vmatpush1.bf16.msra.mxu0 %v4354
  %4372 = vmatprep.subr.bf16.mxu0 0
  %4373 = vmatpush2.bf16.msra.mxu0 0
  %4374 = vmatprep.subr.bf16.mxu0 0
  %4375 = vmatpush2.bf16.msra.mxu0 0
  %4376 = vmatprep.subr.bf16.mxu0 0
  %4377 = vmatpush2.bf16.msra.mxu0 0
  %4378 = vmatprep.subr.bf16.mxu0 0
  %4379 = vmatpush2.bf16.msra.mxu0 0
  %4380 = vmatprep.subr.bf16.mxu0 0
  %4381 = vmatpush2.bf16.msra.mxu0 0
  %4382 = vmatprep.subr.bf16.mxu0 0
  %4383 = vmatpush2.bf16.msra.mxu0 0
  %4384 = vmatprep.subr.bf16.mxu0 0
  %4385 = vmatpush2.bf16.msra.mxu0 0
  %4386 = vmatprep.subr.bf16.mxu0 0
  %4387 = vmatpush2.bf16.msra.mxu0 0
  %4388 = vmatprep.mubr.bf16.mxu0 0
  %4389 = vmatmul.mubr.bf16.gmra.mxu0 %v4351
  %v4390 = vpop.f32.mrf.mxu0
  %v4391 = vadd.f32 0.0, %v4390
  %v4392 = vpop.f32.mrf.mxu0
  %v4393 = vpop.f32.mrf.mxu0
  %v4394 = vpop.f32.mrf.mxu0
  %4395 = vdwg.mxu0
  %v4396 = vpack.c.bf16 %v4391, %v4391
  %v4397 = vld [vmem:[%s87] sm:$0xf]
  %v4398 = vld [vmem:[%s87 + $0x4] sm:$0xf]
  %v4399 = vld [vmem:[%s87 + $0x8] sm:$0xf]
  %v4400 = vld [vmem:[%s87 + $0xc] sm:$0xf]
  %v4401 = vld [vmem:[%s87 + $0x10] sm:$0xf]
  %v4402 = vld [vmem:[%s87 + $0x14] sm:$0xf]
  %v4403 = vld [vmem:[%s87 + $0x18] sm:$0xf]
  %v4404 = vld [vmem:[%s87 + $0x1c] sm:$0xf]
  %v4405 = vld [vmem:[%s87 + $0x20] sm:$0xf]
  %v4406 = vld [vmem:[%s87 + $0x24] sm:$0xf]
  %v4407 = vld [vmem:[%s87 + $0x28] sm:$0xf]
  %v4408 = vld [vmem:[%s87 + $0x2c] sm:$0xf]
  %v4409 = vld [vmem:[%s87 + $0x30] sm:$0xf]
  %v4410 = vld [vmem:[%s87 + $0x34] sm:$0xf]
  %v4411 = vld [vmem:[%s87 + $0x38] sm:$0xf]
  %v4412 = vld [vmem:[%s87 + $0x3c] sm:$0xf]
  %v4413 = vld [vmem:[%s85] sm:$0x1]
  %v4415 = vlaneseq
  %v4416 = vshrl.u32 %v4415, 7
  %v4417 = vsub.s32 0, %v4416
  %v4418 = vrot.slane %v4413, %v4417
  %v4436 = vunpack.c.l.b16 %v4397
  %v4437 = vunpack.c.l.b16 %v4398
  %v4438 = vunpack.c.l.b16 %v4399
  %v4439 = vunpack.c.l.b16 %v4400
  %v4440 = vunpack.c.l.b16 %v4401
  %v4441 = vunpack.c.l.b16 %v4402
  %v4442 = vunpack.c.l.b16 %v4403
  %v4443 = vunpack.c.l.b16 %v4404
  %v4444 = vunpack.c.l.b16 %v4405
  %v4445 = vunpack.c.l.b16 %v4406
  %v4446 = vunpack.c.l.b16 %v4407
  %v4447 = vunpack.c.l.b16 %v4408
  %v4448 = vunpack.c.l.b16 %v4409
  %v4449 = vunpack.c.l.b16 %v4410
  %v4450 = vunpack.c.l.b16 %v4411
  %v4451 = vunpack.c.l.b16 %v4412
  %v4452 = vpack.c.b16 %v4437, %v4436
  %v4453 = vpack.c.b16 %v4439, %v4438
  %v4454 = vpack.c.b16 %v4441, %v4440
  %v4455 = vpack.c.b16 %v4443, %v4442
  %v4456 = vpack.c.b16 %v4445, %v4444
  %v4457 = vpack.c.b16 %v4447, %v4446
  %v4458 = vpack.c.b16 %v4449, %v4448
  %v4459 = vpack.c.b16 %v4451, %v4450
  %4468 = vmatprep.subr.bf16.mxu0 0
  %4469 = vmatpush1.bf16.msra.mxu0 %v4459
  %4470 = vmatprep.subr.bf16.mxu0 0
  %4471 = vmatpush1.bf16.msra.mxu0 %v4458
  %4472 = vmatprep.subr.bf16.mxu0 0
  %4473 = vmatpush1.bf16.msra.mxu0 %v4457
  %4474 = vmatprep.subr.bf16.mxu0 0
  %4475 = vmatpush1.bf16.msra.mxu0 %v4456
  %4476 = vmatprep.subr.bf16.mxu0 0
  %4477 = vmatpush1.bf16.msra.mxu0 %v4455
  %4478 = vmatprep.subr.bf16.mxu0 0
  %4479 = vmatpush1.bf16.msra.mxu0 %v4454
  %4480 = vmatprep.subr.bf16.mxu0 0
  %4481 = vmatpush1.bf16.msra.mxu0 %v4453
  %4482 = vmatprep.subr.bf16.mxu0 0
  %4483 = vmatpush1.bf16.msra.mxu0 %v4452
  %4484 = vmatprep.subr.bf16.mxu0 0
  %4485 = vmatpush2.bf16.msra.mxu0 0
  %4486 = vmatprep.subr.bf16.mxu0 0
  %4487 = vmatpush2.bf16.msra.mxu0 0
  %4488 = vmatprep.subr.bf16.mxu0 0
  %4489 = vmatpush2.bf16.msra.mxu0 0
  %4490 = vmatprep.subr.bf16.mxu0 0
  %4491 = vmatpush2.bf16.msra.mxu0 0
  %4492 = vmatprep.subr.bf16.mxu0 0
  %4493 = vmatpush2.bf16.msra.mxu0 0
  %4494 = vmatprep.subr.bf16.mxu0 0
  %4495 = vmatpush2.bf16.msra.mxu0 0
  %4496 = vmatprep.subr.bf16.mxu0 0
  %4497 = vmatpush2.bf16.msra.mxu0 0
  %4498 = vmatprep.subr.bf16.mxu0 0
  %4499 = vmatpush2.bf16.msra.mxu0 0
  %4500 = vmatprep.mubr.bf16.mxu0 0
  %4501 = vmatmul.mubr.bf16.gmra.mxu0 %v4396
  %v4502 = vpop.f32.mrf.mxu0
  %v4503 = vadd.f32 %v4418, %v4502
  %v4504 = vpop.f32.mrf.mxu0
  %v4505 = vpop.f32.mrf.mxu0
  %v4506 = vpop.f32.mrf.mxu0
  %4507 = vdwg.mxu0
  %v4508 = vlaneseq
  %v4509 = vand.u32 %v4508, 127
  %vm4510 = vcmp.lt.s32.totalorder %v4509, 10
  %v4511 = vsel %vm4510, %v4503, -1e+30
  %4512 = vmax.xlane.f32.xlu0 %v4511
  %v4513 = vpop.xlane.xlu0 %4512
  %v4514 = vsub.f32 %v4511, %v4513
  %v4515 = vmul.f32 %v4514, 1.442695
  %v4516 = vpow.pop %v4515
  %4517 = vadd.xlane.f32.xlu0 %v4516
  %v4518 = vpop.xlane.xlu0 %4517
  %v4519 = vlog2.pop %v4518
  %v4520 = vmul.f32 %v4519, 0.6931472
  %v4521 = vsub.f32 %v4514, %v4520
  %4522 = vst [vmem:[%s95] sm:$0xff] %v4521
  // Predicated region
  $region190: #{_lambda_.1} parent=0 // pred_check
    _
  $region191: #{_lambda_.1} parent=0 // pred_check_branch
    %4524 = sbr.rel (0) target = $region193
  $region192: #{_lambda_.1} parent=0 // pred_region
    _
  $region193: #{_lambda_.1} parent=0 // pred_fallthru
    _
  // Predicated region
  $region194: #{_lambda_.1} parent=0 // pred_check
    _
  $region195: #{_lambda_.1} parent=0 // pred_check_branch
    %4526 = sbr.rel (0) target = $region197
  $region196: #{_lambda_.1} parent=0 // pred_region
    _
  $region197: #{_lambda_.1} parent=0 // pred_fallthru
    _

</llo_original>
